<compile_context>
chip_gen: v6e
topology: v6e:2x2x1
jax: 0.10.0
libtpu: 0.0.40
codegen_flags: <defaults>
</compile_context>

<pallas_src>
import jax
import jax.numpy as jnp
from jax.experimental import pallas as pl
from jax.experimental.pallas import tpu as pltpu

LEAK = 0.2
BN_EPS = 1e-5


# ----------------------------- Pallas kernels ------------------------------

def _conv_lrelu_kernel(p_ref, w_ref, o_ref):
    # conv (as im2col matmul) + LeakyReLU, bf16 store
    acc = jnp.dot(p_ref[...], w_ref[...], preferred_element_type=jnp.float32)
    o_ref[...] = jnp.where(acc > 0, acc, LEAK * acc).astype(o_ref.dtype)


def _conv_bn_lrelu_kernel(p_ref, w_ref, g_ref, b_ref, o_ref):
    # conv + training-mode BatchNorm (batch stats over the whole batch, which
    # is entirely in this block) + LeakyReLU, fused; centered two-pass
    # variance avoids the E[x^2]-E[x]^2 cancellation issue.
    acc = jnp.dot(p_ref[...], w_ref[...], preferred_element_type=jnp.float32)
    m = acc.shape[0]
    mean = jnp.sum(acc, axis=0, keepdims=True) * (1.0 / m)
    cent = acc - mean
    var = jnp.sum(cent * cent, axis=0, keepdims=True) * (1.0 / m)   # biased
    scale = g_ref[...] * jax.lax.rsqrt(var + BN_EPS)
    y = cent * scale + b_ref[...]
    o_ref[...] = jnp.where(y > 0, y, LEAK * y).astype(o_ref.dtype)


def _final_kernel(p_ref, w_ref, fcw_ref, fcb_ref, o_ref):
    # last conv (1x1 spatial) + LeakyReLU + Linear(Cout, 1), accumulated over
    # the ('arbitrary') Cout-chunk grid axis into the resident (N, 1) output.
    @pl.when(pl.program_id(0) == 0)
    def _():
        o_ref[...] = jnp.broadcast_to(fcb_ref[...], o_ref.shape)

    acc = jnp.dot(p_ref[...], w_ref[...], preferred_element_type=jnp.float32)
    act = jnp.where(acc > 0, acc, LEAK * acc)
    o_ref[...] += jnp.sum(act * fcw_ref[...], axis=-1, keepdims=True)


# ------------------------------- glue (JAX) --------------------------------

def _im2col(x_nhwc):
    """pad(1) + full 4x4 / stride-2 im2col -> (N*Ho*Wo, 16*Cin) bf16.

    Column order is (kh, kw, c), matching w_hwio.reshape(16*Cin, Cout).
    """
    n, h, w, c = x_nhwc.shape
    ho, wo = h // 2, w // 2
    xp = jnp.pad(x_nhwc, ((0, 0), (1, 1), (1, 1), (0, 0)))
    cols = [xp[:, kh:kh + 2 * ho:2, kw:kw + 2 * wo:2, :]
            for kh in range(4) for kw in range(4)]
    p = jnp.concatenate(cols, axis=-1)                  # (n, ho, wo, 16c)
    return p.reshape(n * ho * wo, 16 * c).astype(jnp.bfloat16), ho, wo


def _prep_weight(w_hwio):
    cin, cout = w_hwio.shape[2], w_hwio.shape[3]
    return w_hwio.reshape(16 * cin, cout).astype(jnp.bfloat16)


def conv_lrelu_layer(x_nhwc, w_hwio, *, row_tile=256):
    """conv(k=4, s=2, p=1, bias=False) + LeakyReLU(0.2), bf16 out."""
    n = x_nhwc.shape[0]
    cout = w_hwio.shape[-1]
    p, ho, wo = _im2col(x_nhwc)
    mtot, k = p.shape
    w2 = _prep_weight(w_hwio)
    tm = row_tile if (mtot >= row_tile and mtot % row_tile == 0) else mtot

    out = pl.pallas_call(
        _conv_lrelu_kernel,
        grid=(mtot // tm,),
        in_specs=[
            pl.BlockSpec((tm, k), lambda i: (i, 0)),       # patch row tile
            pl.BlockSpec((k, cout), lambda i: (0, 0)),     # resident weight
        ],
        out_specs=pl.BlockSpec((tm, cout), lambda i: (i, 0)),
        out_shape=jax.ShapeDtypeStruct((mtot, cout), jnp.bfloat16),
        compiler_params=pltpu.CompilerParams(
            dimension_semantics=("parallel",)),
    )(p, w2)
    return out.reshape(n, ho, wo, cout)


def conv_bn_lrelu_layer(x_nhwc, w_hwio, gamma, beta, *, cout_tile=512):
    """conv(k=4, s=2, p=1, bias=False) + BatchNorm2d (batch stats) + LeakyReLU.

    Whole batch in one block (a few hundred KB at these sizes); the only grid
    axis is an independent, 'parallel' Cout chunk.
    """
    n = x_nhwc.shape[0]
    cout = w_hwio.shape[-1]
    p, ho, wo = _im2col(x_nhwc)
    mtot, k = p.shape
    w2 = _prep_weight(w_hwio)
    g2 = gamma.reshape(1, cout).astype(jnp.float32)
    b2 = beta.reshape(1, cout).astype(jnp.float32)
    tc = cout_tile if (cout > cout_tile and cout % cout_tile == 0) else cout

    out = pl.pallas_call(
        _conv_bn_lrelu_kernel,
        grid=(cout // tc,),
        in_specs=[
            pl.BlockSpec((mtot, k), lambda j: (0, 0)),     # whole-batch patches
            pl.BlockSpec((k, tc), lambda j: (0, j)),       # Cout-tiled weight
            pl.BlockSpec((1, tc), lambda j: (0, j)),       # gamma
            pl.BlockSpec((1, tc), lambda j: (0, j)),       # beta
        ],
        out_specs=pl.BlockSpec((mtot, tc), lambda j: (0, j)),
        out_shape=jax.ShapeDtypeStruct((mtot, cout), jnp.bfloat16),
        compiler_params=pltpu.CompilerParams(
            dimension_semantics=("parallel",)),
    )(p, w2, g2, b2)
    return out.reshape(n, ho, wo, cout)


def final_conv_fc_layer(x_nhwc, w_hwio, fc_w, fc_b, *, cout_tile=512):
    """Last conv (spatial -> 1x1) + LeakyReLU + Linear(conv_dim*32, 1), fused."""
    n = x_nhwc.shape[0]
    cout = w_hwio.shape[-1]
    p, ho, wo = _im2col(x_nhwc)
    assert ho == 1 and wo == 1, "expects 64x64 input so the fc sees 1x1 spatial"
    mtot, k = p.shape                                      # mtot == n
    w2 = _prep_weight(w_hwio)
    fcw = fc_w.reshape(1, cout).astype(jnp.float32)
    fcb = fc_b.reshape(1, 1).astype(jnp.float32)
    tc = cout_tile if (cout > cout_tile and cout % cout_tile == 0) else cout

    out = pl.pallas_call(
        _final_kernel,
        grid=(cout // tc,),
        in_specs=[
            pl.BlockSpec((mtot, k), lambda j: (0, 0)),     # resident patches
            pl.BlockSpec((k, tc), lambda j: (0, j)),       # Cout-tiled weight
            pl.BlockSpec((1, tc), lambda j: (0, j)),       # fc weight chunk
            pl.BlockSpec((1, 1), lambda j: (0, 0)),        # fc bias
        ],
        out_specs=pl.BlockSpec((mtot, 1), lambda j: (0, 0)),   # resident logits
        out_shape=jax.ShapeDtypeStruct((mtot, 1), jnp.float32),
        compiler_params=pltpu.CompilerParams(
            dimension_semantics=("arbitrary",)),           # accumulates over j
    )(p, w2, fcw, fcb)
    return out


# ------------------------------ model wrapper -------------------------------

def init_params(conv_dim, key):
    """Deterministic synthetic parameters (shapes match the PyTorch module)."""
    chans = [3, conv_dim, conv_dim * 2, conv_dim * 4,
             conv_dim * 8, conv_dim * 16, conv_dim * 32]
    has_bn = [False, False, True, True, True, False]
    keys = jax.random.split(key, 8)
    params = {"convs": []}
    for i in range(6):
        cin, cout = chans[i], chans[i + 1]
        # weight stored HWIO: [kh, kw, cin, cout]  (== torch OIHW transposed)
        w = jax.random.normal(keys[i], (4, 4, cin, cout), jnp.float32) * 0.05
        layer = {"w": w}
        if has_bn[i]:
            layer["gamma"] = jnp.ones((cout,), jnp.float32) + 0.1 * (i + 1)
            layer["beta"] = jnp.full((cout,), 0.01 * (i + 1), jnp.float32)
        params["convs"].append(layer)
    fc_in = conv_dim * 32
    params["fc_w"] = jax.random.normal(keys[6], (fc_in, 1), jnp.float32) * 0.05
    params["fc_b"] = jax.random.normal(keys[7], (1,), jnp.float32) * 0.05
    return params


def data_discriminator_forward(params, x_nchw):
    # PyTorch input is NCHW; kernels work in NHWC, bf16 MXU operands.
    out = jnp.transpose(x_nchw, (0, 2, 3, 1)).astype(jnp.bfloat16)
    convs = params["convs"]
    for layer in convs[:-1]:
        if "gamma" in layer:
            out = conv_bn_lrelu_layer(out, layer["w"], layer["gamma"], layer["beta"])
        else:
            out = conv_lrelu_layer(out, layer["w"])
    # layer 6 (+ LeakyReLU) fused with the final Linear -> logits [N, 1]
    last = convs[-1]
    return final_conv_fc_layer(out, last["w"], params["fc_w"], params["fc_b"])


# ---------------------------------- main ------------------------------------

if __name__ == "__main__":
    conv_dim = 8
    batch = 2
    key = jax.random.PRNGKey(0)
    k_x, k_p = jax.random.split(key)

    # Input consistent with the module: NCHW, 3 channels, 64x64 so the six
    # stride-2 k=4 p=1 convs reduce spatial to 1x1 before the fc.
    x = jax.random.normal(k_x, (batch, 3, 64, 64), jnp.float32)
    params = init_params(conv_dim, k_p)

    fwd = jax.jit(data_discriminator_forward)
    logits = fwd(params, x)
    jax.block_until_ready(logits)
    assert logits.shape == (batch, 1)
    assert bool(jnp.all(jnp.isfinite(logits)))
    print("KERNEL_OK")
</pallas_src>

<mosaic_0001>
module attributes {stable_mosaic.version = 11 : i64} {
  func.func @_conv_lrelu_kernel(%arg0: i32, %arg1: memref<256x48xbf16, #tpu.memory_space<vmem>>, %arg2: memref<48x8xbf16, #tpu.memory_space<vmem>>, %arg3: memref<256x8xbf16, #tpu.memory_space<vmem>>) attributes {dimension_semantics = [#tpu.dimension_semantics<parallel>], iteration_bounds = array<i64: 8>, scalar_prefetch = 0 : i64, scratch_operands = 0 : i64, tpu.core_type = #tpu.core_type<tc>, window_params = [{transform_indices = @transform_0, window_bounds = array<i64: 256, 48>}, {pipeline_mode = #tpu.pipeline_mode<synchronous>, transform_indices = @transform_1, window_bounds = array<i64: 48, 8>}, {transform_indices = @transform_2, window_bounds = array<i64: 256, 8>}]} {
    %c0 = arith.constant 0 : index
    %c0_0 = arith.constant 0 : index
    %0 = vector.load %arg1[%c0, %c0_0] : memref<256x48xbf16, #tpu.memory_space<vmem>>, vector<256x48xbf16>
    %c0_1 = arith.constant 0 : index
    %c0_2 = arith.constant 0 : index
    %1 = vector.load %arg2[%c0_1, %c0_2] : memref<48x8xbf16, #tpu.memory_space<vmem>>, vector<48x8xbf16>
    %cst = arith.constant dense<0.000000e+00> : vector<256x8xf32>
    %2 = tpu.matmul %0, %1, %cst {dimension_numbers = #tpu.dot_dimension_numbers<[1], [0], [0], [1], [0, 0, 1, 1], [], []>} : vector<256x48xbf16>, vector<48x8xbf16>, vector<256x8xf32> -> vector<256x8xf32>
    %cst_3 = arith.constant 0.000000e+00 : f32
    %3 = vector.broadcast %cst_3 : f32 to vector<256x8xf32>
    %4 = arith.cmpf ogt, %2, %3 : vector<256x8xf32>
    %cst_4 = arith.constant 2.000000e-01 : f32
    %5 = vector.broadcast %cst_4 : f32 to vector<256x8xf32>
    %6 = arith.mulf %5, %2 : vector<256x8xf32>
    %7 = arith.select %4, %2, %6 : vector<256x8xi1>, vector<256x8xf32>
    %8 = arith.truncf %7 : vector<256x8xf32> to vector<256x8xbf16>
    %c0_5 = arith.constant 0 : index
    %c0_6 = arith.constant 0 : index
    %9 = vector.load %arg3[%c0_5, %c0_6] : memref<256x8xbf16, #tpu.memory_space<vmem>>, vector<256x8xbf16>
    tpu.vector_store %arg3[%c0_5, %c0_6], %8 {strides = array<i32>} : memref<256x8xbf16, #tpu.memory_space<vmem>>, vector<256x8xbf16>,
    return
  }
  func.func @transform_0(%arg0: i32) -> (i32, i32) {
    %c0_i32 = arith.constant 0 : i32
    %c0_i32_0 = arith.constant 0 : i32
    return %arg0, %c0_i32 : i32, i32
  }
  func.func @transform_1(%arg0: i32) -> (i32, i32) {
    %c0_i32 = arith.constant 0 : i32
    %c0_i32_0 = arith.constant 0 : i32
    %c0_i32_1 = arith.constant 0 : i32
    return %c0_i32, %c0_i32_0 : i32, i32
  }
  func.func @transform_2(%arg0: i32) -> (i32, i32) {
    %c0_i32 = arith.constant 0 : i32
    %c0_i32_0 = arith.constant 0 : i32
    return %arg0, %c0_i32 : i32, i32
  }
}

module attributes {stable_mosaic.version = 11 : i64} {
  func.func @_conv_lrelu_kernel(%arg0: i32, %arg1: memref<256x128xbf16, #tpu.memory_space<vmem>>, %arg2: memref<128x16xbf16, #tpu.memory_space<vmem>>, %arg3: memref<256x16xbf16, #tpu.memory_space<vmem>>) attributes {dimension_semantics = [#tpu.dimension_semantics<parallel>], iteration_bounds = array<i64: 2>, scalar_prefetch = 0 : i64, scratch_operands = 0 : i64, tpu.core_type = #tpu.core_type<tc>, window_params = [{transform_indices = @transform_0, window_bounds = array<i64: 256, 128>}, {pipeline_mode = #tpu.pipeline_mode<synchronous>, transform_indices = @transform_1, window_bounds = array<i64: 128, 16>}, {transform_indices = @transform_2, window_bounds = array<i64: 256, 16>}]} {
    %c0 = arith.constant 0 : index
    %c0_0 = arith.constant 0 : index
    %0 = vector.load %arg1[%c0, %c0_0] : memref<256x128xbf16, #tpu.memory_space<vmem>>, vector<256x128xbf16>
    %c0_1 = arith.constant 0 : index
    %c0_2 = arith.constant 0 : index
    %1 = vector.load %arg2[%c0_1, %c0_2] : memref<128x16xbf16, #tpu.memory_space<vmem>>, vector<128x16xbf16>
    %cst = arith.constant dense<0.000000e+00> : vector<256x16xf32>
    %2 = tpu.matmul %0, %1, %cst {dimension_numbers = #tpu.dot_dimension_numbers<[1], [0], [0], [1], [0, 0, 1, 1], [], []>} : vector<256x128xbf16>, vector<128x16xbf16>, vector<256x16xf32> -> vector<256x16xf32>
    %cst_3 = arith.constant 0.000000e+00 : f32
    %3 = vector.broadcast %cst_3 : f32 to vector<256x16xf32>
    %4 = arith.cmpf ogt, %2, %3 : vector<256x16xf32>
    %cst_4 = arith.constant 2.000000e-01 : f32
    %5 = vector.broadcast %cst_4 : f32 to vector<256x16xf32>
    %6 = arith.mulf %5, %2 : vector<256x16xf32>
    %7 = arith.select %4, %2, %6 : vector<256x16xi1>, vector<256x16xf32>
    %8 = arith.truncf %7 : vector<256x16xf32> to vector<256x16xbf16>
    %c0_5 = arith.constant 0 : index
    %c0_6 = arith.constant 0 : index
    %9 = vector.load %arg3[%c0_5, %c0_6] : memref<256x16xbf16, #tpu.memory_space<vmem>>, vector<256x16xbf16>
    tpu.vector_store %arg3[%c0_5, %c0_6], %8 {strides = array<i32>} : memref<256x16xbf16, #tpu.memory_space<vmem>>, vector<256x16xbf16>,
    return
  }
  func.func @transform_0(%arg0: i32) -> (i32, i32) {
    %c0_i32 = arith.constant 0 : i32
    %c0_i32_0 = arith.constant 0 : i32
    return %arg0, %c0_i32 : i32, i32
  }
  func.func @transform_1(%arg0: i32) -> (i32, i32) {
    %c0_i32 = arith.constant 0 : i32
    %c0_i32_0 = arith.constant 0 : i32
    %c0_i32_1 = arith.constant 0 : i32
    return %c0_i32, %c0_i32_0 : i32, i32
  }
  func.func @transform_2(%arg0: i32) -> (i32, i32) {
    %c0_i32 = arith.constant 0 : i32
    %c0_i32_0 = arith.constant 0 : i32
    return %arg0, %c0_i32 : i32, i32
  }
}

module attributes {stable_mosaic.version = 11 : i64} {
  func.func @_conv_bn_lrelu_kernel(%arg0: i32, %arg1: memref<128x256xbf16, #tpu.memory_space<vmem>>, %arg2: memref<256x32xbf16, #tpu.memory_space<vmem>>, %arg3: memref<1x32xf32, #tpu.memory_space<vmem>>, %arg4: memref<1x32xf32, #tpu.memory_space<vmem>>, %arg5: memref<128x32xbf16, #tpu.memory_space<vmem>>) attributes {dimension_semantics = [#tpu.dimension_semantics<parallel>], iteration_bounds = array<i64: 1>, scalar_prefetch = 0 : i64, scratch_operands = 0 : i64, tpu.core_type = #tpu.core_type<tc>, window_params = [{pipeline_mode = #tpu.pipeline_mode<synchronous>, transform_indices = @transform_0, window_bounds = array<i64: 128, 256>}, {transform_indices = @transform_1, window_bounds = array<i64: 256, 32>}, {transform_indices = @transform_2, window_bounds = array<i64: 1, 32>}, {transform_indices = @transform_3, window_bounds = array<i64: 1, 32>}, {transform_indices = @transform_4, window_bounds = array<i64: 128, 32>}]} {
    %c0 = arith.constant 0 : index
    %c0_0 = arith.constant 0 : index
    %0 = vector.load %arg1[%c0, %c0_0] : memref<128x256xbf16, #tpu.memory_space<vmem>>, vector<128x256xbf16>
    %c0_1 = arith.constant 0 : index
    %c0_2 = arith.constant 0 : index
    %1 = vector.load %arg2[%c0_1, %c0_2] : memref<256x32xbf16, #tpu.memory_space<vmem>>, vector<256x32xbf16>
    %cst = arith.constant dense<0.000000e+00> : vector<128x32xf32>
    %2 = tpu.matmul %0, %1, %cst {dimension_numbers = #tpu.dot_dimension_numbers<[1], [0], [0], [1], [0, 0, 1, 1], [], []>} : vector<128x256xbf16>, vector<256x32xbf16>, vector<128x32xf32> -> vector<128x32xf32>
    %cst_3 = arith.constant dense<0.000000e+00> : vector<32xf32>
    %3 = vector.multi_reduction <add>, %2, %cst_3 [0] : vector<128x32xf32> to vector<32xf32>
    %4 = vector.shape_cast %3 : vector<32xf32> to vector<1x32xf32>
    %cst_4 = arith.constant 7.812500e-03 : f32
    %5 = vector.broadcast %cst_4 : f32 to vector<1x32xf32>
    %6 = arith.mulf %4, %5 : vector<1x32xf32>
    %7 = vector.broadcast %6 : vector<1x32xf32> to vector<128x32xf32>
    %8 = arith.subf %2, %7 : vector<128x32xf32>
    %9 = arith.mulf %8, %8 : vector<128x32xf32>
    %cst_5 = arith.constant dense<0.000000e+00> : vector<32xf32>
    %10 = vector.multi_reduction <add>, %9, %cst_5 [0] : vector<128x32xf32> to vector<32xf32>
    %11 = vector.shape_cast %10 : vector<32xf32> to vector<1x32xf32>
    %cst_6 = arith.constant 7.812500e-03 : f32
    %12 = vector.broadcast %cst_6 : f32 to vector<1x32xf32>
    %13 = arith.mulf %11, %12 : vector<1x32xf32>
    %c0_7 = arith.constant 0 : index
    %c0_8 = arith.constant 0 : index
    %14 = vector.load %arg3[%c0_7, %c0_8] : memref<1x32xf32, #tpu.memory_space<vmem>>, vector<1x32xf32>
    %cst_9 = arith.constant 9.99999974E-6 : f32
    %15 = vector.broadcast %cst_9 : f32 to vector<1x32xf32>
    %16 = arith.addf %13, %15 : vector<1x32xf32>
    %17 = math.rsqrt %16 : vector<1x32xf32>
    %18 = arith.mulf %14, %17 : vector<1x32xf32>
    %19 = vector.broadcast %18 : vector<1x32xf32> to vector<128x32xf32>
    %20 = arith.mulf %8, %19 : vector<128x32xf32>
    %c0_10 = arith.constant 0 : index
    %c0_11 = arith.constant 0 : index
    %21 = vector.load %arg4[%c0_10, %c0_11] : memref<1x32xf32, #tpu.memory_space<vmem>>, vector<1x32xf32>
    %22 = vector.broadcast %21 : vector<1x32xf32> to vector<128x32xf32>
    %23 = arith.addf %20, %22 : vector<128x32xf32>
    %cst_12 = arith.constant 0.000000e+00 : f32
    %24 = vector.broadcast %cst_12 : f32 to vector<128x32xf32>
    %25 = arith.cmpf ogt, %23, %24 : vector<128x32xf32>
    %cst_13 = arith.constant 2.000000e-01 : f32
    %26 = vector.broadcast %cst_13 : f32 to vector<128x32xf32>
    %27 = arith.mulf %26, %23 : vector<128x32xf32>
    %28 = arith.select %25, %23, %27 : vector<128x32xi1>, vector<128x32xf32>
    %29 = arith.truncf %28 : vector<128x32xf32> to vector<128x32xbf16>
    %c0_14 = arith.constant 0 : index
    %c0_15 = arith.constant 0 : index
    %30 = vector.load %arg5[%c0_14, %c0_15] : memref<128x32xbf16, #tpu.memory_space<vmem>>, vector<128x32xbf16>
    tpu.vector_store %arg5[%c0_14, %c0_15], %29 {strides = array<i32>} : memref<128x32xbf16, #tpu.memory_space<vmem>>, vector<128x32xbf16>,
    return
  }
  func.func @transform_0(%arg0: i32) -> (i32, i32) {
    %c0_i32 = arith.constant 0 : i32
    %c0_i32_0 = arith.constant 0 : i32
    %c0_i32_1 = arith.constant 0 : i32
    return %c0_i32, %c0_i32_0 : i32, i32
  }
  func.func @transform_1(%arg0: i32) -> (i32, i32) {
    %c0_i32 = arith.constant 0 : i32
    %c0_i32_0 = arith.constant 0 : i32
    return %c0_i32, %arg0 : i32, i32
  }
  func.func @transform_2(%arg0: i32) -> (i32, i32) {
    %c0_i32 = arith.constant 0 : i32
    %c0_i32_0 = arith.constant 0 : i32
    return %c0_i32, %arg0 : i32, i32
  }
  func.func @transform_3(%arg0: i32) -> (i32, i32) {
    %c0_i32 = arith.constant 0 : i32
    %c0_i32_0 = arith.constant 0 : i32
    return %c0_i32, %arg0 : i32, i32
  }
  func.func @transform_4(%arg0: i32) -> (i32, i32) {
    %c0_i32 = arith.constant 0 : i32
    %c0_i32_0 = arith.constant 0 : i32
    return %c0_i32, %arg0 : i32, i32
  }
}

module attributes {stable_mosaic.version = 11 : i64} {
  func.func @_conv_bn_lrelu_kernel(%arg0: i32, %arg1: memref<32x512xbf16, #tpu.memory_space<vmem>>, %arg2: memref<512x64xbf16, #tpu.memory_space<vmem>>, %arg3: memref<1x64xf32, #tpu.memory_space<vmem>>, %arg4: memref<1x64xf32, #tpu.memory_space<vmem>>, %arg5: memref<32x64xbf16, #tpu.memory_space<vmem>>) attributes {dimension_semantics = [#tpu.dimension_semantics<parallel>], iteration_bounds = array<i64: 1>, scalar_prefetch = 0 : i64, scratch_operands = 0 : i64, tpu.core_type = #tpu.core_type<tc>, window_params = [{pipeline_mode = #tpu.pipeline_mode<synchronous>, transform_indices = @transform_0, window_bounds = array<i64: 32, 512>}, {transform_indices = @transform_1, window_bounds = array<i64: 512, 64>}, {transform_indices = @transform_2, window_bounds = array<i64: 1, 64>}, {transform_indices = @transform_3, window_bounds = array<i64: 1, 64>}, {transform_indices = @transform_4, window_bounds = array<i64: 32, 64>}]} {
    %c0 = arith.constant 0 : index
    %c0_0 = arith.constant 0 : index
    %0 = vector.load %arg1[%c0, %c0_0] : memref<32x512xbf16, #tpu.memory_space<vmem>>, vector<32x512xbf16>
    %c0_1 = arith.constant 0 : index
    %c0_2 = arith.constant 0 : index
    %1 = vector.load %arg2[%c0_1, %c0_2] : memref<512x64xbf16, #tpu.memory_space<vmem>>, vector<512x64xbf16>
    %cst = arith.constant dense<0.000000e+00> : vector<32x64xf32>
    %2 = tpu.matmul %0, %1, %cst {dimension_numbers = #tpu.dot_dimension_numbers<[1], [0], [0], [1], [0, 0, 1, 1], [], []>} : vector<32x512xbf16>, vector<512x64xbf16>, vector<32x64xf32> -> vector<32x64xf32>
    %cst_3 = arith.constant dense<0.000000e+00> : vector<64xf32>
    %3 = vector.multi_reduction <add>, %2, %cst_3 [0] : vector<32x64xf32> to vector<64xf32>
    %4 = vector.shape_cast %3 : vector<64xf32> to vector<1x64xf32>
    %cst_4 = arith.constant 3.125000e-02 : f32
    %5 = vector.broadcast %cst_4 : f32 to vector<1x64xf32>
    %6 = arith.mulf %4, %5 : vector<1x64xf32>
    %7 = vector.broadcast %6 : vector<1x64xf32> to vector<32x64xf32>
    %8 = arith.subf %2, %7 : vector<32x64xf32>
    %9 = arith.mulf %8, %8 : vector<32x64xf32>
    %cst_5 = arith.constant dense<0.000000e+00> : vector<64xf32>
    %10 = vector.multi_reduction <add>, %9, %cst_5 [0] : vector<32x64xf32> to vector<64xf32>
    %11 = vector.shape_cast %10 : vector<64xf32> to vector<1x64xf32>
    %cst_6 = arith.constant 3.125000e-02 : f32
    %12 = vector.broadcast %cst_6 : f32 to vector<1x64xf32>
    %13 = arith.mulf %11, %12 : vector<1x64xf32>
    %c0_7 = arith.constant 0 : index
    %c0_8 = arith.constant 0 : index
    %14 = vector.load %arg3[%c0_7, %c0_8] : memref<1x64xf32, #tpu.memory_space<vmem>>, vector<1x64xf32>
    %cst_9 = arith.constant 9.99999974E-6 : f32
    %15 = vector.broadcast %cst_9 : f32 to vector<1x64xf32>
    %16 = arith.addf %13, %15 : vector<1x64xf32>
    %17 = math.rsqrt %16 : vector<1x64xf32>
    %18 = arith.mulf %14, %17 : vector<1x64xf32>
    %19 = vector.broadcast %18 : vector<1x64xf32> to vector<32x64xf32>
    %20 = arith.mulf %8, %19 : vector<32x64xf32>
    %c0_10 = arith.constant 0 : index
    %c0_11 = arith.constant 0 : index
    %21 = vector.load %arg4[%c0_10, %c0_11] : memref<1x64xf32, #tpu.memory_space<vmem>>, vector<1x64xf32>
    %22 = vector.broadcast %21 : vector<1x64xf32> to vector<32x64xf32>
    %23 = arith.addf %20, %22 : vector<32x64xf32>
    %cst_12 = arith.constant 0.000000e+00 : f32
    %24 = vector.broadcast %cst_12 : f32 to vector<32x64xf32>
    %25 = arith.cmpf ogt, %23, %24 : vector<32x64xf32>
    %cst_13 = arith.constant 2.000000e-01 : f32
    %26 = vector.broadcast %cst_13 : f32 to vector<32x64xf32>
    %27 = arith.mulf %26, %23 : vector<32x64xf32>
    %28 = arith.select %25, %23, %27 : vector<32x64xi1>, vector<32x64xf32>
    %29 = arith.truncf %28 : vector<32x64xf32> to vector<32x64xbf16>
    %c0_14 = arith.constant 0 : index
    %c0_15 = arith.constant 0 : index
    %30 = vector.load %arg5[%c0_14, %c0_15] : memref<32x64xbf16, #tpu.memory_space<vmem>>, vector<32x64xbf16>
    tpu.vector_store %arg5[%c0_14, %c0_15], %29 {strides = array<i32>} : memref<32x64xbf16, #tpu.memory_space<vmem>>, vector<32x64xbf16>,
    return
  }
  func.func @transform_0(%arg0: i32) -> (i32, i32) {
    %c0_i32 = arith.constant 0 : i32
    %c0_i32_0 = arith.constant 0 : i32
    %c0_i32_1 = arith.constant 0 : i32
    return %c0_i32, %c0_i32_0 : i32, i32
  }
  func.func @transform_1(%arg0: i32) -> (i32, i32) {
    %c0_i32 = arith.constant 0 : i32
    %c0_i32_0 = arith.constant 0 : i32
    return %c0_i32, %arg0 : i32, i32
  }
  func.func @transform_2(%arg0: i32) -> (i32, i32) {
    %c0_i32 = arith.constant 0 : i32
    %c0_i32_0 = arith.constant 0 : i32
    return %c0_i32, %arg0 : i32, i32
  }
  func.func @transform_3(%arg0: i32) -> (i32, i32) {
    %c0_i32 = arith.constant 0 : i32
    %c0_i32_0 = arith.constant 0 : i32
    return %c0_i32, %arg0 : i32, i32
  }
  func.func @transform_4(%arg0: i32) -> (i32, i32) {
    %c0_i32 = arith.constant 0 : i32
    %c0_i32_0 = arith.constant 0 : i32
    return %c0_i32, %arg0 : i32, i32
  }
}

module attributes {stable_mosaic.version = 11 : i64} {
  func.func @_conv_bn_lrelu_kernel(%arg0: i32, %arg1: memref<8x1024xbf16, #tpu.memory_space<vmem>>, %arg2: memref<1024x128xbf16, #tpu.memory_space<vmem>>, %arg3: memref<1x128xf32, #tpu.memory_space<vmem>>, %arg4: memref<1x128xf32, #tpu.memory_space<vmem>>, %arg5: memref<8x128xbf16, #tpu.memory_space<vmem>>) attributes {dimension_semantics = [#tpu.dimension_semantics<parallel>], iteration_bounds = array<i64: 1>, scalar_prefetch = 0 : i64, scratch_operands = 0 : i64, tpu.core_type = #tpu.core_type<tc>, window_params = [{pipeline_mode = #tpu.pipeline_mode<synchronous>, transform_indices = @transform_0, window_bounds = array<i64: 8, 1024>}, {transform_indices = @transform_1, window_bounds = array<i64: 1024, 128>}, {transform_indices = @transform_2, window_bounds = array<i64: 1, 128>}, {transform_indices = @transform_3, window_bounds = array<i64: 1, 128>}, {transform_indices = @transform_4, window_bounds = array<i64: 8, 128>}]} {
    %c0 = arith.constant 0 : index
    %c0_0 = arith.constant 0 : index
    %0 = vector.load %arg1[%c0, %c0_0] : memref<8x1024xbf16, #tpu.memory_space<vmem>>, vector<8x1024xbf16>
    %c0_1 = arith.constant 0 : index
    %c0_2 = arith.constant 0 : index
    %1 = vector.load %arg2[%c0_1, %c0_2] : memref<1024x128xbf16, #tpu.memory_space<vmem>>, vector<1024x128xbf16>
    %cst = arith.constant dense<0.000000e+00> : vector<8x128xf32>
    %2 = tpu.matmul %0, %1, %cst {dimension_numbers = #tpu.dot_dimension_numbers<[1], [0], [0], [1], [0, 0, 1, 1], [], []>} : vector<8x1024xbf16>, vector<1024x128xbf16>, vector<8x128xf32> -> vector<8x128xf32>
    %cst_3 = arith.constant dense<0.000000e+00> : vector<128xf32>
    %3 = vector.multi_reduction <add>, %2, %cst_3 [0] : vector<8x128xf32> to vector<128xf32>
    %4 = vector.shape_cast %3 : vector<128xf32> to vector<1x128xf32>
    %cst_4 = arith.constant 1.250000e-01 : f32
    %5 = vector.broadcast %cst_4 : f32 to vector<1x128xf32>
    %6 = arith.mulf %4, %5 : vector<1x128xf32>
    %7 = vector.broadcast %6 : vector<1x128xf32> to vector<8x128xf32>
    %8 = arith.subf %2, %7 : vector<8x128xf32>
    %9 = arith.mulf %8, %8 : vector<8x128xf32>
    %cst_5 = arith.constant dense<0.000000e+00> : vector<128xf32>
    %10 = vector.multi_reduction <add>, %9, %cst_5 [0] : vector<8x128xf32> to vector<128xf32>
    %11 = vector.shape_cast %10 : vector<128xf32> to vector<1x128xf32>
    %cst_6 = arith.constant 1.250000e-01 : f32
    %12 = vector.broadcast %cst_6 : f32 to vector<1x128xf32>
    %13 = arith.mulf %11, %12 : vector<1x128xf32>
    %c0_7 = arith.constant 0 : index
    %c0_8 = arith.constant 0 : index
    %14 = vector.load %arg3[%c0_7, %c0_8] : memref<1x128xf32, #tpu.memory_space<vmem>>, vector<1x128xf32>
    %cst_9 = arith.constant 9.99999974E-6 : f32
    %15 = vector.broadcast %cst_9 : f32 to vector<1x128xf32>
    %16 = arith.addf %13, %15 : vector<1x128xf32>
    %17 = math.rsqrt %16 : vector<1x128xf32>
    %18 = arith.mulf %14, %17 : vector<1x128xf32>
    %19 = vector.broadcast %18 : vector<1x128xf32> to vector<8x128xf32>
    %20 = arith.mulf %8, %19 : vector<8x128xf32>
    %c0_10 = arith.constant 0 : index
    %c0_11 = arith.constant 0 : index
    %21 = vector.load %arg4[%c0_10, %c0_11] : memref<1x128xf32, #tpu.memory_space<vmem>>, vector<1x128xf32>
    %22 = vector.broadcast %21 : vector<1x128xf32> to vector<8x128xf32>
    %23 = arith.addf %20, %22 : vector<8x128xf32>
    %cst_12 = arith.constant 0.000000e+00 : f32
    %24 = vector.broadcast %cst_12 : f32 to vector<8x128xf32>
    %25 = arith.cmpf ogt, %23, %24 : vector<8x128xf32>
    %cst_13 = arith.constant 2.000000e-01 : f32
    %26 = vector.broadcast %cst_13 : f32 to vector<8x128xf32>
    %27 = arith.mulf %26, %23 : vector<8x128xf32>
    %28 = arith.select %25, %23, %27 : vector<8x128xi1>, vector<8x128xf32>
    %29 = arith.truncf %28 : vector<8x128xf32> to vector<8x128xbf16>
    %c0_14 = arith.constant 0 : index
    %c0_15 = arith.constant 0 : index
    %30 = vector.load %arg5[%c0_14, %c0_15] : memref<8x128xbf16, #tpu.memory_space<vmem>>, vector<8x128xbf16>
    tpu.vector_store %arg5[%c0_14, %c0_15], %29 {strides = array<i32>} : memref<8x128xbf16, #tpu.memory_space<vmem>>, vector<8x128xbf16>,
    return
  }
  func.func @transform_0(%arg0: i32) -> (i32, i32) {
    %c0_i32 = arith.constant 0 : i32
    %c0_i32_0 = arith.constant 0 : i32
    %c0_i32_1 = arith.constant 0 : i32
    return %c0_i32, %c0_i32_0 : i32, i32
  }
  func.func @transform_1(%arg0: i32) -> (i32, i32) {
    %c0_i32 = arith.constant 0 : i32
    %c0_i32_0 = arith.constant 0 : i32
    return %c0_i32, %arg0 : i32, i32
  }
  func.func @transform_2(%arg0: i32) -> (i32, i32) {
    %c0_i32 = arith.constant 0 : i32
    %c0_i32_0 = arith.constant 0 : i32
    return %c0_i32, %arg0 : i32, i32
  }
  func.func @transform_3(%arg0: i32) -> (i32, i32) {
    %c0_i32 = arith.constant 0 : i32
    %c0_i32_0 = arith.constant 0 : i32
    return %c0_i32, %arg0 : i32, i32
  }
  func.func @transform_4(%arg0: i32) -> (i32, i32) {
    %c0_i32 = arith.constant 0 : i32
    %c0_i32_0 = arith.constant 0 : i32
    return %c0_i32, %arg0 : i32, i32
  }
}

module attributes {stable_mosaic.version = 11 : i64} {
  func.func @_final_kernel(%arg0: i32, %arg1: memref<2x2048xbf16, #tpu.memory_space<vmem>>, %arg2: memref<2048x256xbf16, #tpu.memory_space<vmem>>, %arg3: memref<1x256xf32, #tpu.memory_space<vmem>>, %arg4: memref<1x1xf32, #tpu.memory_space<vmem>>, %arg5: memref<2x1xf32, #tpu.memory_space<vmem>>) attributes {dimension_semantics = [#tpu.dimension_semantics<arbitrary>], iteration_bounds = array<i64: 1>, scalar_prefetch = 0 : i64, scratch_operands = 0 : i64, tpu.core_type = #tpu.core_type<tc>, window_params = [{pipeline_mode = #tpu.pipeline_mode<synchronous>, transform_indices = @transform_0, window_bounds = array<i64: 2, 2048>}, {transform_indices = @transform_1, window_bounds = array<i64: 2048, 256>}, {transform_indices = @transform_2, window_bounds = array<i64: 1, 256>}, {pipeline_mode = #tpu.pipeline_mode<synchronous>, transform_indices = @transform_3, window_bounds = array<i64: 1, 1>}, {pipeline_mode = #tpu.pipeline_mode<synchronous>, transform_indices = @transform_4, window_bounds = array<i64: 2, 1>}]} {
    %c0_i32 = arith.constant 0 : i32
    %0 = arith.cmpi eq, %arg0, %c0_i32 : i32
    %1 = arith.extui %0 : i1 to i32
    %c0_i32_0 = arith.constant 0 : i32
    %2 = arith.cmpi ne, %1, %c0_i32_0 : i32
    scf.if %2 {
      %c0_13 = arith.constant 0 : index
      %c0_14 = arith.constant 0 : index
      %19 = vector.load %arg4[%c0_13, %c0_14] : memref<1x1xf32, #tpu.memory_space<vmem>>, vector<1x1xf32>
      %20 = vector.shape_cast %19 : vector<1x1xf32> to vector<1x1xf32>
      %21 = vector.broadcast %20 : vector<1x1xf32> to vector<2x1xf32>
      %c0_15 = arith.constant 0 : index
      %c0_16 = arith.constant 0 : index
      %22 = vector.load %arg5[%c0_15, %c0_16] : memref<2x1xf32, #tpu.memory_space<vmem>>, vector<2x1xf32>
      tpu.vector_store %arg5[%c0_15, %c0_16], %21 {strides = array<i32>} : memref<2x1xf32, #tpu.memory_space<vmem>>, vector<2x1xf32>,
    } else {
    }
    %c0 = arith.constant 0 : index
    %c0_1 = arith.constant 0 : index
    %3 = vector.load %arg1[%c0, %c0_1] : memref<2x2048xbf16, #tpu.memory_space<vmem>>, vector<2x2048xbf16>
    %c0_2 = arith.constant 0 : index
    %c0_3 = arith.constant 0 : index
    %4 = vector.load %arg2[%c0_2, %c0_3] : memref<2048x256xbf16, #tpu.memory_space<vmem>>, vector<2048x256xbf16>
    %cst = arith.constant dense<0.000000e+00> : vector<2x256xf32>
    %5 = tpu.matmul %3, %4, %cst {dimension_numbers = #tpu.dot_dimension_numbers<[1], [0], [0], [1], [0, 0, 1, 1], [], []>} : vector<2x2048xbf16>, vector<2048x256xbf16>, vector<2x256xf32> -> vector<2x256xf32>
    %cst_4 = arith.constant 0.000000e+00 : f32
    %6 = vector.broadcast %cst_4 : f32 to vector<2x256xf32>
    %7 = arith.cmpf ogt, %5, %6 : vector<2x256xf32>
    %cst_5 = arith.constant 2.000000e-01 : f32
    %8 = vector.broadcast %cst_5 : f32 to vector<2x256xf32>
    %9 = arith.mulf %8, %5 : vector<2x256xf32>
    %10 = arith.select %7, %5, %9 : vector<2x256xi1>, vector<2x256xf32>
    %c0_6 = arith.constant 0 : index
    %c0_7 = arith.constant 0 : index
    %11 = vector.load %arg5[%c0_6, %c0_7] : memref<2x1xf32, #tpu.memory_space<vmem>>, vector<2x1xf32>
    %c0_8 = arith.constant 0 : index
    %c0_9 = arith.constant 0 : index
    %12 = vector.load %arg3[%c0_8, %c0_9] : memref<1x256xf32, #tpu.memory_space<vmem>>, vector<1x256xf32>
    %13 = vector.broadcast %12 : vector<1x256xf32> to vector<2x256xf32>
    %14 = arith.mulf %10, %13 : vector<2x256xf32>
    %cst_10 = arith.constant dense<0.000000e+00> : vector<2xf32>
    %15 = vector.multi_reduction <add>, %14, %cst_10 [1] : vector<2x256xf32> to vector<2xf32>
    %16 = vector.shape_cast %15 : vector<2xf32> to vector<2x1xf32>
    %17 = arith.addf %11, %16 : vector<2x1xf32>
    %c0_11 = arith.constant 0 : index
    %c0_12 = arith.constant 0 : index
    %18 = vector.load %arg5[%c0_11, %c0_12] : memref<2x1xf32, #tpu.memory_space<vmem>>, vector<2x1xf32>
    tpu.vector_store %arg5[%c0_11, %c0_12], %17 {strides = array<i32>} : memref<2x1xf32, #tpu.memory_space<vmem>>, vector<2x1xf32>,
    return
  }
  func.func @transform_0(%arg0: i32) -> (i32, i32) {
    %c0_i32 = arith.constant 0 : i32
    %c0_i32_0 = arith.constant 0 : i32
    %c0_i32_1 = arith.constant 0 : i32
    return %c0_i32, %c0_i32_0 : i32, i32
  }
  func.func @transform_1(%arg0: i32) -> (i32, i32) {
    %c0_i32 = arith.constant 0 : i32
    %c0_i32_0 = arith.constant 0 : i32
    return %c0_i32, %arg0 : i32, i32
  }
  func.func @transform_2(%arg0: i32) -> (i32, i32) {
    %c0_i32 = arith.constant 0 : i32
    %c0_i32_0 = arith.constant 0 : i32
    return %c0_i32, %arg0 : i32, i32
  }
  func.func @transform_3(%arg0: i32) -> (i32, i32) {
    %c0_i32 = arith.constant 0 : i32
    %c0_i32_0 = arith.constant 0 : i32
    %c0_i32_1 = arith.constant 0 : i32
    return %c0_i32, %c0_i32_0 : i32, i32
  }
  func.func @transform_4(%arg0: i32) -> (i32, i32) {
    %c0_i32 = arith.constant 0 : i32
    %c0_i32_0 = arith.constant 0 : i32
    %c0_i32_1 = arith.constant 0 : i32
    return %c0_i32, %c0_i32_0 : i32, i32
  }
}

</mosaic_0001>

<llo_original>
// kernel: data_discriminator_forward.6
$region0: #{data_discriminator_forward.6}
  #allocation0 [shape = 'u32[]', space=smem, size = 0x4, offset = 0x4, fixed_abs, tag = 'smem constant byte address 0x4 - core index']
  #allocation1 [shape = 'u32[144,128]{1,0:T(1,128)}', space=vmem, size = 0x12000, scoped, tag = 'internal scratch']
  %s0 = inlined_call_operand.vmem [shape: bf16[2048,48], index: 0, kind: input, shape index: {}]
  %s1 = inlined_call_operand.vmem [shape: bf16[48,8], index: 1, kind: input, shape index: {}]
  %s2 = inlined_call_operand.vmem [shape: bf16[2048,8], index: 2, kind: output, shape index: {}]
  %s3 = sld [smem:[#allocation0]]
  $region41: #{data_discriminator_forward.6} parent=0
    _
  %s5 = ssub.s32 1, %s3
  %s6 = scalar_select 0, %s5, %s3
  loop: start=0, step=1, limit=10
  $region2: #{data_discriminator_forward.6} parent=0 // loop_pre_header
    _
  $region3: #{data_discriminator_forward.6} parent=0 // loop_header
    %s8 = sphi 0, %s12
    %p9 = scmp.ge.s32.totalorder %s8, 10
    %s18 = sphi 0, %s20
    %s21 = sphi 0, %s18
    %s22 = sphi 0, %s21
    %s38 = sphi 0, %s22
    %s42 = sphi 0, %s42
    %s44 = sphi 0, %s42
    %s45 = sphi 0, %s44
    %s59 = sphi 0, %s45
    %s65 = sphi 0, %s67
    %s68 = sphi 0, %s65
    %s69 = sphi 0, %s68
    %s85 = sphi 0, %s69
  $region4: #{data_discriminator_forward.6} parent=0 // loop_header_branch
    %11 = sbr.rel (%p9) target = $region8
  $region5: #{data_discriminator_forward.6} parent=0 // loop_body
    %s13 = ssub.s32 %s8, 1
    %s14 = ssub.s32 %s8, 2
    %s15 = sadd.s32 %s8, 1
    %s16 = ssub.s32 %s8, %s15
    %p17 = scmp.eq.s32.totalorder %s16, 0
    %s19 = sadd.s32 %s18, 1
    %s20 = scalar_select %p17, %s18, %s19
    %p23 = pneg %p17
    %p24 = scmp.eq.s32.totalorder %s8, 7
    %p25 = por %p23, %p24
    %p26 = scmp.ne.s32.totalorder %s18, %s21
    %p27 = scmp.eq.s32.totalorder %s8, 0
    %p28 = por %p26, %p27
    %p29 = scmp.ne.s32.totalorder %s18, %s21
    %p30 = scmp.eq.s32.totalorder %s13, 7
    %p31 = por %p29, %p30
    %p32 = scmp.ne.s32.totalorder %s21, %s22
    %p33 = scmp.eq.s32.totalorder %s13, 0
    %p34 = por %p32, %p33
    %p35 = scmp.ne.s32.totalorder %s21, %s22
    %p36 = scmp.eq.s32.totalorder %s14, 7
    %p37 = por %p35, %p36
    %p39 = scmp.ne.s32.totalorder %s22, %s38
    %p40 = scmp.eq.s32.totalorder %s14, 0
    %p41 = por %p39, %p40
    %s43 = sadd.s32 %s42, 1
    %p46 = scmp.eq.s32.totalorder %s8, 7
    %p47 = scmp.ne.s32.totalorder %s42, %s44
    %p48 = scmp.eq.s32.totalorder %s8, 0
    %p49 = por %p47, %p48
    %p50 = scmp.ne.s32.totalorder %s42, %s44
    %p51 = scmp.eq.s32.totalorder %s13, 7
    %p52 = por %p50, %p51
    %p53 = scmp.ne.s32.totalorder %s44, %s45
    %p54 = scmp.eq.s32.totalorder %s13, 0
    %p55 = por %p53, %p54
    %p56 = scmp.ne.s32.totalorder %s44, %s45
    %p57 = scmp.eq.s32.totalorder %s14, 7
    %p58 = por %p56, %p57
    %p60 = scmp.ne.s32.totalorder %s45, %s59
    %p61 = scmp.eq.s32.totalorder %s14, 0
    %p62 = por %p60, %p61
    %s63 = ssub.s32 %s8, %s15
    %p64 = scmp.eq.s32.totalorder %s63, 0
    %s66 = sadd.s32 %s65, 1
    %s67 = scalar_select %p64, %s65, %s66
    %p70 = pneg %p64
    %p71 = scmp.eq.s32.totalorder %s8, 7
    %p72 = por %p70, %p71
    %p73 = scmp.ne.s32.totalorder %s65, %s68
    %p74 = scmp.eq.s32.totalorder %s8, 0
    %p75 = por %p73, %p74
    %p76 = scmp.ne.s32.totalorder %s65, %s68
    %p77 = scmp.eq.s32.totalorder %s13, 7
    %p78 = por %p76, %p77
    %p79 = scmp.ne.s32.totalorder %s68, %s69
    %p80 = scmp.eq.s32.totalorder %s13, 0
    %p81 = por %p79, %p80
    %p82 = scmp.ne.s32.totalorder %s68, %s69
    %p83 = scmp.eq.s32.totalorder %s14, 7
    %p84 = por %p82, %p83
    %p86 = scmp.ne.s32.totalorder %s69, %s85
    %p87 = scmp.eq.s32.totalorder %s14, 0
    %p88 = por %p86, %p87
    %p89 = scmp.le.s32.totalorder 1, %s8
    %p90 = scmp.lt.s32.totalorder %s8, 9
    %p91 = pnand %p89, %p90
    %p92 = pneg %p91
    // Predicated region
    $region9: #{data_discriminator_forward.6} parent=5 // pred_check
      _
    $region10: #{data_discriminator_forward.6} parent=5 // pred_check_branch
      %94 = sbr.rel (%p91) target = $region12
    $region11: #{data_discriminator_forward.6} parent=5 // pred_region
      %s95 = ssub.s32 %s8, 1
      // Predicated region
      $region13: #{data_discriminator_forward.6} parent=11 // pred_check
        %p96 = pneg %p55
      $region14: #{data_discriminator_forward.6} parent=11 // pred_check_branch
        %98 = sbr.rel (%p96) target = $region16
      $region15: #{data_discriminator_forward.6} parent=11 // pred_region
        _
      $region16: #{data_discriminator_forward.6} parent=11 // pred_fallthru
        _
    $region12: #{data_discriminator_forward.6} parent=5 // pred_fallthru
      _
    %p99 = scmp.lt.s32.totalorder %s8, 8
    // Predicated region
    $region17: #{data_discriminator_forward.6} parent=5 // pred_check
      %p100 = pneg %p99
    $region18: #{data_discriminator_forward.6} parent=5 // pred_check_branch
      %102 = sbr.rel (%p100) target = $region20
    $region19: #{data_discriminator_forward.6} parent=5 // pred_region
      // Predicated region
      $region21: #{data_discriminator_forward.6} parent=19 // pred_check
        %p103 = pneg %p28
      $region22: #{data_discriminator_forward.6} parent=19 // pred_check_branch
        %105 = sbr.rel (%p103) target = $region24
      $region23: #{data_discriminator_forward.6} parent=19 // pred_region
        %s106 = smul.u32 32, %s8
        %p107 = scmp.lt.s32.totalorder %s106, 255
        %s108 = scalar_select %p107, %s106, 255
        %s109 = smul.addr %s108, 4
        %s110 = scalar_lea.vmem %s0, %s109
        %s111 = smul.u32 32, %s8
      $region24: #{data_discriminator_forward.6} parent=19 // pred_fallthru
        _
    $region20: #{data_discriminator_forward.6} parent=5 // pred_fallthru
      _
    %p112 = scmp.le.s32.totalorder 1, %s8
    %p113 = scmp.lt.s32.totalorder %s8, 9
    %p114 = pnand %p112, %p113
    %p115 = pneg %p114
    // Predicated region
    $region25: #{data_discriminator_forward.6} parent=5 // pred_check
      _
    $region26: #{data_discriminator_forward.6} parent=5 // pred_check_branch
      %117 = sbr.rel (%p114) target = $region28
    $region27: #{data_discriminator_forward.6} parent=5 // pred_region
      %s118 = ssub.s32 %s8, 1
      %s119 = smul.u32 32, %s13
      %p120 = scmp.lt.s32.totalorder %s119, 255
      %s121 = scalar_select %p120, %s119, 255
      %s122 = smul.addr %s121, 4
      %s123 = scalar_lea.vmem %s0, %s122
      %p124 = pneg %p34
      %p125 = pneg %p31
      %p126 = pneg %p55
      %p127 = pneg %p52
      %p128 = pneg %p81
      %p129 = pneg %p78
      %s130 = smul.u32 32, %s13
      %p131 = scmp.lt.s32.totalorder %s130, 255
      %s132 = scalar_select %p131, %s130, 255
      %s133 = smul.addr %s132, 4
      %s134 = scalar_lea.vmem %s2, %s133
      %s135 = smul.u32 32, %s13
      %p136 = scmp.lt.s32.totalorder %s135, 255
      %s137 = scalar_select %p136, %s135, 255
      %s138 = smul.addr %s137, 4
      %s139 = scalar_lea.vmem %s0, %s138
      %s140 = smul.u32 32, %s13
      %s141 = smul.u32 32, %s13
      %p142 = scmp.lt.s32.totalorder %s141, 255
      %s143 = scalar_select %p142, %s141, 255
      %s144 = smul.addr %s143, 4
      %s145 = scalar_lea.vmem %s2, %s144
      %s146 = smul.u32 32, %s13
      %v148 = vld [vmem:[%s139] sm:$0xf]
      %v149 = vld [vmem:[%s139 + $0x4] sm:$0xf]
      %v150 = vld [vmem:[%s139 + $0x8] sm:$0xf]
      %v151 = vld [vmem:[%s139 + $0xc] sm:$0xf]
      %v152 = vld [vmem:[%s139 + $0x10] sm:$0xf]
      %v153 = vld [vmem:[%s139 + $0x14] sm:$0xf]
      %v154 = vld [vmem:[%s139 + $0x18] sm:$0xf]
      %v155 = vld [vmem:[%s139 + $0x1c] sm:$0xf]
      %v156 = vld [vmem:[%s139 + $0x20] sm:$0xf]
      %v157 = vld [vmem:[%s139 + $0x24] sm:$0xf]
      %v158 = vld [vmem:[%s139 + $0x28] sm:$0xf]
      %v159 = vld [vmem:[%s139 + $0x2c] sm:$0xf]
      %v160 = vld [vmem:[%s139 + $0x30] sm:$0xf]
      %v161 = vld [vmem:[%s139 + $0x34] sm:$0xf]
      %v162 = vld [vmem:[%s139 + $0x38] sm:$0xf]
      %v163 = vld [vmem:[%s139 + $0x3c] sm:$0xf]
      %v164 = vld [vmem:[%s139 + $0x40] sm:$0xf]
      %v165 = vld [vmem:[%s139 + $0x44] sm:$0xf]
      %v166 = vld [vmem:[%s139 + $0x48] sm:$0xf]
      %v167 = vld [vmem:[%s139 + $0x4c] sm:$0xf]
      %v168 = vld [vmem:[%s139 + $0x50] sm:$0xf]
      %v169 = vld [vmem:[%s139 + $0x54] sm:$0xf]
      %v170 = vld [vmem:[%s139 + $0x58] sm:$0xf]
      %v171 = vld [vmem:[%s139 + $0x5c] sm:$0xf]
      %v172 = vld [vmem:[%s139 + $0x60] sm:$0xf]
      %v173 = vld [vmem:[%s139 + $0x64] sm:$0xf]
      %v174 = vld [vmem:[%s139 + $0x68] sm:$0xf]
      %v175 = vld [vmem:[%s139 + $0x6c] sm:$0xf]
      %v176 = vld [vmem:[%s139 + $0x70] sm:$0xf]
      %v177 = vld [vmem:[%s139 + $0x74] sm:$0xf]
      %v178 = vld [vmem:[%s139 + $0x78] sm:$0xf]
      %v179 = vld [vmem:[%s139 + $0x7c] sm:$0xf]
      %v180 = vld [vmem:[%s1] sm:$0xf]
      %v181 = vld [vmem:[%s1 + $0x4] sm:$0xf]
      %v182 = vld [vmem:[%s1 + $0x8] sm:$0xf]
      %v183 = vld [vmem:[%s1 + $0xc] sm:$0xf]
      %v184 = vld [vmem:[%s1 + $0x10] sm:$0xf]
      %v185 = vld [vmem:[%s1 + $0x14] sm:$0xf]
      %v218 = vunpack.c.l.b16 %v148
      %v219 = vunpack.c.l.b16 %v149
      %v220 = vunpack.c.l.b16 %v150
      %v221 = vunpack.c.l.b16 %v151
      %v222 = vunpack.c.l.b16 %v152
      %v223 = vunpack.c.l.b16 %v153
      %v224 = vunpack.c.l.b16 %v154
      %v225 = vunpack.c.l.b16 %v155
      %v226 = vunpack.c.l.b16 %v156
      %v227 = vunpack.c.l.b16 %v157
      %v228 = vunpack.c.l.b16 %v158
      %v229 = vunpack.c.l.b16 %v159
      %v230 = vunpack.c.l.b16 %v160
      %v231 = vunpack.c.l.b16 %v161
      %v232 = vunpack.c.l.b16 %v162
      %v233 = vunpack.c.l.b16 %v163
      %v234 = vunpack.c.l.b16 %v164
      %v235 = vunpack.c.l.b16 %v165
      %v236 = vunpack.c.l.b16 %v166
      %v237 = vunpack.c.l.b16 %v167
      %v238 = vunpack.c.l.b16 %v168
      %v239 = vunpack.c.l.b16 %v169
      %v240 = vunpack.c.l.b16 %v170
      %v241 = vunpack.c.l.b16 %v171
      %v242 = vunpack.c.l.b16 %v172
      %v243 = vunpack.c.l.b16 %v173
      %v244 = vunpack.c.l.b16 %v174
      %v245 = vunpack.c.l.b16 %v175
      %v246 = vunpack.c.l.b16 %v176
      %v247 = vunpack.c.l.b16 %v177
      %v248 = vunpack.c.l.b16 %v178
      %v249 = vunpack.c.l.b16 %v179
      %v250 = vpack.c.b16 %v219, %v218
      %v251 = vpack.c.b16 %v221, %v220
      %v252 = vpack.c.b16 %v223, %v222
      %v253 = vpack.c.b16 %v225, %v224
      %v254 = vpack.c.b16 %v227, %v226
      %v255 = vpack.c.b16 %v229, %v228
      %v256 = vpack.c.b16 %v231, %v230
      %v257 = vpack.c.b16 %v233, %v232
      %v258 = vpack.c.b16 %v235, %v234
      %v259 = vpack.c.b16 %v237, %v236
      %v260 = vpack.c.b16 %v239, %v238
      %v261 = vpack.c.b16 %v241, %v240
      %v262 = vpack.c.b16 %v243, %v242
      %v263 = vpack.c.b16 %v245, %v244
      %v264 = vpack.c.b16 %v247, %v246
      %v265 = vpack.c.b16 %v249, %v248
      %v272 = vunpack.c.l.b16 %v180
      %v273 = vunpack.c.l.b16 %v181
      %v274 = vunpack.c.l.b16 %v182
      %v275 = vunpack.c.l.b16 %v183
      %v276 = vunpack.c.l.b16 %v184
      %v277 = vunpack.c.l.b16 %v185
      %v278 = vpack.c.b16 %v273, %v272
      %v279 = vpack.c.b16 %v275, %v274
      %v280 = vpack.c.b16 %v277, %v276
      %vm284 = vcmask 392192
      %v286 = vsel %vm284, %v250, 0
      %v289 = vsel %vm284, %v251, 0
      %v292 = vsel %vm284, %v252, 0
      %v295 = vsel %vm284, %v253, 0
      %v298 = vsel %vm284, %v254, 0
      %v301 = vsel %vm284, %v255, 0
      %v304 = vsel %vm284, %v256, 0
      %v307 = vsel %vm284, %v257, 0
      %v310 = vsel %vm284, %v258, 0
      %v313 = vsel %vm284, %v259, 0
      %v316 = vsel %vm284, %v260, 0
      %v319 = vsel %vm284, %v261, 0
      %v322 = vsel %vm284, %v262, 0
      %v325 = vsel %vm284, %v263, 0
      %v328 = vsel %vm284, %v264, 0
      %v331 = vsel %vm284, %v265, 0
      %333 = vmatprep.subr.bf16.mxu0 0
      %334 = vmatpush1.bf16.msra.mxu0 0
      %335 = vmatprep.subr.bf16.mxu0 0
      %336 = vmatpush1.bf16.msra.mxu0 0
      %337 = vmatprep.subr.bf16.mxu0 0
      %338 = vmatpush1.bf16.msra.mxu0 0
      %339 = vmatprep.subr.bf16.mxu0 0
      %340 = vmatpush1.bf16.msra.mxu0 0
      %341 = vmatprep.subr.bf16.mxu0 0
      %342 = vmatpush1.bf16.msra.mxu0 0
      %343 = vmatprep.subr.bf16.mxu0 0
      %344 = vmatpush1.bf16.msra.mxu0 %v280
      %345 = vmatprep.subr.bf16.mxu0 0
      %346 = vmatpush1.bf16.msra.mxu0 %v279
      %347 = vmatprep.subr.bf16.mxu0 0
      %348 = vmatpush1.bf16.msra.mxu0 %v278
      %349 = vmatprep.subr.bf16.mxu0 0
      %350 = vmatpush2.bf16.msra.mxu0 0
      %351 = vmatprep.subr.bf16.mxu0 0
      %352 = vmatpush2.bf16.msra.mxu0 0
      %353 = vmatprep.subr.bf16.mxu0 0
      %354 = vmatpush2.bf16.msra.mxu0 0
      %355 = vmatprep.subr.bf16.mxu0 0
      %356 = vmatpush2.bf16.msra.mxu0 0
      %357 = vmatprep.subr.bf16.mxu0 0
      %358 = vmatpush2.bf16.msra.mxu0 0
      %359 = vmatprep.subr.bf16.mxu0 0
      %360 = vmatpush2.bf16.msra.mxu0 0
      %361 = vmatprep.subr.bf16.mxu0 0
      %362 = vmatpush2.bf16.msra.mxu0 0
      %363 = vmatprep.subr.bf16.mxu0 0
      %364 = vmatpush2.bf16.msra.mxu0 0
      %365 = vmatprep.mubr.bf16.mxu0 0
      %366 = vmatmul.mubr.bf16.gmra.mxu0 %v286
      %v367 = vpop.f32.mrf.mxu0
      %v368 = vadd.f32 0.0, %v367
      %v369 = vpop.f32.mrf.mxu0
      %v370 = vpop.f32.mrf.mxu0
      %v371 = vadd.f32 0.0, %v370
      %v372 = vpop.f32.mrf.mxu0
      %373 = vmatprep.mubr.bf16.mxu0 0
      %374 = vmatmul.mubr.bf16.gmra.mxu0 %v289
      %v375 = vpop.f32.mrf.mxu0
      %v376 = vadd.f32 0.0, %v375
      %v377 = vpop.f32.mrf.mxu0
      %v378 = vpop.f32.mrf.mxu0
      %v379 = vadd.f32 0.0, %v378
      %v380 = vpop.f32.mrf.mxu0
      %381 = vmatprep.mubr.bf16.mxu0 0
      %382 = vmatmul.mubr.bf16.gmra.mxu0 %v292
      %v383 = vpop.f32.mrf.mxu0
      %v384 = vadd.f32 0.0, %v383
      %v385 = vpop.f32.mrf.mxu0
      %v386 = vpop.f32.mrf.mxu0
      %v387 = vadd.f32 0.0, %v386
      %v388 = vpop.f32.mrf.mxu0
      %389 = vmatprep.mubr.bf16.mxu0 0
      %390 = vmatmul.mubr.bf16.gmra.mxu0 %v295
      %v391 = vpop.f32.mrf.mxu0
      %v392 = vadd.f32 0.0, %v391
      %v393 = vpop.f32.mrf.mxu0
      %v394 = vpop.f32.mrf.mxu0
      %v395 = vadd.f32 0.0, %v394
      %v396 = vpop.f32.mrf.mxu0
      %397 = vmatprep.mubr.bf16.mxu0 0
      %398 = vmatmul.mubr.bf16.gmra.mxu0 %v298
      %v399 = vpop.f32.mrf.mxu0
      %v400 = vadd.f32 0.0, %v399
      %v401 = vpop.f32.mrf.mxu0
      %v402 = vpop.f32.mrf.mxu0
      %v403 = vadd.f32 0.0, %v402
      %v404 = vpop.f32.mrf.mxu0
      %405 = vmatprep.mubr.bf16.mxu0 0
      %406 = vmatmul.mubr.bf16.gmra.mxu0 %v301
      %v407 = vpop.f32.mrf.mxu0
      %v408 = vadd.f32 0.0, %v407
      %v409 = vpop.f32.mrf.mxu0
      %v410 = vpop.f32.mrf.mxu0
      %v411 = vadd.f32 0.0, %v410
      %v412 = vpop.f32.mrf.mxu0
      %413 = vmatprep.mubr.bf16.mxu0 0
      %414 = vmatmul.mubr.bf16.gmra.mxu0 %v304
      %v415 = vpop.f32.mrf.mxu0
      %v416 = vadd.f32 0.0, %v415
      %v417 = vpop.f32.mrf.mxu0
      %v418 = vpop.f32.mrf.mxu0
      %v419 = vadd.f32 0.0, %v418
      %v420 = vpop.f32.mrf.mxu0
      %421 = vmatprep.mubr.bf16.mxu0 0
      %422 = vmatmul.mubr.bf16.gmra.mxu0 %v307
      %v423 = vpop.f32.mrf.mxu0
      %v424 = vadd.f32 0.0, %v423
      %v425 = vpop.f32.mrf.mxu0
      %v426 = vpop.f32.mrf.mxu0
      %v427 = vadd.f32 0.0, %v426
      %v428 = vpop.f32.mrf.mxu0
      %429 = vmatprep.mubr.bf16.mxu0 0
      %430 = vmatmul.mubr.bf16.gmra.mxu0 %v310
      %v431 = vpop.f32.mrf.mxu0
      %v432 = vadd.f32 0.0, %v431
      %v433 = vpop.f32.mrf.mxu0
      %v434 = vpop.f32.mrf.mxu0
      %v435 = vadd.f32 0.0, %v434
      %v436 = vpop.f32.mrf.mxu0
      %437 = vmatprep.mubr.bf16.mxu0 0
      %438 = vmatmul.mubr.bf16.gmra.mxu0 %v313
      %v439 = vpop.f32.mrf.mxu0
      %v440 = vadd.f32 0.0, %v439
      %v441 = vpop.f32.mrf.mxu0
      %v442 = vpop.f32.mrf.mxu0
      %v443 = vadd.f32 0.0, %v442
      %v444 = vpop.f32.mrf.mxu0
      %445 = vmatprep.mubr.bf16.mxu0 0
      %446 = vmatmul.mubr.bf16.gmra.mxu0 %v316
      %v447 = vpop.f32.mrf.mxu0
      %v448 = vadd.f32 0.0, %v447
      %v449 = vpop.f32.mrf.mxu0
      %v450 = vpop.f32.mrf.mxu0
      %v451 = vadd.f32 0.0, %v450
      %v452 = vpop.f32.mrf.mxu0
      %453 = vmatprep.mubr.bf16.mxu0 0
      %454 = vmatmul.mubr.bf16.gmra.mxu0 %v319
      %v455 = vpop.f32.mrf.mxu0
      %v456 = vadd.f32 0.0, %v455
      %v457 = vpop.f32.mrf.mxu0
      %v458 = vpop.f32.mrf.mxu0
      %v459 = vadd.f32 0.0, %v458
      %v460 = vpop.f32.mrf.mxu0
      %461 = vmatprep.mubr.bf16.mxu0 0
      %462 = vmatmul.mubr.bf16.gmra.mxu0 %v322
      %v463 = vpop.f32.mrf.mxu0
      %v464 = vadd.f32 0.0, %v463
      %v465 = vpop.f32.mrf.mxu0
      %v466 = vpop.f32.mrf.mxu0
      %v467 = vadd.f32 0.0, %v466
      %v468 = vpop.f32.mrf.mxu0
      %469 = vmatprep.mubr.bf16.mxu0 0
      %470 = vmatmul.mubr.bf16.gmra.mxu0 %v325
      %v471 = vpop.f32.mrf.mxu0
      %v472 = vadd.f32 0.0, %v471
      %v473 = vpop.f32.mrf.mxu0
      %v474 = vpop.f32.mrf.mxu0
      %v475 = vadd.f32 0.0, %v474
      %v476 = vpop.f32.mrf.mxu0
      %477 = vmatprep.mubr.bf16.mxu0 0
      %478 = vmatmul.mubr.bf16.gmra.mxu0 %v328
      %v479 = vpop.f32.mrf.mxu0
      %v480 = vadd.f32 0.0, %v479
      %v481 = vpop.f32.mrf.mxu0
      %v482 = vpop.f32.mrf.mxu0
      %v483 = vadd.f32 0.0, %v482
      %v484 = vpop.f32.mrf.mxu0
      %485 = vmatprep.mubr.bf16.mxu0 0
      %486 = vmatmul.mubr.bf16.gmra.mxu0 %v331
      %v487 = vpop.f32.mrf.mxu0
      %v488 = vadd.f32 0.0, %v487
      %v489 = vpop.f32.mrf.mxu0
      %v490 = vpop.f32.mrf.mxu0
      %v491 = vadd.f32 0.0, %v490
      %v492 = vpop.f32.mrf.mxu0
      %493 = vdwg.mxu0
      %vm494 = vcmp.gt.f32.partialorder %v368, 0.0
      %vm495 = vcmp.gt.f32.partialorder %v371, 0.0
      %vm496 = vcmp.gt.f32.partialorder %v376, 0.0
      %vm497 = vcmp.gt.f32.partialorder %v379, 0.0
      %vm498 = vcmp.gt.f32.partialorder %v384, 0.0
      %vm499 = vcmp.gt.f32.partialorder %v387, 0.0
      %vm500 = vcmp.gt.f32.partialorder %v392, 0.0
      %vm501 = vcmp.gt.f32.partialorder %v395, 0.0
      %vm502 = vcmp.gt.f32.partialorder %v400, 0.0
      %vm503 = vcmp.gt.f32.partialorder %v403, 0.0
      %vm504 = vcmp.gt.f32.partialorder %v408, 0.0
      %vm505 = vcmp.gt.f32.partialorder %v411, 0.0
      %vm506 = vcmp.gt.f32.partialorder %v416, 0.0
      %vm507 = vcmp.gt.f32.partialorder %v419, 0.0
      %vm508 = vcmp.gt.f32.partialorder %v424, 0.0
      %vm509 = vcmp.gt.f32.partialorder %v427, 0.0
      %vm510 = vcmp.gt.f32.partialorder %v432, 0.0
      %vm511 = vcmp.gt.f32.partialorder %v435, 0.0
      %vm512 = vcmp.gt.f32.partialorder %v440, 0.0
      %vm513 = vcmp.gt.f32.partialorder %v443, 0.0
      %vm514 = vcmp.gt.f32.partialorder %v448, 0.0
      %vm515 = vcmp.gt.f32.partialorder %v451, 0.0
      %vm516 = vcmp.gt.f32.partialorder %v456, 0.0
      %vm517 = vcmp.gt.f32.partialorder %v459, 0.0
      %vm518 = vcmp.gt.f32.partialorder %v464, 0.0
      %vm519 = vcmp.gt.f32.partialorder %v467, 0.0
      %vm520 = vcmp.gt.f32.partialorder %v472, 0.0
      %vm521 = vcmp.gt.f32.partialorder %v475, 0.0
      %vm522 = vcmp.gt.f32.partialorder %v480, 0.0
      %vm523 = vcmp.gt.f32.partialorder %v483, 0.0
      %vm524 = vcmp.gt.f32.partialorder %v488, 0.0
      %vm525 = vcmp.gt.f32.partialorder %v491, 0.0
      %v526 = vmul.f32 %v368, 0.2
      %v527 = vmul.f32 %v371, 0.2
      %v528 = vmul.f32 %v376, 0.2
      %v529 = vmul.f32 %v379, 0.2
      %v530 = vmul.f32 %v384, 0.2
      %v531 = vmul.f32 %v387, 0.2
      %v532 = vmul.f32 %v392, 0.2
      %v533 = vmul.f32 %v395, 0.2
      %v534 = vmul.f32 %v400, 0.2
      %v535 = vmul.f32 %v403, 0.2
      %v536 = vmul.f32 %v408, 0.2
      %v537 = vmul.f32 %v411, 0.2
      %v538 = vmul.f32 %v416, 0.2
      %v539 = vmul.f32 %v419, 0.2
      %v540 = vmul.f32 %v424, 0.2
      %v541 = vmul.f32 %v427, 0.2
      %v542 = vmul.f32 %v432, 0.2
      %v543 = vmul.f32 %v435, 0.2
      %v544 = vmul.f32 %v440, 0.2
      %v545 = vmul.f32 %v443, 0.2
      %v546 = vmul.f32 %v448, 0.2
      %v547 = vmul.f32 %v451, 0.2
      %v548 = vmul.f32 %v456, 0.2
      %v549 = vmul.f32 %v459, 0.2
      %v550 = vmul.f32 %v464, 0.2
      %v551 = vmul.f32 %v467, 0.2
      %v552 = vmul.f32 %v472, 0.2
      %v553 = vmul.f32 %v475, 0.2
      %v554 = vmul.f32 %v480, 0.2
      %v555 = vmul.f32 %v483, 0.2
      %v556 = vmul.f32 %v488, 0.2
      %v557 = vmul.f32 %v491, 0.2
      %v558 = vsel %vm494, %v368, %v526
      %v559 = vsel %vm495, %v371, %v527
      %v560 = vsel %vm496, %v376, %v528
      %v561 = vsel %vm497, %v379, %v529
      %v562 = vsel %vm498, %v384, %v530
      %v563 = vsel %vm499, %v387, %v531
      %v564 = vsel %vm500, %v392, %v532
      %v565 = vsel %vm501, %v395, %v533
      %v566 = vsel %vm502, %v400, %v534
      %v567 = vsel %vm503, %v403, %v535
      %v568 = vsel %vm504, %v408, %v536
      %v569 = vsel %vm505, %v411, %v537
      %v570 = vsel %vm506, %v416, %v538
      %v571 = vsel %vm507, %v419, %v539
      %v572 = vsel %vm508, %v424, %v540
      %v573 = vsel %vm509, %v427, %v541
      %v574 = vsel %vm510, %v432, %v542
      %v575 = vsel %vm511, %v435, %v543
      %v576 = vsel %vm512, %v440, %v544
      %v577 = vsel %vm513, %v443, %v545
      %v578 = vsel %vm514, %v448, %v546
      %v579 = vsel %vm515, %v451, %v547
      %v580 = vsel %vm516, %v456, %v548
      %v581 = vsel %vm517, %v459, %v549
      %v582 = vsel %vm518, %v464, %v550
      %v583 = vsel %vm519, %v467, %v551
      %v584 = vsel %vm520, %v472, %v552
      %v585 = vsel %vm521, %v475, %v553
      %v586 = vsel %vm522, %v480, %v554
      %v587 = vsel %vm523, %v483, %v555
      %v588 = vsel %vm524, %v488, %v556
      %v589 = vsel %vm525, %v491, %v557
      %v590 = vpack.c.bf16 %v559, %v558
      %v591 = vpack.c.bf16 %v561, %v560
      %v592 = vpack.c.bf16 %v563, %v562
      %v593 = vpack.c.bf16 %v565, %v564
      %v594 = vpack.c.bf16 %v567, %v566
      %v595 = vpack.c.bf16 %v569, %v568
      %v596 = vpack.c.bf16 %v571, %v570
      %v597 = vpack.c.bf16 %v573, %v572
      %v598 = vpack.c.bf16 %v575, %v574
      %v599 = vpack.c.bf16 %v577, %v576
      %v600 = vpack.c.bf16 %v579, %v578
      %v601 = vpack.c.bf16 %v581, %v580
      %v602 = vpack.c.bf16 %v583, %v582
      %v603 = vpack.c.bf16 %v585, %v584
      %v604 = vpack.c.bf16 %v587, %v586
      %v605 = vpack.c.bf16 %v589, %v588
      %v622 = vunpack.c.l.b16 %v590
      %v623 = vunpack.c.h.b16 %v590
      %v624 = vunpack.c.l.b16 %v591
      %v625 = vunpack.c.h.b16 %v591
      %v626 = vunpack.c.l.b16 %v592
      %v627 = vunpack.c.h.b16 %v592
      %v628 = vunpack.c.l.b16 %v593
      %v629 = vunpack.c.h.b16 %v593
      %v630 = vunpack.c.l.b16 %v594
      %v631 = vunpack.c.h.b16 %v594
      %v632 = vunpack.c.l.b16 %v595
      %v633 = vunpack.c.h.b16 %v595
      %v634 = vunpack.c.l.b16 %v596
      %v635 = vunpack.c.h.b16 %v596
      %v636 = vunpack.c.l.b16 %v597
      %v637 = vunpack.c.h.b16 %v597
      %v638 = vunpack.c.l.b16 %v598
      %v639 = vunpack.c.h.b16 %v598
      %v640 = vunpack.c.l.b16 %v599
      %v641 = vunpack.c.h.b16 %v599
      %v642 = vunpack.c.l.b16 %v600
      %v643 = vunpack.c.h.b16 %v600
      %v644 = vunpack.c.l.b16 %v601
      %v645 = vunpack.c.h.b16 %v601
      %v646 = vunpack.c.l.b16 %v602
      %v647 = vunpack.c.h.b16 %v602
      %v648 = vunpack.c.l.b16 %v603
      %v649 = vunpack.c.h.b16 %v603
      %v650 = vunpack.c.l.b16 %v604
      %v651 = vunpack.c.h.b16 %v604
      %v652 = vunpack.c.l.b16 %v605
      %v653 = vunpack.c.h.b16 %v605
      %v654 = vpack.c.b16 %v622, %v622
      %v655 = vpack.c.b16 %v623, %v623
      %v656 = vpack.c.b16 %v624, %v624
      %v657 = vpack.c.b16 %v625, %v625
      %v658 = vpack.c.b16 %v626, %v626
      %v659 = vpack.c.b16 %v627, %v627
      %v660 = vpack.c.b16 %v628, %v628
      %v661 = vpack.c.b16 %v629, %v629
      %v662 = vpack.c.b16 %v630, %v630
      %v663 = vpack.c.b16 %v631, %v631
      %v664 = vpack.c.b16 %v632, %v632
      %v665 = vpack.c.b16 %v633, %v633
      %v666 = vpack.c.b16 %v634, %v634
      %v667 = vpack.c.b16 %v635, %v635
      %v668 = vpack.c.b16 %v636, %v636
      %v669 = vpack.c.b16 %v637, %v637
      %v670 = vpack.c.b16 %v638, %v638
      %v671 = vpack.c.b16 %v639, %v639
      %v672 = vpack.c.b16 %v640, %v640
      %v673 = vpack.c.b16 %v641, %v641
      %v674 = vpack.c.b16 %v642, %v642
      %v675 = vpack.c.b16 %v643, %v643
      %v676 = vpack.c.b16 %v644, %v644
      %v677 = vpack.c.b16 %v645, %v645
      %v678 = vpack.c.b16 %v646, %v646
      %v679 = vpack.c.b16 %v647, %v647
      %v680 = vpack.c.b16 %v648, %v648
      %v681 = vpack.c.b16 %v649, %v649
      %v682 = vpack.c.b16 %v650, %v650
      %v683 = vpack.c.b16 %v651, %v651
      %v684 = vpack.c.b16 %v652, %v652
      %v685 = vpack.c.b16 %v653, %v653
      %vm718 = vcmask 60416
      %719 = vst.msk [vmem:[%s145] sm:$0xf] %vm718, %v654
      %720 = vst.msk [vmem:[%s145 + $0x4] sm:$0xf] %vm718, %v655
      %721 = vst.msk [vmem:[%s145 + $0x8] sm:$0xf] %vm718, %v656
      %722 = vst.msk [vmem:[%s145 + $0xc] sm:$0xf] %vm718, %v657
      %723 = vst.msk [vmem:[%s145 + $0x10] sm:$0xf] %vm718, %v658
      %724 = vst.msk [vmem:[%s145 + $0x14] sm:$0xf] %vm718, %v659
      %725 = vst.msk [vmem:[%s145 + $0x18] sm:$0xf] %vm718, %v660
      %726 = vst.msk [vmem:[%s145 + $0x1c] sm:$0xf] %vm718, %v661
      %727 = vst.msk [vmem:[%s145 + $0x20] sm:$0xf] %vm718, %v662
      %728 = vst.msk [vmem:[%s145 + $0x24] sm:$0xf] %vm718, %v663
      %729 = vst.msk [vmem:[%s145 + $0x28] sm:$0xf] %vm718, %v664
      %730 = vst.msk [vmem:[%s145 + $0x2c] sm:$0xf] %vm718, %v665
      %731 = vst.msk [vmem:[%s145 + $0x30] sm:$0xf] %vm718, %v666
      %732 = vst.msk [vmem:[%s145 + $0x34] sm:$0xf] %vm718, %v667
      %733 = vst.msk [vmem:[%s145 + $0x38] sm:$0xf] %vm718, %v668
      %734 = vst.msk [vmem:[%s145 + $0x3c] sm:$0xf] %vm718, %v669
      %735 = vst.msk [vmem:[%s145 + $0x40] sm:$0xf] %vm718, %v670
      %736 = vst.msk [vmem:[%s145 + $0x44] sm:$0xf] %vm718, %v671
      %737 = vst.msk [vmem:[%s145 + $0x48] sm:$0xf] %vm718, %v672
      %738 = vst.msk [vmem:[%s145 + $0x4c] sm:$0xf] %vm718, %v673
      %739 = vst.msk [vmem:[%s145 + $0x50] sm:$0xf] %vm718, %v674
      %740 = vst.msk [vmem:[%s145 + $0x54] sm:$0xf] %vm718, %v675
      %741 = vst.msk [vmem:[%s145 + $0x58] sm:$0xf] %vm718, %v676
      %742 = vst.msk [vmem:[%s145 + $0x5c] sm:$0xf] %vm718, %v677
      %743 = vst.msk [vmem:[%s145 + $0x60] sm:$0xf] %vm718, %v678
      %744 = vst.msk [vmem:[%s145 + $0x64] sm:$0xf] %vm718, %v679
      %745 = vst.msk [vmem:[%s145 + $0x68] sm:$0xf] %vm718, %v680
      %746 = vst.msk [vmem:[%s145 + $0x6c] sm:$0xf] %vm718, %v681
      %747 = vst.msk [vmem:[%s145 + $0x70] sm:$0xf] %vm718, %v682
      %748 = vst.msk [vmem:[%s145 + $0x74] sm:$0xf] %vm718, %v683
      %749 = vst.msk [vmem:[%s145 + $0x78] sm:$0xf] %vm718, %v684
      %750 = vst.msk [vmem:[%s145 + $0x7c] sm:$0xf] %vm718, %v685
      %s751 = smul.u32 32, %s13
      %p752 = scmp.lt.s32.totalorder %s751, 255
      %s753 = scalar_select %p752, %s751, 255
      %s754 = smul.addr %s753, 4
      %s755 = scalar_lea.vmem %s2, %s754
      // Predicated region
      $region29: #{data_discriminator_forward.6} parent=27 // pred_check
        %p756 = pneg %p78
      $region30: #{data_discriminator_forward.6} parent=27 // pred_check_branch
        %758 = sbr.rel (%p756) target = $region32
      $region31: #{data_discriminator_forward.6} parent=27 // pred_region
        %s759 = smul.u32 32, %s13
      $region32: #{data_discriminator_forward.6} parent=27 // pred_fallthru
        _
    $region28: #{data_discriminator_forward.6} parent=5 // pred_fallthru
      _
    %p760 = scmp.le.s32.totalorder 2, %s8
    // Predicated region
    $region33: #{data_discriminator_forward.6} parent=5 // pred_check
      %p761 = pneg %p760
    $region34: #{data_discriminator_forward.6} parent=5 // pred_check_branch
      %763 = sbr.rel (%p761) target = $region36
    $region35: #{data_discriminator_forward.6} parent=5 // pred_region
      %s764 = ssub.s32 %s8, 2
      // Predicated region
      $region37: #{data_discriminator_forward.6} parent=35 // pred_check
        %p765 = pneg %p84
      $region38: #{data_discriminator_forward.6} parent=35 // pred_check_branch
        %767 = sbr.rel (%p765) target = $region40
      $region39: #{data_discriminator_forward.6} parent=35 // pred_region
        %s768 = smul.u32 32, %s14
        %p769 = scmp.lt.s32.totalorder %s768, 255
        %s770 = scalar_select %p769, %s768, 255
        %s771 = smul.addr %s770, 4
        %s772 = scalar_lea.vmem %s2, %s771
      $region40: #{data_discriminator_forward.6} parent=35 // pred_fallthru
        _
    $region36: #{data_discriminator_forward.6} parent=5 // pred_fallthru
      _
  $region6: #{data_discriminator_forward.6} parent=0 // loop_footer
    %s12 = sadd.s32 1, %s8
  $region7: #{data_discriminator_forward.6} parent=0 // loop_footer_branch
    %7 = sbr.rel target = $region3
  $region8: #{data_discriminator_forward.6} parent=0 // loop_exit
    _

// kernel: data_discriminator_forward.7
$region0: #{data_discriminator_forward.7}
  #allocation0 [shape = 'u32[]', space=smem, size = 0x4, offset = 0x4, fixed_abs, tag = 'smem constant byte address 0x4 - core index']
  #allocation1 [shape = 'u32[144,128]{1,0:T(1,128)}', space=vmem, size = 0x12000, scoped, tag = 'internal scratch']
  %s0 = inlined_call_operand.vmem [shape: bf16[512,128], index: 0, kind: input, shape index: {}]
  %s1 = inlined_call_operand.vmem [shape: bf16[128,16], index: 1, kind: input, shape index: {}]
  %s2 = inlined_call_operand.vmem [shape: bf16[512,16], index: 2, kind: output, shape index: {}]
  %s3 = sld [smem:[#allocation0]]
  $region41: #{data_discriminator_forward.7} parent=0
    _
  %s5 = ssub.s32 1, %s3
  %s6 = scalar_select 0, %s5, %s3
  loop: start=0, step=1, limit=4
  $region2: #{data_discriminator_forward.7} parent=0 // loop_pre_header
    _
  $region3: #{data_discriminator_forward.7} parent=0 // loop_header
    %s8 = sphi 0, %s12
    %p9 = scmp.ge.s32.totalorder %s8, 4
    %s18 = sphi 0, %s20
    %s21 = sphi 0, %s18
    %s22 = sphi 0, %s21
    %s38 = sphi 0, %s22
    %s42 = sphi 0, %s42
    %s44 = sphi 0, %s42
    %s45 = sphi 0, %s44
    %s59 = sphi 0, %s45
    %s65 = sphi 0, %s67
    %s68 = sphi 0, %s65
    %s69 = sphi 0, %s68
    %s85 = sphi 0, %s69
  $region4: #{data_discriminator_forward.7} parent=0 // loop_header_branch
    %11 = sbr.rel (%p9) target = $region8
  $region5: #{data_discriminator_forward.7} parent=0 // loop_body
    %s13 = ssub.s32 %s8, 1
    %s14 = ssub.s32 %s8, 2
    %s15 = sadd.s32 %s8, 1
    %s16 = ssub.s32 %s8, %s15
    %p17 = scmp.eq.s32.totalorder %s16, 0
    %s19 = sadd.s32 %s18, 1
    %s20 = scalar_select %p17, %s18, %s19
    %p23 = pneg %p17
    %p24 = scmp.eq.s32.totalorder %s8, 1
    %p25 = por %p23, %p24
    %p26 = scmp.ne.s32.totalorder %s18, %s21
    %p27 = scmp.eq.s32.totalorder %s8, 0
    %p28 = por %p26, %p27
    %p29 = scmp.ne.s32.totalorder %s18, %s21
    %p30 = scmp.eq.s32.totalorder %s13, 1
    %p31 = por %p29, %p30
    %p32 = scmp.ne.s32.totalorder %s21, %s22
    %p33 = scmp.eq.s32.totalorder %s13, 0
    %p34 = por %p32, %p33
    %p35 = scmp.ne.s32.totalorder %s21, %s22
    %p36 = scmp.eq.s32.totalorder %s14, 1
    %p37 = por %p35, %p36
    %p39 = scmp.ne.s32.totalorder %s22, %s38
    %p40 = scmp.eq.s32.totalorder %s14, 0
    %p41 = por %p39, %p40
    %s43 = sadd.s32 %s42, 1
    %p46 = scmp.eq.s32.totalorder %s8, 1
    %p47 = scmp.ne.s32.totalorder %s42, %s44
    %p48 = scmp.eq.s32.totalorder %s8, 0
    %p49 = por %p47, %p48
    %p50 = scmp.ne.s32.totalorder %s42, %s44
    %p51 = scmp.eq.s32.totalorder %s13, 1
    %p52 = por %p50, %p51
    %p53 = scmp.ne.s32.totalorder %s44, %s45
    %p54 = scmp.eq.s32.totalorder %s13, 0
    %p55 = por %p53, %p54
    %p56 = scmp.ne.s32.totalorder %s44, %s45
    %p57 = scmp.eq.s32.totalorder %s14, 1
    %p58 = por %p56, %p57
    %p60 = scmp.ne.s32.totalorder %s45, %s59
    %p61 = scmp.eq.s32.totalorder %s14, 0
    %p62 = por %p60, %p61
    %s63 = ssub.s32 %s8, %s15
    %p64 = scmp.eq.s32.totalorder %s63, 0
    %s66 = sadd.s32 %s65, 1
    %s67 = scalar_select %p64, %s65, %s66
    %p70 = pneg %p64
    %p71 = scmp.eq.s32.totalorder %s8, 1
    %p72 = por %p70, %p71
    %p73 = scmp.ne.s32.totalorder %s65, %s68
    %p74 = scmp.eq.s32.totalorder %s8, 0
    %p75 = por %p73, %p74
    %p76 = scmp.ne.s32.totalorder %s65, %s68
    %p77 = scmp.eq.s32.totalorder %s13, 1
    %p78 = por %p76, %p77
    %p79 = scmp.ne.s32.totalorder %s68, %s69
    %p80 = scmp.eq.s32.totalorder %s13, 0
    %p81 = por %p79, %p80
    %p82 = scmp.ne.s32.totalorder %s68, %s69
    %p83 = scmp.eq.s32.totalorder %s14, 1
    %p84 = por %p82, %p83
    %p86 = scmp.ne.s32.totalorder %s69, %s85
    %p87 = scmp.eq.s32.totalorder %s14, 0
    %p88 = por %p86, %p87
    %p89 = scmp.le.s32.totalorder 1, %s8
    %p90 = scmp.lt.s32.totalorder %s8, 3
    %p91 = pnand %p89, %p90
    %p92 = pneg %p91
    // Predicated region
    $region9: #{data_discriminator_forward.7} parent=5 // pred_check
      _
    $region10: #{data_discriminator_forward.7} parent=5 // pred_check_branch
      %94 = sbr.rel (%p91) target = $region12
    $region11: #{data_discriminator_forward.7} parent=5 // pred_region
      %s95 = ssub.s32 %s8, 1
      // Predicated region
      $region13: #{data_discriminator_forward.7} parent=11 // pred_check
        %p96 = pneg %p55
      $region14: #{data_discriminator_forward.7} parent=11 // pred_check_branch
        %98 = sbr.rel (%p96) target = $region16
      $region15: #{data_discriminator_forward.7} parent=11 // pred_region
        _
      $region16: #{data_discriminator_forward.7} parent=11 // pred_fallthru
        _
    $region12: #{data_discriminator_forward.7} parent=5 // pred_fallthru
      _
    %p99 = scmp.lt.s32.totalorder %s8, 2
    // Predicated region
    $region17: #{data_discriminator_forward.7} parent=5 // pred_check
      %p100 = pneg %p99
    $region18: #{data_discriminator_forward.7} parent=5 // pred_check_branch
      %102 = sbr.rel (%p100) target = $region20
    $region19: #{data_discriminator_forward.7} parent=5 // pred_region
      // Predicated region
      $region21: #{data_discriminator_forward.7} parent=19 // pred_check
        %p103 = pneg %p28
      $region22: #{data_discriminator_forward.7} parent=19 // pred_check_branch
        %105 = sbr.rel (%p103) target = $region24
      $region23: #{data_discriminator_forward.7} parent=19 // pred_region
        %s106 = smul.u32 32, %s8
        %p107 = scmp.lt.s32.totalorder %s106, 63
        %s108 = scalar_select %p107, %s106, 63
        %s109 = smul.addr %s108, 4
        %s110 = scalar_lea.vmem %s0, %s109
        %s111 = smul.u32 32, %s8
      $region24: #{data_discriminator_forward.7} parent=19 // pred_fallthru
        _
    $region20: #{data_discriminator_forward.7} parent=5 // pred_fallthru
      _
    %p112 = scmp.le.s32.totalorder 1, %s8
    %p113 = scmp.lt.s32.totalorder %s8, 3
    %p114 = pnand %p112, %p113
    %p115 = pneg %p114
    // Predicated region
    $region25: #{data_discriminator_forward.7} parent=5 // pred_check
      _
    $region26: #{data_discriminator_forward.7} parent=5 // pred_check_branch
      %117 = sbr.rel (%p114) target = $region28
    $region27: #{data_discriminator_forward.7} parent=5 // pred_region
      %s118 = ssub.s32 %s8, 1
      %s119 = smul.u32 32, %s13
      %p120 = scmp.lt.s32.totalorder %s119, 63
      %s121 = scalar_select %p120, %s119, 63
      %s122 = smul.addr %s121, 4
      %s123 = scalar_lea.vmem %s0, %s122
      %p124 = pneg %p34
      %p125 = pneg %p31
      %p126 = pneg %p55
      %p127 = pneg %p52
      %p128 = pneg %p81
      %p129 = pneg %p78
      %s130 = smul.u32 32, %s13
      %p131 = scmp.lt.s32.totalorder %s130, 63
      %s132 = scalar_select %p131, %s130, 63
      %s133 = smul.addr %s132, 4
      %s134 = scalar_lea.vmem %s2, %s133
      %s135 = smul.u32 32, %s13
      %p136 = scmp.lt.s32.totalorder %s135, 63
      %s137 = scalar_select %p136, %s135, 63
      %s138 = smul.addr %s137, 4
      %s139 = scalar_lea.vmem %s0, %s138
      %s140 = smul.u32 32, %s13
      %s141 = smul.u32 32, %s13
      %p142 = scmp.lt.s32.totalorder %s141, 63
      %s143 = scalar_select %p142, %s141, 63
      %s144 = smul.addr %s143, 4
      %s145 = scalar_lea.vmem %s2, %s144
      %s146 = smul.u32 32, %s13
      %v148 = vld [vmem:[%s139] sm:$0xf]
      %v149 = vld [vmem:[%s139 + $0x4] sm:$0xf]
      %v150 = vld [vmem:[%s139 + $0x8] sm:$0xf]
      %v151 = vld [vmem:[%s139 + $0xc] sm:$0xf]
      %v152 = vld [vmem:[%s139 + $0x10] sm:$0xf]
      %v153 = vld [vmem:[%s139 + $0x14] sm:$0xf]
      %v154 = vld [vmem:[%s139 + $0x18] sm:$0xf]
      %v155 = vld [vmem:[%s139 + $0x1c] sm:$0xf]
      %v156 = vld [vmem:[%s139 + $0x20] sm:$0xf]
      %v157 = vld [vmem:[%s139 + $0x24] sm:$0xf]
      %v158 = vld [vmem:[%s139 + $0x28] sm:$0xf]
      %v159 = vld [vmem:[%s139 + $0x2c] sm:$0xf]
      %v160 = vld [vmem:[%s139 + $0x30] sm:$0xf]
      %v161 = vld [vmem:[%s139 + $0x34] sm:$0xf]
      %v162 = vld [vmem:[%s139 + $0x38] sm:$0xf]
      %v163 = vld [vmem:[%s139 + $0x3c] sm:$0xf]
      %v164 = vld [vmem:[%s139 + $0x40] sm:$0xf]
      %v165 = vld [vmem:[%s139 + $0x44] sm:$0xf]
      %v166 = vld [vmem:[%s139 + $0x48] sm:$0xf]
      %v167 = vld [vmem:[%s139 + $0x4c] sm:$0xf]
      %v168 = vld [vmem:[%s139 + $0x50] sm:$0xf]
      %v169 = vld [vmem:[%s139 + $0x54] sm:$0xf]
      %v170 = vld [vmem:[%s139 + $0x58] sm:$0xf]
      %v171 = vld [vmem:[%s139 + $0x5c] sm:$0xf]
      %v172 = vld [vmem:[%s139 + $0x60] sm:$0xf]
      %v173 = vld [vmem:[%s139 + $0x64] sm:$0xf]
      %v174 = vld [vmem:[%s139 + $0x68] sm:$0xf]
      %v175 = vld [vmem:[%s139 + $0x6c] sm:$0xf]
      %v176 = vld [vmem:[%s139 + $0x70] sm:$0xf]
      %v177 = vld [vmem:[%s139 + $0x74] sm:$0xf]
      %v178 = vld [vmem:[%s139 + $0x78] sm:$0xf]
      %v179 = vld [vmem:[%s139 + $0x7c] sm:$0xf]
      %v180 = vld [vmem:[%s1] sm:$0xf]
      %v181 = vld [vmem:[%s1 + $0x4] sm:$0xf]
      %v182 = vld [vmem:[%s1 + $0x8] sm:$0xf]
      %v183 = vld [vmem:[%s1 + $0xc] sm:$0xf]
      %v184 = vld [vmem:[%s1 + $0x10] sm:$0xf]
      %v185 = vld [vmem:[%s1 + $0x14] sm:$0xf]
      %v186 = vld [vmem:[%s1 + $0x18] sm:$0xf]
      %v187 = vld [vmem:[%s1 + $0x1c] sm:$0xf]
      %v188 = vld [vmem:[%s1 + $0x20] sm:$0xf]
      %v189 = vld [vmem:[%s1 + $0x24] sm:$0xf]
      %v190 = vld [vmem:[%s1 + $0x28] sm:$0xf]
      %v191 = vld [vmem:[%s1 + $0x2c] sm:$0xf]
      %v192 = vld [vmem:[%s1 + $0x30] sm:$0xf]
      %v193 = vld [vmem:[%s1 + $0x34] sm:$0xf]
      %v194 = vld [vmem:[%s1 + $0x38] sm:$0xf]
      %v195 = vld [vmem:[%s1 + $0x3c] sm:$0xf]
      %v228 = vunpack.c.l.b16 %v148
      %v229 = vunpack.c.l.b16 %v149
      %v230 = vunpack.c.l.b16 %v150
      %v231 = vunpack.c.l.b16 %v151
      %v232 = vunpack.c.l.b16 %v152
      %v233 = vunpack.c.l.b16 %v153
      %v234 = vunpack.c.l.b16 %v154
      %v235 = vunpack.c.l.b16 %v155
      %v236 = vunpack.c.l.b16 %v156
      %v237 = vunpack.c.l.b16 %v157
      %v238 = vunpack.c.l.b16 %v158
      %v239 = vunpack.c.l.b16 %v159
      %v240 = vunpack.c.l.b16 %v160
      %v241 = vunpack.c.l.b16 %v161
      %v242 = vunpack.c.l.b16 %v162
      %v243 = vunpack.c.l.b16 %v163
      %v244 = vunpack.c.l.b16 %v164
      %v245 = vunpack.c.l.b16 %v165
      %v246 = vunpack.c.l.b16 %v166
      %v247 = vunpack.c.l.b16 %v167
      %v248 = vunpack.c.l.b16 %v168
      %v249 = vunpack.c.l.b16 %v169
      %v250 = vunpack.c.l.b16 %v170
      %v251 = vunpack.c.l.b16 %v171
      %v252 = vunpack.c.l.b16 %v172
      %v253 = vunpack.c.l.b16 %v173
      %v254 = vunpack.c.l.b16 %v174
      %v255 = vunpack.c.l.b16 %v175
      %v256 = vunpack.c.l.b16 %v176
      %v257 = vunpack.c.l.b16 %v177
      %v258 = vunpack.c.l.b16 %v178
      %v259 = vunpack.c.l.b16 %v179
      %v260 = vpack.c.b16 %v229, %v228
      %v261 = vpack.c.b16 %v231, %v230
      %v262 = vpack.c.b16 %v233, %v232
      %v263 = vpack.c.b16 %v235, %v234
      %v264 = vpack.c.b16 %v237, %v236
      %v265 = vpack.c.b16 %v239, %v238
      %v266 = vpack.c.b16 %v241, %v240
      %v267 = vpack.c.b16 %v243, %v242
      %v268 = vpack.c.b16 %v245, %v244
      %v269 = vpack.c.b16 %v247, %v246
      %v270 = vpack.c.b16 %v249, %v248
      %v271 = vpack.c.b16 %v251, %v250
      %v272 = vpack.c.b16 %v253, %v252
      %v273 = vpack.c.b16 %v255, %v254
      %v274 = vpack.c.b16 %v257, %v256
      %v275 = vpack.c.b16 %v259, %v258
      %v308 = vunpack.c.l.b16 %v180
      %v309 = vunpack.c.l.b16 %v181
      %v310 = vunpack.c.l.b16 %v182
      %v311 = vunpack.c.l.b16 %v183
      %v312 = vunpack.c.l.b16 %v184
      %v313 = vunpack.c.l.b16 %v185
      %v314 = vunpack.c.l.b16 %v186
      %v315 = vunpack.c.l.b16 %v187
      %v316 = vunpack.c.l.b16 %v188
      %v317 = vunpack.c.l.b16 %v189
      %v318 = vunpack.c.l.b16 %v190
      %v319 = vunpack.c.l.b16 %v191
      %v320 = vunpack.c.l.b16 %v192
      %v321 = vunpack.c.l.b16 %v193
      %v322 = vunpack.c.l.b16 %v194
      %v323 = vunpack.c.l.b16 %v195
      %v324 = vpack.c.b16 %v309, %v308
      %v325 = vpack.c.b16 %v311, %v310
      %v326 = vpack.c.b16 %v313, %v312
      %v327 = vpack.c.b16 %v315, %v314
      %v328 = vpack.c.b16 %v317, %v316
      %v329 = vpack.c.b16 %v319, %v318
      %v330 = vpack.c.b16 %v321, %v320
      %v331 = vpack.c.b16 %v323, %v322
      %340 = vmatprep.subr.bf16.mxu0 0
      %341 = vmatpush1.bf16.msra.mxu0 %v331
      %342 = vmatprep.subr.bf16.mxu0 0
      %343 = vmatpush1.bf16.msra.mxu0 %v330
      %344 = vmatprep.subr.bf16.mxu0 0
      %345 = vmatpush1.bf16.msra.mxu0 %v329
      %346 = vmatprep.subr.bf16.mxu0 0
      %347 = vmatpush1.bf16.msra.mxu0 %v328
      %348 = vmatprep.subr.bf16.mxu0 0
      %349 = vmatpush1.bf16.msra.mxu0 %v327
      %350 = vmatprep.subr.bf16.mxu0 0
      %351 = vmatpush1.bf16.msra.mxu0 %v326
      %352 = vmatprep.subr.bf16.mxu0 0
      %353 = vmatpush1.bf16.msra.mxu0 %v325
      %354 = vmatprep.subr.bf16.mxu0 0
      %355 = vmatpush1.bf16.msra.mxu0 %v324
      %356 = vmatprep.subr.bf16.mxu0 0
      %357 = vmatpush2.bf16.msra.mxu0 0
      %358 = vmatprep.subr.bf16.mxu0 0
      %359 = vmatpush2.bf16.msra.mxu0 0
      %360 = vmatprep.subr.bf16.mxu0 0
      %361 = vmatpush2.bf16.msra.mxu0 0
      %362 = vmatprep.subr.bf16.mxu0 0
      %363 = vmatpush2.bf16.msra.mxu0 0
      %364 = vmatprep.subr.bf16.mxu0 0
      %365 = vmatpush2.bf16.msra.mxu0 0
      %366 = vmatprep.subr.bf16.mxu0 0
      %367 = vmatpush2.bf16.msra.mxu0 0
      %368 = vmatprep.subr.bf16.mxu0 0
      %369 = vmatpush2.bf16.msra.mxu0 0
      %370 = vmatprep.subr.bf16.mxu0 0
      %371 = vmatpush2.bf16.msra.mxu0 0
      %372 = vmatprep.mubr.bf16.mxu0 0
      %373 = vmatmul.mubr.bf16.gmra.mxu0 %v260
      %v374 = vpop.f32.mrf.mxu0
      %v375 = vadd.f32 0.0, %v374
      %v376 = vpop.f32.mrf.mxu0
      %v377 = vpop.f32.mrf.mxu0
      %v378 = vadd.f32 0.0, %v377
      %v379 = vpop.f32.mrf.mxu0
      %380 = vmatprep.mubr.bf16.mxu0 0
      %381 = vmatmul.mubr.bf16.gmra.mxu0 %v261
      %v382 = vpop.f32.mrf.mxu0
      %v383 = vadd.f32 0.0, %v382
      %v384 = vpop.f32.mrf.mxu0
      %v385 = vpop.f32.mrf.mxu0
      %v386 = vadd.f32 0.0, %v385
      %v387 = vpop.f32.mrf.mxu0
      %388 = vmatprep.mubr.bf16.mxu0 0
      %389 = vmatmul.mubr.bf16.gmra.mxu0 %v262
      %v390 = vpop.f32.mrf.mxu0
      %v391 = vadd.f32 0.0, %v390
      %v392 = vpop.f32.mrf.mxu0
      %v393 = vpop.f32.mrf.mxu0
      %v394 = vadd.f32 0.0, %v393
      %v395 = vpop.f32.mrf.mxu0
      %396 = vmatprep.mubr.bf16.mxu0 0
      %397 = vmatmul.mubr.bf16.gmra.mxu0 %v263
      %v398 = vpop.f32.mrf.mxu0
      %v399 = vadd.f32 0.0, %v398
      %v400 = vpop.f32.mrf.mxu0
      %v401 = vpop.f32.mrf.mxu0
      %v402 = vadd.f32 0.0, %v401
      %v403 = vpop.f32.mrf.mxu0
      %404 = vmatprep.mubr.bf16.mxu0 0
      %405 = vmatmul.mubr.bf16.gmra.mxu0 %v264
      %v406 = vpop.f32.mrf.mxu0
      %v407 = vadd.f32 0.0, %v406
      %v408 = vpop.f32.mrf.mxu0
      %v409 = vpop.f32.mrf.mxu0
      %v410 = vadd.f32 0.0, %v409
      %v411 = vpop.f32.mrf.mxu0
      %412 = vmatprep.mubr.bf16.mxu0 0
      %413 = vmatmul.mubr.bf16.gmra.mxu0 %v265
      %v414 = vpop.f32.mrf.mxu0
      %v415 = vadd.f32 0.0, %v414
      %v416 = vpop.f32.mrf.mxu0
      %v417 = vpop.f32.mrf.mxu0
      %v418 = vadd.f32 0.0, %v417
      %v419 = vpop.f32.mrf.mxu0
      %420 = vmatprep.mubr.bf16.mxu0 0
      %421 = vmatmul.mubr.bf16.gmra.mxu0 %v266
      %v422 = vpop.f32.mrf.mxu0
      %v423 = vadd.f32 0.0, %v422
      %v424 = vpop.f32.mrf.mxu0
      %v425 = vpop.f32.mrf.mxu0
      %v426 = vadd.f32 0.0, %v425
      %v427 = vpop.f32.mrf.mxu0
      %428 = vmatprep.mubr.bf16.mxu0 0
      %429 = vmatmul.mubr.bf16.gmra.mxu0 %v267
      %v430 = vpop.f32.mrf.mxu0
      %v431 = vadd.f32 0.0, %v430
      %v432 = vpop.f32.mrf.mxu0
      %v433 = vpop.f32.mrf.mxu0
      %v434 = vadd.f32 0.0, %v433
      %v435 = vpop.f32.mrf.mxu0
      %436 = vmatprep.mubr.bf16.mxu0 0
      %437 = vmatmul.mubr.bf16.gmra.mxu0 %v268
      %v438 = vpop.f32.mrf.mxu0
      %v439 = vadd.f32 0.0, %v438
      %v440 = vpop.f32.mrf.mxu0
      %v441 = vpop.f32.mrf.mxu0
      %v442 = vadd.f32 0.0, %v441
      %v443 = vpop.f32.mrf.mxu0
      %444 = vmatprep.mubr.bf16.mxu0 0
      %445 = vmatmul.mubr.bf16.gmra.mxu0 %v269
      %v446 = vpop.f32.mrf.mxu0
      %v447 = vadd.f32 0.0, %v446
      %v448 = vpop.f32.mrf.mxu0
      %v449 = vpop.f32.mrf.mxu0
      %v450 = vadd.f32 0.0, %v449
      %v451 = vpop.f32.mrf.mxu0
      %452 = vmatprep.mubr.bf16.mxu0 0
      %453 = vmatmul.mubr.bf16.gmra.mxu0 %v270
      %v454 = vpop.f32.mrf.mxu0
      %v455 = vadd.f32 0.0, %v454
      %v456 = vpop.f32.mrf.mxu0
      %v457 = vpop.f32.mrf.mxu0
      %v458 = vadd.f32 0.0, %v457
      %v459 = vpop.f32.mrf.mxu0
      %460 = vmatprep.mubr.bf16.mxu0 0
      %461 = vmatmul.mubr.bf16.gmra.mxu0 %v271
      %v462 = vpop.f32.mrf.mxu0
      %v463 = vadd.f32 0.0, %v462
      %v464 = vpop.f32.mrf.mxu0
      %v465 = vpop.f32.mrf.mxu0
      %v466 = vadd.f32 0.0, %v465
      %v467 = vpop.f32.mrf.mxu0
      %468 = vmatprep.mubr.bf16.mxu0 0
      %469 = vmatmul.mubr.bf16.gmra.mxu0 %v272
      %v470 = vpop.f32.mrf.mxu0
      %v471 = vadd.f32 0.0, %v470
      %v472 = vpop.f32.mrf.mxu0
      %v473 = vpop.f32.mrf.mxu0
      %v474 = vadd.f32 0.0, %v473
      %v475 = vpop.f32.mrf.mxu0
      %476 = vmatprep.mubr.bf16.mxu0 0
      %477 = vmatmul.mubr.bf16.gmra.mxu0 %v273
      %v478 = vpop.f32.mrf.mxu0
      %v479 = vadd.f32 0.0, %v478
      %v480 = vpop.f32.mrf.mxu0
      %v481 = vpop.f32.mrf.mxu0
      %v482 = vadd.f32 0.0, %v481
      %v483 = vpop.f32.mrf.mxu0
      %484 = vmatprep.mubr.bf16.mxu0 0
      %485 = vmatmul.mubr.bf16.gmra.mxu0 %v274
      %v486 = vpop.f32.mrf.mxu0
      %v487 = vadd.f32 0.0, %v486
      %v488 = vpop.f32.mrf.mxu0
      %v489 = vpop.f32.mrf.mxu0
      %v490 = vadd.f32 0.0, %v489
      %v491 = vpop.f32.mrf.mxu0
      %492 = vmatprep.mubr.bf16.mxu0 0
      %493 = vmatmul.mubr.bf16.gmra.mxu0 %v275
      %v494 = vpop.f32.mrf.mxu0
      %v495 = vadd.f32 0.0, %v494
      %v496 = vpop.f32.mrf.mxu0
      %v497 = vpop.f32.mrf.mxu0
      %v498 = vadd.f32 0.0, %v497
      %v499 = vpop.f32.mrf.mxu0
      %500 = vdwg.mxu0
      %vm501 = vcmp.gt.f32.partialorder %v375, 0.0
      %vm502 = vcmp.gt.f32.partialorder %v378, 0.0
      %vm503 = vcmp.gt.f32.partialorder %v383, 0.0
      %vm504 = vcmp.gt.f32.partialorder %v386, 0.0
      %vm505 = vcmp.gt.f32.partialorder %v391, 0.0
      %vm506 = vcmp.gt.f32.partialorder %v394, 0.0
      %vm507 = vcmp.gt.f32.partialorder %v399, 0.0
      %vm508 = vcmp.gt.f32.partialorder %v402, 0.0
      %vm509 = vcmp.gt.f32.partialorder %v407, 0.0
      %vm510 = vcmp.gt.f32.partialorder %v410, 0.0
      %vm511 = vcmp.gt.f32.partialorder %v415, 0.0
      %vm512 = vcmp.gt.f32.partialorder %v418, 0.0
      %vm513 = vcmp.gt.f32.partialorder %v423, 0.0
      %vm514 = vcmp.gt.f32.partialorder %v426, 0.0
      %vm515 = vcmp.gt.f32.partialorder %v431, 0.0
      %vm516 = vcmp.gt.f32.partialorder %v434, 0.0
      %vm517 = vcmp.gt.f32.partialorder %v439, 0.0
      %vm518 = vcmp.gt.f32.partialorder %v442, 0.0
      %vm519 = vcmp.gt.f32.partialorder %v447, 0.0
      %vm520 = vcmp.gt.f32.partialorder %v450, 0.0
      %vm521 = vcmp.gt.f32.partialorder %v455, 0.0
      %vm522 = vcmp.gt.f32.partialorder %v458, 0.0
      %vm523 = vcmp.gt.f32.partialorder %v463, 0.0
      %vm524 = vcmp.gt.f32.partialorder %v466, 0.0
      %vm525 = vcmp.gt.f32.partialorder %v471, 0.0
      %vm526 = vcmp.gt.f32.partialorder %v474, 0.0
      %vm527 = vcmp.gt.f32.partialorder %v479, 0.0
      %vm528 = vcmp.gt.f32.partialorder %v482, 0.0
      %vm529 = vcmp.gt.f32.partialorder %v487, 0.0
      %vm530 = vcmp.gt.f32.partialorder %v490, 0.0
      %vm531 = vcmp.gt.f32.partialorder %v495, 0.0
      %vm532 = vcmp.gt.f32.partialorder %v498, 0.0
      %v533 = vmul.f32 %v375, 0.2
      %v534 = vmul.f32 %v378, 0.2
      %v535 = vmul.f32 %v383, 0.2
      %v536 = vmul.f32 %v386, 0.2
      %v537 = vmul.f32 %v391, 0.2
      %v538 = vmul.f32 %v394, 0.2
      %v539 = vmul.f32 %v399, 0.2
      %v540 = vmul.f32 %v402, 0.2
      %v541 = vmul.f32 %v407, 0.2
      %v542 = vmul.f32 %v410, 0.2
      %v543 = vmul.f32 %v415, 0.2
      %v544 = vmul.f32 %v418, 0.2
      %v545 = vmul.f32 %v423, 0.2
      %v546 = vmul.f32 %v426, 0.2
      %v547 = vmul.f32 %v431, 0.2
      %v548 = vmul.f32 %v434, 0.2
      %v549 = vmul.f32 %v439, 0.2
      %v550 = vmul.f32 %v442, 0.2
      %v551 = vmul.f32 %v447, 0.2
      %v552 = vmul.f32 %v450, 0.2
      %v553 = vmul.f32 %v455, 0.2
      %v554 = vmul.f32 %v458, 0.2
      %v555 = vmul.f32 %v463, 0.2
      %v556 = vmul.f32 %v466, 0.2
      %v557 = vmul.f32 %v471, 0.2
      %v558 = vmul.f32 %v474, 0.2
      %v559 = vmul.f32 %v479, 0.2
      %v560 = vmul.f32 %v482, 0.2
      %v561 = vmul.f32 %v487, 0.2
      %v562 = vmul.f32 %v490, 0.2
      %v563 = vmul.f32 %v495, 0.2
      %v564 = vmul.f32 %v498, 0.2
      %v565 = vsel %vm501, %v375, %v533
      %v566 = vsel %vm502, %v378, %v534
      %v567 = vsel %vm503, %v383, %v535
      %v568 = vsel %vm504, %v386, %v536
      %v569 = vsel %vm505, %v391, %v537
      %v570 = vsel %vm506, %v394, %v538
      %v571 = vsel %vm507, %v399, %v539
      %v572 = vsel %vm508, %v402, %v540
      %v573 = vsel %vm509, %v407, %v541
      %v574 = vsel %vm510, %v410, %v542
      %v575 = vsel %vm511, %v415, %v543
      %v576 = vsel %vm512, %v418, %v544
      %v577 = vsel %vm513, %v423, %v545
      %v578 = vsel %vm514, %v426, %v546
      %v579 = vsel %vm515, %v431, %v547
      %v580 = vsel %vm516, %v434, %v548
      %v581 = vsel %vm517, %v439, %v549
      %v582 = vsel %vm518, %v442, %v550
      %v583 = vsel %vm519, %v447, %v551
      %v584 = vsel %vm520, %v450, %v552
      %v585 = vsel %vm521, %v455, %v553
      %v586 = vsel %vm522, %v458, %v554
      %v587 = vsel %vm523, %v463, %v555
      %v588 = vsel %vm524, %v466, %v556
      %v589 = vsel %vm525, %v471, %v557
      %v590 = vsel %vm526, %v474, %v558
      %v591 = vsel %vm527, %v479, %v559
      %v592 = vsel %vm528, %v482, %v560
      %v593 = vsel %vm529, %v487, %v561
      %v594 = vsel %vm530, %v490, %v562
      %v595 = vsel %vm531, %v495, %v563
      %v596 = vsel %vm532, %v498, %v564
      %v597 = vpack.c.bf16 %v566, %v565
      %v598 = vpack.c.bf16 %v568, %v567
      %v599 = vpack.c.bf16 %v570, %v569
      %v600 = vpack.c.bf16 %v572, %v571
      %v601 = vpack.c.bf16 %v574, %v573
      %v602 = vpack.c.bf16 %v576, %v575
      %v603 = vpack.c.bf16 %v578, %v577
      %v604 = vpack.c.bf16 %v580, %v579
      %v605 = vpack.c.bf16 %v582, %v581
      %v606 = vpack.c.bf16 %v584, %v583
      %v607 = vpack.c.bf16 %v586, %v585
      %v608 = vpack.c.bf16 %v588, %v587
      %v609 = vpack.c.bf16 %v590, %v589
      %v610 = vpack.c.bf16 %v592, %v591
      %v611 = vpack.c.bf16 %v594, %v593
      %v612 = vpack.c.bf16 %v596, %v595
      %v629 = vunpack.c.l.b16 %v597
      %v630 = vunpack.c.h.b16 %v597
      %v631 = vunpack.c.l.b16 %v598
      %v632 = vunpack.c.h.b16 %v598
      %v633 = vunpack.c.l.b16 %v599
      %v634 = vunpack.c.h.b16 %v599
      %v635 = vunpack.c.l.b16 %v600
      %v636 = vunpack.c.h.b16 %v600
      %v637 = vunpack.c.l.b16 %v601
      %v638 = vunpack.c.h.b16 %v601
      %v639 = vunpack.c.l.b16 %v602
      %v640 = vunpack.c.h.b16 %v602
      %v641 = vunpack.c.l.b16 %v603
      %v642 = vunpack.c.h.b16 %v603
      %v643 = vunpack.c.l.b16 %v604
      %v644 = vunpack.c.h.b16 %v604
      %v645 = vunpack.c.l.b16 %v605
      %v646 = vunpack.c.h.b16 %v605
      %v647 = vunpack.c.l.b16 %v606
      %v648 = vunpack.c.h.b16 %v606
      %v649 = vunpack.c.l.b16 %v607
      %v650 = vunpack.c.h.b16 %v607
      %v651 = vunpack.c.l.b16 %v608
      %v652 = vunpack.c.h.b16 %v608
      %v653 = vunpack.c.l.b16 %v609
      %v654 = vunpack.c.h.b16 %v609
      %v655 = vunpack.c.l.b16 %v610
      %v656 = vunpack.c.h.b16 %v610
      %v657 = vunpack.c.l.b16 %v611
      %v658 = vunpack.c.h.b16 %v611
      %v659 = vunpack.c.l.b16 %v612
      %v660 = vunpack.c.h.b16 %v612
      %v661 = vpack.c.b16 %v629, %v629
      %v662 = vpack.c.b16 %v630, %v630
      %v663 = vpack.c.b16 %v631, %v631
      %v664 = vpack.c.b16 %v632, %v632
      %v665 = vpack.c.b16 %v633, %v633
      %v666 = vpack.c.b16 %v634, %v634
      %v667 = vpack.c.b16 %v635, %v635
      %v668 = vpack.c.b16 %v636, %v636
      %v669 = vpack.c.b16 %v637, %v637
      %v670 = vpack.c.b16 %v638, %v638
      %v671 = vpack.c.b16 %v639, %v639
      %v672 = vpack.c.b16 %v640, %v640
      %v673 = vpack.c.b16 %v641, %v641
      %v674 = vpack.c.b16 %v642, %v642
      %v675 = vpack.c.b16 %v643, %v643
      %v676 = vpack.c.b16 %v644, %v644
      %v677 = vpack.c.b16 %v645, %v645
      %v678 = vpack.c.b16 %v646, %v646
      %v679 = vpack.c.b16 %v647, %v647
      %v680 = vpack.c.b16 %v648, %v648
      %v681 = vpack.c.b16 %v649, %v649
      %v682 = vpack.c.b16 %v650, %v650
      %v683 = vpack.c.b16 %v651, %v651
      %v684 = vpack.c.b16 %v652, %v652
      %v685 = vpack.c.b16 %v653, %v653
      %v686 = vpack.c.b16 %v654, %v654
      %v687 = vpack.c.b16 %v655, %v655
      %v688 = vpack.c.b16 %v656, %v656
      %v689 = vpack.c.b16 %v657, %v657
      %v690 = vpack.c.b16 %v658, %v658
      %v691 = vpack.c.b16 %v659, %v659
      %v692 = vpack.c.b16 %v660, %v660
      %vm725 = vcmask 125952
      %726 = vst.msk [vmem:[%s145] sm:$0xf] %vm725, %v661
      %727 = vst.msk [vmem:[%s145 + $0x4] sm:$0xf] %vm725, %v662
      %728 = vst.msk [vmem:[%s145 + $0x8] sm:$0xf] %vm725, %v663
      %729 = vst.msk [vmem:[%s145 + $0xc] sm:$0xf] %vm725, %v664
      %730 = vst.msk [vmem:[%s145 + $0x10] sm:$0xf] %vm725, %v665
      %731 = vst.msk [vmem:[%s145 + $0x14] sm:$0xf] %vm725, %v666
      %732 = vst.msk [vmem:[%s145 + $0x18] sm:$0xf] %vm725, %v667
      %733 = vst.msk [vmem:[%s145 + $0x1c] sm:$0xf] %vm725, %v668
      %734 = vst.msk [vmem:[%s145 + $0x20] sm:$0xf] %vm725, %v669
      %735 = vst.msk [vmem:[%s145 + $0x24] sm:$0xf] %vm725, %v670
      %736 = vst.msk [vmem:[%s145 + $0x28] sm:$0xf] %vm725, %v671
      %737 = vst.msk [vmem:[%s145 + $0x2c] sm:$0xf] %vm725, %v672
      %738 = vst.msk [vmem:[%s145 + $0x30] sm:$0xf] %vm725, %v673
      %739 = vst.msk [vmem:[%s145 + $0x34] sm:$0xf] %vm725, %v674
      %740 = vst.msk [vmem:[%s145 + $0x38] sm:$0xf] %vm725, %v675
      %741 = vst.msk [vmem:[%s145 + $0x3c] sm:$0xf] %vm725, %v676
      %742 = vst.msk [vmem:[%s145 + $0x40] sm:$0xf] %vm725, %v677
      %743 = vst.msk [vmem:[%s145 + $0x44] sm:$0xf] %vm725, %v678
      %744 = vst.msk [vmem:[%s145 + $0x48] sm:$0xf] %vm725, %v679
      %745 = vst.msk [vmem:[%s145 + $0x4c] sm:$0xf] %vm725, %v680
      %746 = vst.msk [vmem:[%s145 + $0x50] sm:$0xf] %vm725, %v681
      %747 = vst.msk [vmem:[%s145 + $0x54] sm:$0xf] %vm725, %v682
      %748 = vst.msk [vmem:[%s145 + $0x58] sm:$0xf] %vm725, %v683
      %749 = vst.msk [vmem:[%s145 + $0x5c] sm:$0xf] %vm725, %v684
      %750 = vst.msk [vmem:[%s145 + $0x60] sm:$0xf] %vm725, %v685
      %751 = vst.msk [vmem:[%s145 + $0x64] sm:$0xf] %vm725, %v686
      %752 = vst.msk [vmem:[%s145 + $0x68] sm:$0xf] %vm725, %v687
      %753 = vst.msk [vmem:[%s145 + $0x6c] sm:$0xf] %vm725, %v688
      %754 = vst.msk [vmem:[%s145 + $0x70] sm:$0xf] %vm725, %v689
      %755 = vst.msk [vmem:[%s145 + $0x74] sm:$0xf] %vm725, %v690
      %756 = vst.msk [vmem:[%s145 + $0x78] sm:$0xf] %vm725, %v691
      %757 = vst.msk [vmem:[%s145 + $0x7c] sm:$0xf] %vm725, %v692
      %s758 = smul.u32 32, %s13
      %p759 = scmp.lt.s32.totalorder %s758, 63
      %s760 = scalar_select %p759, %s758, 63
      %s761 = smul.addr %s760, 4
      %s762 = scalar_lea.vmem %s2, %s761
      // Predicated region
      $region29: #{data_discriminator_forward.7} parent=27 // pred_check
        %p763 = pneg %p78
      $region30: #{data_discriminator_forward.7} parent=27 // pred_check_branch
        %765 = sbr.rel (%p763) target = $region32
      $region31: #{data_discriminator_forward.7} parent=27 // pred_region
        %s766 = smul.u32 32, %s13
      $region32: #{data_discriminator_forward.7} parent=27 // pred_fallthru
        _
    $region28: #{data_discriminator_forward.7} parent=5 // pred_fallthru
      _
    %p767 = scmp.le.s32.totalorder 2, %s8
    // Predicated region
    $region33: #{data_discriminator_forward.7} parent=5 // pred_check
      %p768 = pneg %p767
    $region34: #{data_discriminator_forward.7} parent=5 // pred_check_branch
      %770 = sbr.rel (%p768) target = $region36
    $region35: #{data_discriminator_forward.7} parent=5 // pred_region
      %s771 = ssub.s32 %s8, 2
      // Predicated region
      $region37: #{data_discriminator_forward.7} parent=35 // pred_check
        %p772 = pneg %p84
      $region38: #{data_discriminator_forward.7} parent=35 // pred_check_branch
        %774 = sbr.rel (%p772) target = $region40
      $region39: #{data_discriminator_forward.7} parent=35 // pred_region
        %s775 = smul.u32 32, %s14
        %p776 = scmp.lt.s32.totalorder %s775, 63
        %s777 = scalar_select %p776, %s775, 63
        %s778 = smul.addr %s777, 4
        %s779 = scalar_lea.vmem %s2, %s778
      $region40: #{data_discriminator_forward.7} parent=35 // pred_fallthru
        _
    $region36: #{data_discriminator_forward.7} parent=5 // pred_fallthru
      _
  $region6: #{data_discriminator_forward.7} parent=0 // loop_footer
    %s12 = sadd.s32 1, %s8
  $region7: #{data_discriminator_forward.7} parent=0 // loop_footer_branch
    %7 = sbr.rel target = $region3
  $region8: #{data_discriminator_forward.7} parent=0 // loop_exit
    _

// kernel: data_discriminator_forward.8
$region0: #{data_discriminator_forward.8}
  #allocation0 [shape = 'u32[]', space=smem, size = 0x4, offset = 0x4, fixed_abs, tag = 'smem constant byte address 0x4 - core index']
  #allocation1 [shape = 'u32[144,128]{1,0:T(1,128)}', space=vmem, size = 0x12000, scoped, tag = 'internal scratch']
  %s0 = inlined_call_operand.vmem [shape: bf16[128,256], index: 0, kind: input, shape index: {}]
  %s1 = inlined_call_operand.vmem [shape: bf16[256,32], index: 1, kind: input, shape index: {}]
  %s2 = inlined_call_operand.vmem [shape: f32[1,32], index: 2, kind: input, shape index: {}]
  %s3 = inlined_call_operand.vmem [shape: f32[1,32], index: 3, kind: input, shape index: {}]
  %s4 = inlined_call_operand.vmem [shape: bf16[128,32], index: 4, kind: output, shape index: {}]
  %s5 = sld [smem:[#allocation0]]
  $region26: #{data_discriminator_forward.8} parent=0
    _
  %s7 = ssub.s32 1, %s5
  %s8 = scalar_select 0, %s7, %s5
  // Predicated region
  $region2: #{data_discriminator_forward.8} parent=0 // pred_check
    _
  $region3: #{data_discriminator_forward.8} parent=0 // pred_check_branch
    %10 = sbr.rel (0) target = $region5
  $region4: #{data_discriminator_forward.8} parent=0 // pred_region
    _
  $region5: #{data_discriminator_forward.8} parent=0 // pred_fallthru
    _
  // Predicated region
  $region6: #{data_discriminator_forward.8} parent=0 // pred_check
    _
  $region7: #{data_discriminator_forward.8} parent=0 // pred_check_branch
    %12 = sbr.rel (0) target = $region9
  $region8: #{data_discriminator_forward.8} parent=0 // pred_region
    _
  $region9: #{data_discriminator_forward.8} parent=0 // pred_fallthru
    _
  // Predicated region
  $region10: #{data_discriminator_forward.8} parent=0 // pred_check
    _
  $region11: #{data_discriminator_forward.8} parent=0 // pred_check_branch
    %14 = sbr.rel (0) target = $region13
  $region12: #{data_discriminator_forward.8} parent=0 // pred_region
    _
  $region13: #{data_discriminator_forward.8} parent=0 // pred_fallthru
    _
  // Predicated region
  $region14: #{data_discriminator_forward.8} parent=0 // pred_check
    _
  $region15: #{data_discriminator_forward.8} parent=0 // pred_check_branch
    %16 = sbr.rel (0) target = $region17
  $region16: #{data_discriminator_forward.8} parent=0 // pred_region
    _
  $region17: #{data_discriminator_forward.8} parent=0 // pred_fallthru
    _
  %v18 = vld [vmem:[%s0] sm:$0xff]
  %v19 = vld [vmem:[%s0 + $0x8] sm:$0xff]
  %v20 = vld [vmem:[%s0 + $0x10] sm:$0xff]
  %v21 = vld [vmem:[%s0 + $0x18] sm:$0xff]
  %v22 = vld [vmem:[%s0 + $0x20] sm:$0xff]
  %v23 = vld [vmem:[%s0 + $0x28] sm:$0xff]
  %v24 = vld [vmem:[%s0 + $0x30] sm:$0xff]
  %v25 = vld [vmem:[%s0 + $0x38] sm:$0xff]
  %v26 = vld [vmem:[%s0 + $0x40] sm:$0xff]
  %v27 = vld [vmem:[%s0 + $0x48] sm:$0xff]
  %v28 = vld [vmem:[%s0 + $0x50] sm:$0xff]
  %v29 = vld [vmem:[%s0 + $0x58] sm:$0xff]
  %v30 = vld [vmem:[%s0 + $0x60] sm:$0xff]
  %v31 = vld [vmem:[%s0 + $0x68] sm:$0xff]
  %v32 = vld [vmem:[%s0 + $0x70] sm:$0xff]
  %v33 = vld [vmem:[%s0 + $0x78] sm:$0xff]
  %v34 = vld [vmem:[%s1] sm:$0xf]
  %v35 = vld [vmem:[%s1 + $0x4] sm:$0xf]
  %v36 = vld [vmem:[%s1 + $0x8] sm:$0xf]
  %v37 = vld [vmem:[%s1 + $0xc] sm:$0xf]
  %v38 = vld [vmem:[%s1 + $0x10] sm:$0xf]
  %v39 = vld [vmem:[%s1 + $0x14] sm:$0xf]
  %v40 = vld [vmem:[%s1 + $0x18] sm:$0xf]
  %v41 = vld [vmem:[%s1 + $0x1c] sm:$0xf]
  %v42 = vld [vmem:[%s1 + $0x20] sm:$0xf]
  %v43 = vld [vmem:[%s1 + $0x24] sm:$0xf]
  %v44 = vld [vmem:[%s1 + $0x28] sm:$0xf]
  %v45 = vld [vmem:[%s1 + $0x2c] sm:$0xf]
  %v46 = vld [vmem:[%s1 + $0x30] sm:$0xf]
  %v47 = vld [vmem:[%s1 + $0x34] sm:$0xf]
  %v48 = vld [vmem:[%s1 + $0x38] sm:$0xf]
  %v49 = vld [vmem:[%s1 + $0x3c] sm:$0xf]
  %v50 = vld [vmem:[%s1 + $0x40] sm:$0xf]
  %v51 = vld [vmem:[%s1 + $0x44] sm:$0xf]
  %v52 = vld [vmem:[%s1 + $0x48] sm:$0xf]
  %v53 = vld [vmem:[%s1 + $0x4c] sm:$0xf]
  %v54 = vld [vmem:[%s1 + $0x50] sm:$0xf]
  %v55 = vld [vmem:[%s1 + $0x54] sm:$0xf]
  %v56 = vld [vmem:[%s1 + $0x58] sm:$0xf]
  %v57 = vld [vmem:[%s1 + $0x5c] sm:$0xf]
  %v58 = vld [vmem:[%s1 + $0x60] sm:$0xf]
  %v59 = vld [vmem:[%s1 + $0x64] sm:$0xf]
  %v60 = vld [vmem:[%s1 + $0x68] sm:$0xf]
  %v61 = vld [vmem:[%s1 + $0x6c] sm:$0xf]
  %v62 = vld [vmem:[%s1 + $0x70] sm:$0xf]
  %v63 = vld [vmem:[%s1 + $0x74] sm:$0xf]
  %v64 = vld [vmem:[%s1 + $0x78] sm:$0xf]
  %v65 = vld [vmem:[%s1 + $0x7c] sm:$0xf]
  %v82 = vunpack.c.l.b16 %v18
  %v83 = vunpack.c.h.b16 %v18
  %v84 = vunpack.c.l.b16 %v19
  %v85 = vunpack.c.h.b16 %v19
  %v86 = vunpack.c.l.b16 %v20
  %v87 = vunpack.c.h.b16 %v20
  %v88 = vunpack.c.l.b16 %v21
  %v89 = vunpack.c.h.b16 %v21
  %v90 = vunpack.c.l.b16 %v22
  %v91 = vunpack.c.h.b16 %v22
  %v92 = vunpack.c.l.b16 %v23
  %v93 = vunpack.c.h.b16 %v23
  %v94 = vunpack.c.l.b16 %v24
  %v95 = vunpack.c.h.b16 %v24
  %v96 = vunpack.c.l.b16 %v25
  %v97 = vunpack.c.h.b16 %v25
  %v98 = vunpack.c.l.b16 %v26
  %v99 = vunpack.c.h.b16 %v26
  %v100 = vunpack.c.l.b16 %v27
  %v101 = vunpack.c.h.b16 %v27
  %v102 = vunpack.c.l.b16 %v28
  %v103 = vunpack.c.h.b16 %v28
  %v104 = vunpack.c.l.b16 %v29
  %v105 = vunpack.c.h.b16 %v29
  %v106 = vunpack.c.l.b16 %v30
  %v107 = vunpack.c.h.b16 %v30
  %v108 = vunpack.c.l.b16 %v31
  %v109 = vunpack.c.h.b16 %v31
  %v110 = vunpack.c.l.b16 %v32
  %v111 = vunpack.c.h.b16 %v32
  %v112 = vunpack.c.l.b16 %v33
  %v113 = vunpack.c.h.b16 %v33
  %v114 = vpack.c.b16 %v84, %v82
  %v115 = vpack.c.b16 %v85, %v83
  %v116 = vpack.c.b16 %v88, %v86
  %v117 = vpack.c.b16 %v89, %v87
  %v118 = vpack.c.b16 %v92, %v90
  %v119 = vpack.c.b16 %v93, %v91
  %v120 = vpack.c.b16 %v96, %v94
  %v121 = vpack.c.b16 %v97, %v95
  %v122 = vpack.c.b16 %v100, %v98
  %v123 = vpack.c.b16 %v101, %v99
  %v124 = vpack.c.b16 %v104, %v102
  %v125 = vpack.c.b16 %v105, %v103
  %v126 = vpack.c.b16 %v108, %v106
  %v127 = vpack.c.b16 %v109, %v107
  %v128 = vpack.c.b16 %v112, %v110
  %v129 = vpack.c.b16 %v113, %v111
  %v178 = vunpack.c.l.b16 %v34
  %v179 = vunpack.c.l.b16 %v35
  %v180 = vunpack.c.l.b16 %v36
  %v181 = vunpack.c.l.b16 %v37
  %v182 = vunpack.c.l.b16 %v38
  %v183 = vunpack.c.l.b16 %v39
  %v184 = vunpack.c.l.b16 %v40
  %v185 = vunpack.c.l.b16 %v41
  %v186 = vunpack.c.l.b16 %v42
  %v187 = vunpack.c.l.b16 %v43
  %v188 = vunpack.c.l.b16 %v44
  %v189 = vunpack.c.l.b16 %v45
  %v190 = vunpack.c.l.b16 %v46
  %v191 = vunpack.c.l.b16 %v47
  %v192 = vunpack.c.l.b16 %v48
  %v193 = vunpack.c.l.b16 %v49
  %v194 = vunpack.c.l.b16 %v50
  %v195 = vunpack.c.l.b16 %v51
  %v196 = vunpack.c.l.b16 %v52
  %v197 = vunpack.c.l.b16 %v53
  %v198 = vunpack.c.l.b16 %v54
  %v199 = vunpack.c.l.b16 %v55
  %v200 = vunpack.c.l.b16 %v56
  %v201 = vunpack.c.l.b16 %v57
  %v202 = vunpack.c.l.b16 %v58
  %v203 = vunpack.c.l.b16 %v59
  %v204 = vunpack.c.l.b16 %v60
  %v205 = vunpack.c.l.b16 %v61
  %v206 = vunpack.c.l.b16 %v62
  %v207 = vunpack.c.l.b16 %v63
  %v208 = vunpack.c.l.b16 %v64
  %v209 = vunpack.c.l.b16 %v65
  %v210 = vpack.c.b16 %v179, %v178
  %v211 = vpack.c.b16 %v181, %v180
  %v212 = vpack.c.b16 %v183, %v182
  %v213 = vpack.c.b16 %v185, %v184
  %v214 = vpack.c.b16 %v187, %v186
  %v215 = vpack.c.b16 %v189, %v188
  %v216 = vpack.c.b16 %v191, %v190
  %v217 = vpack.c.b16 %v193, %v192
  %v218 = vpack.c.b16 %v195, %v194
  %v219 = vpack.c.b16 %v197, %v196
  %v220 = vpack.c.b16 %v199, %v198
  %v221 = vpack.c.b16 %v201, %v200
  %v222 = vpack.c.b16 %v203, %v202
  %v223 = vpack.c.b16 %v205, %v204
  %v224 = vpack.c.b16 %v207, %v206
  %v225 = vpack.c.b16 %v209, %v208
  %242 = vmatprep.subr.bf16.mxu0 0
  %243 = vmatpush1.bf16.msra.mxu0 %v217
  %244 = vmatprep.subr.bf16.mxu0 0
  %245 = vmatpush1.bf16.msra.mxu0 %v216
  %246 = vmatprep.subr.bf16.mxu0 0
  %247 = vmatpush1.bf16.msra.mxu0 %v215
  %248 = vmatprep.subr.bf16.mxu0 0
  %249 = vmatpush1.bf16.msra.mxu0 %v214
  %250 = vmatprep.subr.bf16.mxu0 0
  %251 = vmatpush1.bf16.msra.mxu0 %v213
  %252 = vmatprep.subr.bf16.mxu0 0
  %253 = vmatpush1.bf16.msra.mxu0 %v212
  %254 = vmatprep.subr.bf16.mxu0 0
  %255 = vmatpush1.bf16.msra.mxu0 %v211
  %256 = vmatprep.subr.bf16.mxu0 0
  %257 = vmatpush1.bf16.msra.mxu0 %v210
  %258 = vmatprep.subr.bf16.mxu0 0
  %259 = vmatpush2.bf16.msra.mxu0 %v225
  %260 = vmatprep.subr.bf16.mxu0 0
  %261 = vmatpush2.bf16.msra.mxu0 %v224
  %262 = vmatprep.subr.bf16.mxu0 0
  %263 = vmatpush2.bf16.msra.mxu0 %v223
  %264 = vmatprep.subr.bf16.mxu0 0
  %265 = vmatpush2.bf16.msra.mxu0 %v222
  %266 = vmatprep.subr.bf16.mxu0 0
  %267 = vmatpush2.bf16.msra.mxu0 %v221
  %268 = vmatprep.subr.bf16.mxu0 0
  %269 = vmatpush2.bf16.msra.mxu0 %v220
  %270 = vmatprep.subr.bf16.mxu0 0
  %271 = vmatpush2.bf16.msra.mxu0 %v219
  %272 = vmatprep.subr.bf16.mxu0 0
  %273 = vmatpush2.bf16.msra.mxu0 %v218
  %274 = vmatprep.mubr.bf16.mxu0 %v115
  %275 = vmatmul.mubr.bf16.gmra.mxu0 %v114
  %v276 = vpop.f32.mrf.mxu0
  %v277 = vadd.f32 0.0, %v276
  %v278 = vpop.f32.mrf.mxu0
  %v279 = vpop.f32.mrf.mxu0
  %v280 = vadd.f32 0.0, %v279
  %v281 = vpop.f32.mrf.mxu0
  %282 = vmatprep.mubr.bf16.mxu0 %v117
  %283 = vmatmul.mubr.bf16.gmra.mxu0 %v116
  %v284 = vpop.f32.mrf.mxu0
  %v285 = vadd.f32 0.0, %v284
  %v286 = vpop.f32.mrf.mxu0
  %v287 = vpop.f32.mrf.mxu0
  %v288 = vadd.f32 0.0, %v287
  %v289 = vpop.f32.mrf.mxu0
  %290 = vmatprep.mubr.bf16.mxu0 %v119
  %291 = vmatmul.mubr.bf16.gmra.mxu0 %v118
  %v292 = vpop.f32.mrf.mxu0
  %v293 = vadd.f32 0.0, %v292
  %v294 = vpop.f32.mrf.mxu0
  %v295 = vpop.f32.mrf.mxu0
  %v296 = vadd.f32 0.0, %v295
  %v297 = vpop.f32.mrf.mxu0
  %298 = vmatprep.mubr.bf16.mxu0 %v121
  %299 = vmatmul.mubr.bf16.gmra.mxu0 %v120
  %v300 = vpop.f32.mrf.mxu0
  %v301 = vadd.f32 0.0, %v300
  %v302 = vpop.f32.mrf.mxu0
  %v303 = vpop.f32.mrf.mxu0
  %v304 = vadd.f32 0.0, %v303
  %v305 = vpop.f32.mrf.mxu0
  %306 = vmatprep.mubr.bf16.mxu0 %v123
  %307 = vmatmul.mubr.bf16.gmra.mxu0 %v122
  %v308 = vpop.f32.mrf.mxu0
  %v309 = vadd.f32 0.0, %v308
  %v310 = vpop.f32.mrf.mxu0
  %v311 = vpop.f32.mrf.mxu0
  %v312 = vadd.f32 0.0, %v311
  %v313 = vpop.f32.mrf.mxu0
  %314 = vmatprep.mubr.bf16.mxu0 %v125
  %315 = vmatmul.mubr.bf16.gmra.mxu0 %v124
  %v316 = vpop.f32.mrf.mxu0
  %v317 = vadd.f32 0.0, %v316
  %v318 = vpop.f32.mrf.mxu0
  %v319 = vpop.f32.mrf.mxu0
  %v320 = vadd.f32 0.0, %v319
  %v321 = vpop.f32.mrf.mxu0
  %322 = vmatprep.mubr.bf16.mxu0 %v127
  %323 = vmatmul.mubr.bf16.gmra.mxu0 %v126
  %v324 = vpop.f32.mrf.mxu0
  %v325 = vadd.f32 0.0, %v324
  %v326 = vpop.f32.mrf.mxu0
  %v327 = vpop.f32.mrf.mxu0
  %v328 = vadd.f32 0.0, %v327
  %v329 = vpop.f32.mrf.mxu0
  %330 = vmatprep.mubr.bf16.mxu0 %v129
  %331 = vmatmul.mubr.bf16.gmra.mxu0 %v128
  %v332 = vpop.f32.mrf.mxu0
  %v333 = vadd.f32 0.0, %v332
  %v334 = vpop.f32.mrf.mxu0
  %v335 = vpop.f32.mrf.mxu0
  %v336 = vadd.f32 0.0, %v335
  %v337 = vpop.f32.mrf.mxu0
  %338 = vdwg.mxu0
  %vm339 = vcmask 261120
  %v340 = vsel %vm339, %v277, 0.0
  %v341 = vsel %vm339, %v280, 0.0
  %v342 = vadd.f32 %v340, %v341
  %v343 = vsel %vm339, %v285, 0.0
  %v344 = vadd.f32 %v342, %v343
  %v345 = vsel %vm339, %v288, 0.0
  %v346 = vadd.f32 %v344, %v345
  %v347 = vsel %vm339, %v293, 0.0
  %v348 = vadd.f32 %v346, %v347
  %v349 = vsel %vm339, %v296, 0.0
  %v350 = vadd.f32 %v348, %v349
  %v351 = vsel %vm339, %v301, 0.0
  %v352 = vadd.f32 %v350, %v351
  %v353 = vsel %vm339, %v304, 0.0
  %v354 = vadd.f32 %v352, %v353
  %v355 = vsel %vm339, %v309, 0.0
  %v356 = vadd.f32 %v354, %v355
  %v357 = vsel %vm339, %v312, 0.0
  %v358 = vadd.f32 %v356, %v357
  %v359 = vsel %vm339, %v317, 0.0
  %v360 = vadd.f32 %v358, %v359
  %v361 = vsel %vm339, %v320, 0.0
  %v362 = vadd.f32 %v360, %v361
  %v363 = vsel %vm339, %v325, 0.0
  %v364 = vadd.f32 %v362, %v363
  %v365 = vsel %vm339, %v328, 0.0
  %v366 = vadd.f32 %v364, %v365
  %v367 = vsel %vm339, %v333, 0.0
  %v368 = vadd.f32 %v366, %v367
  %v369 = vsel %vm339, %v336, 0.0
  %v370 = vadd.f32 %v368, %v369
  %v371 = vrot.slane %v370, 4
  %v372 = vadd.f32 %v370, %v371
  %v373 = vrot.slane %v372, 2
  %v374 = vadd.f32 %v372, %v373
  %v375 = vrot.slane %v374, 1
  %v376 = vadd.f32 %v374, %v375
  %v377 = vmul.f32 %v376, 0.0078125
  %v378 = vsub.f32 %v277, %v377
  %v379 = vsub.f32 %v280, %v377
  %v380 = vsub.f32 %v285, %v377
  %v381 = vsub.f32 %v288, %v377
  %v382 = vsub.f32 %v293, %v377
  %v383 = vsub.f32 %v296, %v377
  %v384 = vsub.f32 %v301, %v377
  %v385 = vsub.f32 %v304, %v377
  %v386 = vsub.f32 %v309, %v377
  %v387 = vsub.f32 %v312, %v377
  %v388 = vsub.f32 %v317, %v377
  %v389 = vsub.f32 %v320, %v377
  %v390 = vsub.f32 %v325, %v377
  %v391 = vsub.f32 %v328, %v377
  %v392 = vsub.f32 %v333, %v377
  %v393 = vsub.f32 %v336, %v377
  %v394 = vmul.f32 %v378, %v378
  %v395 = vmul.f32 %v379, %v379
  %v396 = vmul.f32 %v380, %v380
  %v397 = vmul.f32 %v381, %v381
  %v398 = vmul.f32 %v382, %v382
  %v399 = vmul.f32 %v383, %v383
  %v400 = vmul.f32 %v384, %v384
  %v401 = vmul.f32 %v385, %v385
  %v402 = vmul.f32 %v386, %v386
  %v403 = vmul.f32 %v387, %v387
  %v404 = vmul.f32 %v388, %v388
  %v405 = vmul.f32 %v389, %v389
  %v406 = vmul.f32 %v390, %v390
  %v407 = vmul.f32 %v391, %v391
  %v408 = vmul.f32 %v392, %v392
  %v409 = vmul.f32 %v393, %v393
  %v410 = vsel %vm339, %v394, 0.0
  %v411 = vsel %vm339, %v395, 0.0
  %v412 = vadd.f32 %v410, %v411
  %v413 = vsel %vm339, %v396, 0.0
  %v414 = vadd.f32 %v412, %v413
  %v415 = vsel %vm339, %v397, 0.0
  %v416 = vadd.f32 %v414, %v415
  %v417 = vsel %vm339, %v398, 0.0
  %v418 = vadd.f32 %v416, %v417
  %v419 = vsel %vm339, %v399, 0.0
  %v420 = vadd.f32 %v418, %v419
  %v421 = vsel %vm339, %v400, 0.0
  %v422 = vadd.f32 %v420, %v421
  %v423 = vsel %vm339, %v401, 0.0
  %v424 = vadd.f32 %v422, %v423
  %v425 = vsel %vm339, %v402, 0.0
  %v426 = vadd.f32 %v424, %v425
  %v427 = vsel %vm339, %v403, 0.0
  %v428 = vadd.f32 %v426, %v427
  %v429 = vsel %vm339, %v404, 0.0
  %v430 = vadd.f32 %v428, %v429
  %v431 = vsel %vm339, %v405, 0.0
  %v432 = vadd.f32 %v430, %v431
  %v433 = vsel %vm339, %v406, 0.0
  %v434 = vadd.f32 %v432, %v433
  %v435 = vsel %vm339, %v407, 0.0
  %v436 = vadd.f32 %v434, %v435
  %v437 = vsel %vm339, %v408, 0.0
  %v438 = vadd.f32 %v436, %v437
  %v439 = vsel %vm339, %v409, 0.0
  %v440 = vadd.f32 %v438, %v439
  %v441 = vrot.slane %v440, 4
  %v442 = vadd.f32 %v440, %v441
  %v443 = vrot.slane %v442, 2
  %v444 = vadd.f32 %v442, %v443
  %v445 = vrot.slane %v444, 1
  %v446 = vadd.f32 %v444, %v445
  %v447 = vmul.f32 %v446, 0.0078125
  %v448 = vld [vmem:[%s2] sm:$0x1]
  %v449 = vadd.f32 %v447, 1e-05
  %v450 = vrsqrt.pop %v449
  %v451 = vmul.f32 %v448, %v450
  %v453 = vlaneseq
  %v454 = vshrl.u32 %v453, 7
  %v455 = vsub.s32 0, %v454
  %v456 = vrot.slane %v451, %v455
  %v458 = vmul.f32 %v378, %v456
  %v459 = vmul.f32 %v379, %v456
  %v460 = vmul.f32 %v380, %v456
  %v461 = vmul.f32 %v381, %v456
  %v462 = vmul.f32 %v382, %v456
  %v463 = vmul.f32 %v383, %v456
  %v464 = vmul.f32 %v384, %v456
  %v465 = vmul.f32 %v385, %v456
  %v466 = vmul.f32 %v386, %v456
  %v467 = vmul.f32 %v387, %v456
  %v468 = vmul.f32 %v388, %v456
  %v469 = vmul.f32 %v389, %v456
  %v470 = vmul.f32 %v390, %v456
  %v471 = vmul.f32 %v391, %v456
  %v472 = vmul.f32 %v392, %v456
  %v473 = vmul.f32 %v393, %v456
  %v474 = vld [vmem:[%s3] sm:$0x1]
  %v476 = vlaneseq
  %v477 = vshrl.u32 %v476, 7
  %v478 = vsub.s32 0, %v477
  %v479 = vrot.slane %v474, %v478
  %v481 = vadd.f32 %v458, %v479
  %v482 = vadd.f32 %v459, %v479
  %v483 = vadd.f32 %v460, %v479
  %v484 = vadd.f32 %v461, %v479
  %v485 = vadd.f32 %v462, %v479
  %v486 = vadd.f32 %v463, %v479
  %v487 = vadd.f32 %v464, %v479
  %v488 = vadd.f32 %v465, %v479
  %v489 = vadd.f32 %v466, %v479
  %v490 = vadd.f32 %v467, %v479
  %v491 = vadd.f32 %v468, %v479
  %v492 = vadd.f32 %v469, %v479
  %v493 = vadd.f32 %v470, %v479
  %v494 = vadd.f32 %v471, %v479
  %v495 = vadd.f32 %v472, %v479
  %v496 = vadd.f32 %v473, %v479
  %vm497 = vcmp.gt.f32.partialorder %v481, 0.0
  %vm498 = vcmp.gt.f32.partialorder %v482, 0.0
  %vm499 = vcmp.gt.f32.partialorder %v483, 0.0
  %vm500 = vcmp.gt.f32.partialorder %v484, 0.0
  %vm501 = vcmp.gt.f32.partialorder %v485, 0.0
  %vm502 = vcmp.gt.f32.partialorder %v486, 0.0
  %vm503 = vcmp.gt.f32.partialorder %v487, 0.0
  %vm504 = vcmp.gt.f32.partialorder %v488, 0.0
  %vm505 = vcmp.gt.f32.partialorder %v489, 0.0
  %vm506 = vcmp.gt.f32.partialorder %v490, 0.0
  %vm507 = vcmp.gt.f32.partialorder %v491, 0.0
  %vm508 = vcmp.gt.f32.partialorder %v492, 0.0
  %vm509 = vcmp.gt.f32.partialorder %v493, 0.0
  %vm510 = vcmp.gt.f32.partialorder %v494, 0.0
  %vm511 = vcmp.gt.f32.partialorder %v495, 0.0
  %vm512 = vcmp.gt.f32.partialorder %v496, 0.0
  %v513 = vmul.f32 %v481, 0.2
  %v514 = vmul.f32 %v482, 0.2
  %v515 = vmul.f32 %v483, 0.2
  %v516 = vmul.f32 %v484, 0.2
  %v517 = vmul.f32 %v485, 0.2
  %v518 = vmul.f32 %v486, 0.2
  %v519 = vmul.f32 %v487, 0.2
  %v520 = vmul.f32 %v488, 0.2
  %v521 = vmul.f32 %v489, 0.2
  %v522 = vmul.f32 %v490, 0.2
  %v523 = vmul.f32 %v491, 0.2
  %v524 = vmul.f32 %v492, 0.2
  %v525 = vmul.f32 %v493, 0.2
  %v526 = vmul.f32 %v494, 0.2
  %v527 = vmul.f32 %v495, 0.2
  %v528 = vmul.f32 %v496, 0.2
  %v529 = vsel %vm497, %v481, %v513
  %v530 = vsel %vm498, %v482, %v514
  %v531 = vsel %vm499, %v483, %v515
  %v532 = vsel %vm500, %v484, %v516
  %v533 = vsel %vm501, %v485, %v517
  %v534 = vsel %vm502, %v486, %v518
  %v535 = vsel %vm503, %v487, %v519
  %v536 = vsel %vm504, %v488, %v520
  %v537 = vsel %vm505, %v489, %v521
  %v538 = vsel %vm506, %v490, %v522
  %v539 = vsel %vm507, %v491, %v523
  %v540 = vsel %vm508, %v492, %v524
  %v541 = vsel %vm509, %v493, %v525
  %v542 = vsel %vm510, %v494, %v526
  %v543 = vsel %vm511, %v495, %v527
  %v544 = vsel %vm512, %v496, %v528
  %v545 = vpack.c.bf16 %v530, %v529
  %v546 = vpack.c.bf16 %v532, %v531
  %v547 = vpack.c.bf16 %v534, %v533
  %v548 = vpack.c.bf16 %v536, %v535
  %v549 = vpack.c.bf16 %v538, %v537
  %v550 = vpack.c.bf16 %v540, %v539
  %v551 = vpack.c.bf16 %v542, %v541
  %v552 = vpack.c.bf16 %v544, %v543
  %v561 = vunpack.c.l.b16 %v545
  %v562 = vunpack.c.h.b16 %v545
  %v563 = vunpack.c.l.b16 %v546
  %v564 = vunpack.c.h.b16 %v546
  %v565 = vunpack.c.l.b16 %v547
  %v566 = vunpack.c.h.b16 %v547
  %v567 = vunpack.c.l.b16 %v548
  %v568 = vunpack.c.h.b16 %v548
  %v569 = vunpack.c.l.b16 %v549
  %v570 = vunpack.c.h.b16 %v549
  %v571 = vunpack.c.l.b16 %v550
  %v572 = vunpack.c.h.b16 %v550
  %v573 = vunpack.c.l.b16 %v551
  %v574 = vunpack.c.h.b16 %v551
  %v575 = vunpack.c.l.b16 %v552
  %v576 = vunpack.c.h.b16 %v552
  %v577 = vpack.c.b16 %v561, %v561
  %v578 = vpack.c.b16 %v562, %v562
  %v579 = vpack.c.b16 %v563, %v563
  %v580 = vpack.c.b16 %v564, %v564
  %v581 = vpack.c.b16 %v565, %v565
  %v582 = vpack.c.b16 %v566, %v566
  %v583 = vpack.c.b16 %v567, %v567
  %v584 = vpack.c.b16 %v568, %v568
  %v585 = vpack.c.b16 %v569, %v569
  %v586 = vpack.c.b16 %v570, %v570
  %v587 = vpack.c.b16 %v571, %v571
  %v588 = vpack.c.b16 %v572, %v572
  %v589 = vpack.c.b16 %v573, %v573
  %v590 = vpack.c.b16 %v574, %v574
  %v591 = vpack.c.b16 %v575, %v575
  %v592 = vpack.c.b16 %v576, %v576
  %vm609 = vcmask 257024
  %610 = vst.msk [vmem:[%s4] sm:$0xf] %vm609, %v577
  %611 = vst.msk [vmem:[%s4 + $0x4] sm:$0xf] %vm609, %v578
  %612 = vst.msk [vmem:[%s4 + $0x8] sm:$0xf] %vm609, %v579
  %613 = vst.msk [vmem:[%s4 + $0xc] sm:$0xf] %vm609, %v580
  %614 = vst.msk [vmem:[%s4 + $0x10] sm:$0xf] %vm609, %v581
  %615 = vst.msk [vmem:[%s4 + $0x14] sm:$0xf] %vm609, %v582
  %616 = vst.msk [vmem:[%s4 + $0x18] sm:$0xf] %vm609, %v583
  %617 = vst.msk [vmem:[%s4 + $0x1c] sm:$0xf] %vm609, %v584
  %618 = vst.msk [vmem:[%s4 + $0x20] sm:$0xf] %vm609, %v585
  %619 = vst.msk [vmem:[%s4 + $0x24] sm:$0xf] %vm609, %v586
  %620 = vst.msk [vmem:[%s4 + $0x28] sm:$0xf] %vm609, %v587
  %621 = vst.msk [vmem:[%s4 + $0x2c] sm:$0xf] %vm609, %v588
  %622 = vst.msk [vmem:[%s4 + $0x30] sm:$0xf] %vm609, %v589
  %623 = vst.msk [vmem:[%s4 + $0x34] sm:$0xf] %vm609, %v590
  %624 = vst.msk [vmem:[%s4 + $0x38] sm:$0xf] %vm609, %v591
  %625 = vst.msk [vmem:[%s4 + $0x3c] sm:$0xf] %vm609, %v592
  // Predicated region
  $region18: #{data_discriminator_forward.8} parent=0 // pred_check
    _
  $region19: #{data_discriminator_forward.8} parent=0 // pred_check_branch
    %627 = sbr.rel (0) target = $region21
  $region20: #{data_discriminator_forward.8} parent=0 // pred_region
    _
  $region21: #{data_discriminator_forward.8} parent=0 // pred_fallthru
    _
  // Predicated region
  $region22: #{data_discriminator_forward.8} parent=0 // pred_check
    _
  $region23: #{data_discriminator_forward.8} parent=0 // pred_check_branch
    %629 = sbr.rel (0) target = $region25
  $region24: #{data_discriminator_forward.8} parent=0 // pred_region
    _
  $region25: #{data_discriminator_forward.8} parent=0 // pred_fallthru
    _

// kernel: data_discriminator_forward.9
$region0: #{data_discriminator_forward.9}
  #allocation0 [shape = 'u32[]', space=smem, size = 0x4, offset = 0x4, fixed_abs, tag = 'smem constant byte address 0x4 - core index']
  #allocation1 [shape = 'u32[144,128]{1,0:T(1,128)}', space=vmem, size = 0x12000, scoped, tag = 'internal scratch']
  %s0 = inlined_call_operand.vmem [shape: bf16[32,512], index: 0, kind: input, shape index: {}]
  %s1 = inlined_call_operand.vmem [shape: bf16[512,64], index: 1, kind: input, shape index: {}]
  %s2 = inlined_call_operand.vmem [shape: f32[1,64], index: 2, kind: input, shape index: {}]
  %s3 = inlined_call_operand.vmem [shape: f32[1,64], index: 3, kind: input, shape index: {}]
  %s4 = inlined_call_operand.vmem [shape: bf16[32,64], index: 4, kind: output, shape index: {}]
  %s5 = sld [smem:[#allocation0]]
  $region26: #{data_discriminator_forward.9} parent=0
    _
  %s7 = ssub.s32 1, %s5
  %s8 = scalar_select 0, %s7, %s5
  // Predicated region
  $region2: #{data_discriminator_forward.9} parent=0 // pred_check
    _
  $region3: #{data_discriminator_forward.9} parent=0 // pred_check_branch
    %10 = sbr.rel (0) target = $region5
  $region4: #{data_discriminator_forward.9} parent=0 // pred_region
    _
  $region5: #{data_discriminator_forward.9} parent=0 // pred_fallthru
    _
  // Predicated region
  $region6: #{data_discriminator_forward.9} parent=0 // pred_check
    _
  $region7: #{data_discriminator_forward.9} parent=0 // pred_check_branch
    %12 = sbr.rel (0) target = $region9
  $region8: #{data_discriminator_forward.9} parent=0 // pred_region
    _
  $region9: #{data_discriminator_forward.9} parent=0 // pred_fallthru
    _
  // Predicated region
  $region10: #{data_discriminator_forward.9} parent=0 // pred_check
    _
  $region11: #{data_discriminator_forward.9} parent=0 // pred_check_branch
    %14 = sbr.rel (0) target = $region13
  $region12: #{data_discriminator_forward.9} parent=0 // pred_region
    _
  $region13: #{data_discriminator_forward.9} parent=0 // pred_fallthru
    _
  // Predicated region
  $region14: #{data_discriminator_forward.9} parent=0 // pred_check
    _
  $region15: #{data_discriminator_forward.9} parent=0 // pred_check_branch
    %16 = sbr.rel (0) target = $region17
  $region16: #{data_discriminator_forward.9} parent=0 // pred_region
    _
  $region17: #{data_discriminator_forward.9} parent=0 // pred_fallthru
    _
  %v18 = vld [vmem:[%s0] sm:$0xff]
  %v19 = vld [vmem:[%s0 + $0x8] sm:$0xff]
  %v20 = vld [vmem:[%s0 + $0x10] sm:$0xff]
  %v21 = vld [vmem:[%s0 + $0x18] sm:$0xff]
  %v22 = vld [vmem:[%s0 + $0x20] sm:$0xff]
  %v23 = vld [vmem:[%s0 + $0x28] sm:$0xff]
  %v24 = vld [vmem:[%s0 + $0x30] sm:$0xff]
  %v25 = vld [vmem:[%s0 + $0x38] sm:$0xff]
  %v26 = vld [vmem:[%s1] sm:$0xf]
  %v27 = vld [vmem:[%s1 + $0x4] sm:$0xf]
  %v28 = vld [vmem:[%s1 + $0x8] sm:$0xf]
  %v29 = vld [vmem:[%s1 + $0xc] sm:$0xf]
  %v30 = vld [vmem:[%s1 + $0x10] sm:$0xf]
  %v31 = vld [vmem:[%s1 + $0x14] sm:$0xf]
  %v32 = vld [vmem:[%s1 + $0x18] sm:$0xf]
  %v33 = vld [vmem:[%s1 + $0x1c] sm:$0xf]
  %v34 = vld [vmem:[%s1 + $0x20] sm:$0xf]
  %v35 = vld [vmem:[%s1 + $0x24] sm:$0xf]
  %v36 = vld [vmem:[%s1 + $0x28] sm:$0xf]
  %v37 = vld [vmem:[%s1 + $0x2c] sm:$0xf]
  %v38 = vld [vmem:[%s1 + $0x30] sm:$0xf]
  %v39 = vld [vmem:[%s1 + $0x34] sm:$0xf]
  %v40 = vld [vmem:[%s1 + $0x38] sm:$0xf]
  %v41 = vld [vmem:[%s1 + $0x3c] sm:$0xf]
  %v42 = vld [vmem:[%s1 + $0x40] sm:$0xf]
  %v43 = vld [vmem:[%s1 + $0x44] sm:$0xf]
  %v44 = vld [vmem:[%s1 + $0x48] sm:$0xf]
  %v45 = vld [vmem:[%s1 + $0x4c] sm:$0xf]
  %v46 = vld [vmem:[%s1 + $0x50] sm:$0xf]
  %v47 = vld [vmem:[%s1 + $0x54] sm:$0xf]
  %v48 = vld [vmem:[%s1 + $0x58] sm:$0xf]
  %v49 = vld [vmem:[%s1 + $0x5c] sm:$0xf]
  %v50 = vld [vmem:[%s1 + $0x60] sm:$0xf]
  %v51 = vld [vmem:[%s1 + $0x64] sm:$0xf]
  %v52 = vld [vmem:[%s1 + $0x68] sm:$0xf]
  %v53 = vld [vmem:[%s1 + $0x6c] sm:$0xf]
  %v54 = vld [vmem:[%s1 + $0x70] sm:$0xf]
  %v55 = vld [vmem:[%s1 + $0x74] sm:$0xf]
  %v56 = vld [vmem:[%s1 + $0x78] sm:$0xf]
  %v57 = vld [vmem:[%s1 + $0x7c] sm:$0xf]
  %v58 = vld [vmem:[%s1 + $0x80] sm:$0xf]
  %v59 = vld [vmem:[%s1 + $0x84] sm:$0xf]
  %v60 = vld [vmem:[%s1 + $0x88] sm:$0xf]
  %v61 = vld [vmem:[%s1 + $0x8c] sm:$0xf]
  %v62 = vld [vmem:[%s1 + $0x90] sm:$0xf]
  %v63 = vld [vmem:[%s1 + $0x94] sm:$0xf]
  %v64 = vld [vmem:[%s1 + $0x98] sm:$0xf]
  %v65 = vld [vmem:[%s1 + $0x9c] sm:$0xf]
  %v66 = vld [vmem:[%s1 + $0xa0] sm:$0xf]
  %v67 = vld [vmem:[%s1 + $0xa4] sm:$0xf]
  %v68 = vld [vmem:[%s1 + $0xa8] sm:$0xf]
  %v69 = vld [vmem:[%s1 + $0xac] sm:$0xf]
  %v70 = vld [vmem:[%s1 + $0xb0] sm:$0xf]
  %v71 = vld [vmem:[%s1 + $0xb4] sm:$0xf]
  %v72 = vld [vmem:[%s1 + $0xb8] sm:$0xf]
  %v73 = vld [vmem:[%s1 + $0xbc] sm:$0xf]
  %v74 = vld [vmem:[%s1 + $0xc0] sm:$0xf]
  %v75 = vld [vmem:[%s1 + $0xc4] sm:$0xf]
  %v76 = vld [vmem:[%s1 + $0xc8] sm:$0xf]
  %v77 = vld [vmem:[%s1 + $0xcc] sm:$0xf]
  %v78 = vld [vmem:[%s1 + $0xd0] sm:$0xf]
  %v79 = vld [vmem:[%s1 + $0xd4] sm:$0xf]
  %v80 = vld [vmem:[%s1 + $0xd8] sm:$0xf]
  %v81 = vld [vmem:[%s1 + $0xdc] sm:$0xf]
  %v82 = vld [vmem:[%s1 + $0xe0] sm:$0xf]
  %v83 = vld [vmem:[%s1 + $0xe4] sm:$0xf]
  %v84 = vld [vmem:[%s1 + $0xe8] sm:$0xf]
  %v85 = vld [vmem:[%s1 + $0xec] sm:$0xf]
  %v86 = vld [vmem:[%s1 + $0xf0] sm:$0xf]
  %v87 = vld [vmem:[%s1 + $0xf4] sm:$0xf]
  %v88 = vld [vmem:[%s1 + $0xf8] sm:$0xf]
  %v89 = vld [vmem:[%s1 + $0xfc] sm:$0xf]
  %v98 = vunpack.c.l.b16 %v18
  %v99 = vunpack.c.h.b16 %v18
  %v100 = vunpack.c.l.b16 %v19
  %v101 = vunpack.c.h.b16 %v19
  %v102 = vunpack.c.l.b16 %v20
  %v103 = vunpack.c.h.b16 %v20
  %v104 = vunpack.c.l.b16 %v21
  %v105 = vunpack.c.h.b16 %v21
  %v106 = vunpack.c.l.b16 %v22
  %v107 = vunpack.c.h.b16 %v22
  %v108 = vunpack.c.l.b16 %v23
  %v109 = vunpack.c.h.b16 %v23
  %v110 = vunpack.c.l.b16 %v24
  %v111 = vunpack.c.h.b16 %v24
  %v112 = vunpack.c.l.b16 %v25
  %v113 = vunpack.c.h.b16 %v25
  %v114 = vpack.c.b16 %v102, %v98
  %v115 = vpack.c.b16 %v103, %v99
  %v116 = vpack.c.b16 %v104, %v100
  %v117 = vpack.c.b16 %v105, %v101
  %v118 = vpack.c.b16 %v110, %v106
  %v119 = vpack.c.b16 %v111, %v107
  %v120 = vpack.c.b16 %v112, %v108
  %v121 = vpack.c.b16 %v113, %v109
  %v194 = vunpack.c.l.b16 %v26
  %v195 = vunpack.c.l.b16 %v27
  %v196 = vunpack.c.l.b16 %v28
  %v197 = vunpack.c.l.b16 %v29
  %v198 = vunpack.c.l.b16 %v30
  %v199 = vunpack.c.l.b16 %v31
  %v200 = vunpack.c.l.b16 %v32
  %v201 = vunpack.c.l.b16 %v33
  %v202 = vunpack.c.l.b16 %v34
  %v203 = vunpack.c.l.b16 %v35
  %v204 = vunpack.c.l.b16 %v36
  %v205 = vunpack.c.l.b16 %v37
  %v206 = vunpack.c.l.b16 %v38
  %v207 = vunpack.c.l.b16 %v39
  %v208 = vunpack.c.l.b16 %v40
  %v209 = vunpack.c.l.b16 %v41
  %v210 = vunpack.c.l.b16 %v42
  %v211 = vunpack.c.l.b16 %v43
  %v212 = vunpack.c.l.b16 %v44
  %v213 = vunpack.c.l.b16 %v45
  %v214 = vunpack.c.l.b16 %v46
  %v215 = vunpack.c.l.b16 %v47
  %v216 = vunpack.c.l.b16 %v48
  %v217 = vunpack.c.l.b16 %v49
  %v218 = vunpack.c.l.b16 %v50
  %v219 = vunpack.c.l.b16 %v51
  %v220 = vunpack.c.l.b16 %v52
  %v221 = vunpack.c.l.b16 %v53
  %v222 = vunpack.c.l.b16 %v54
  %v223 = vunpack.c.l.b16 %v55
  %v224 = vunpack.c.l.b16 %v56
  %v225 = vunpack.c.l.b16 %v57
  %v226 = vunpack.c.l.b16 %v58
  %v227 = vunpack.c.l.b16 %v59
  %v228 = vunpack.c.l.b16 %v60
  %v229 = vunpack.c.l.b16 %v61
  %v230 = vunpack.c.l.b16 %v62
  %v231 = vunpack.c.l.b16 %v63
  %v232 = vunpack.c.l.b16 %v64
  %v233 = vunpack.c.l.b16 %v65
  %v234 = vunpack.c.l.b16 %v66
  %v235 = vunpack.c.l.b16 %v67
  %v236 = vunpack.c.l.b16 %v68
  %v237 = vunpack.c.l.b16 %v69
  %v238 = vunpack.c.l.b16 %v70
  %v239 = vunpack.c.l.b16 %v71
  %v240 = vunpack.c.l.b16 %v72
  %v241 = vunpack.c.l.b16 %v73
  %v242 = vunpack.c.l.b16 %v74
  %v243 = vunpack.c.l.b16 %v75
  %v244 = vunpack.c.l.b16 %v76
  %v245 = vunpack.c.l.b16 %v77
  %v246 = vunpack.c.l.b16 %v78
  %v247 = vunpack.c.l.b16 %v79
  %v248 = vunpack.c.l.b16 %v80
  %v249 = vunpack.c.l.b16 %v81
  %v250 = vunpack.c.l.b16 %v82
  %v251 = vunpack.c.l.b16 %v83
  %v252 = vunpack.c.l.b16 %v84
  %v253 = vunpack.c.l.b16 %v85
  %v254 = vunpack.c.l.b16 %v86
  %v255 = vunpack.c.l.b16 %v87
  %v256 = vunpack.c.l.b16 %v88
  %v257 = vunpack.c.l.b16 %v89
  %v258 = vpack.c.b16 %v195, %v194
  %v259 = vpack.c.b16 %v197, %v196
  %v260 = vpack.c.b16 %v199, %v198
  %v261 = vpack.c.b16 %v201, %v200
  %v262 = vpack.c.b16 %v203, %v202
  %v263 = vpack.c.b16 %v205, %v204
  %v264 = vpack.c.b16 %v207, %v206
  %v265 = vpack.c.b16 %v209, %v208
  %v266 = vpack.c.b16 %v211, %v210
  %v267 = vpack.c.b16 %v213, %v212
  %v268 = vpack.c.b16 %v215, %v214
  %v269 = vpack.c.b16 %v217, %v216
  %v270 = vpack.c.b16 %v219, %v218
  %v271 = vpack.c.b16 %v221, %v220
  %v272 = vpack.c.b16 %v223, %v222
  %v273 = vpack.c.b16 %v225, %v224
  %v274 = vpack.c.b16 %v227, %v226
  %v275 = vpack.c.b16 %v229, %v228
  %v276 = vpack.c.b16 %v231, %v230
  %v277 = vpack.c.b16 %v233, %v232
  %v278 = vpack.c.b16 %v235, %v234
  %v279 = vpack.c.b16 %v237, %v236
  %v280 = vpack.c.b16 %v239, %v238
  %v281 = vpack.c.b16 %v241, %v240
  %v282 = vpack.c.b16 %v243, %v242
  %v283 = vpack.c.b16 %v245, %v244
  %v284 = vpack.c.b16 %v247, %v246
  %v285 = vpack.c.b16 %v249, %v248
  %v286 = vpack.c.b16 %v251, %v250
  %v287 = vpack.c.b16 %v253, %v252
  %v288 = vpack.c.b16 %v255, %v254
  %v289 = vpack.c.b16 %v257, %v256
  %322 = vmatprep.subr.bf16.mxu0 0
  %323 = vmatpush1.bf16.msra.mxu0 %v265
  %324 = vmatprep.subr.bf16.mxu0 0
  %325 = vmatpush1.bf16.msra.mxu0 %v264
  %326 = vmatprep.subr.bf16.mxu0 0
  %327 = vmatpush1.bf16.msra.mxu0 %v263
  %328 = vmatprep.subr.bf16.mxu0 0
  %329 = vmatpush1.bf16.msra.mxu0 %v262
  %330 = vmatprep.subr.bf16.mxu0 0
  %331 = vmatpush1.bf16.msra.mxu0 %v261
  %332 = vmatprep.subr.bf16.mxu0 0
  %333 = vmatpush1.bf16.msra.mxu0 %v260
  %334 = vmatprep.subr.bf16.mxu0 0
  %335 = vmatpush1.bf16.msra.mxu0 %v259
  %336 = vmatprep.subr.bf16.mxu0 0
  %337 = vmatpush1.bf16.msra.mxu0 %v258
  %338 = vmatprep.subr.bf16.mxu0 0
  %339 = vmatpush2.bf16.msra.mxu0 %v273
  %340 = vmatprep.subr.bf16.mxu0 0
  %341 = vmatpush2.bf16.msra.mxu0 %v272
  %342 = vmatprep.subr.bf16.mxu0 0
  %343 = vmatpush2.bf16.msra.mxu0 %v271
  %344 = vmatprep.subr.bf16.mxu0 0
  %345 = vmatpush2.bf16.msra.mxu0 %v270
  %346 = vmatprep.subr.bf16.mxu0 0
  %347 = vmatpush2.bf16.msra.mxu0 %v269
  %348 = vmatprep.subr.bf16.mxu0 0
  %349 = vmatpush2.bf16.msra.mxu0 %v268
  %350 = vmatprep.subr.bf16.mxu0 0
  %351 = vmatpush2.bf16.msra.mxu0 %v267
  %352 = vmatprep.subr.bf16.mxu0 0
  %353 = vmatpush2.bf16.msra.mxu0 %v266
  %354 = vmatprep.mubr.bf16.mxu0 %v115
  %355 = vmatmul.mubr.bf16.gmra.mxu0 %v114
  %v356 = vpop.f32.mrf.mxu0
  %v357 = vadd.f32 0.0, %v356
  %v358 = vpop.f32.mrf.mxu0
  %v359 = vpop.f32.mrf.mxu0
  %v360 = vadd.f32 0.0, %v359
  %v361 = vpop.f32.mrf.mxu0
  %362 = vmatprep.mubr.bf16.mxu0 %v119
  %363 = vmatmul.mubr.bf16.gmra.mxu0 %v118
  %v364 = vpop.f32.mrf.mxu0
  %v365 = vadd.f32 0.0, %v364
  %v366 = vpop.f32.mrf.mxu0
  %v367 = vpop.f32.mrf.mxu0
  %v368 = vadd.f32 0.0, %v367
  %v369 = vpop.f32.mrf.mxu0
  %370 = vdwg.mxu0
  %371 = vmatprep.subr.bf16.mxu0 0
  %372 = vmatpush1.bf16.msra.mxu0 %v281
  %373 = vmatprep.subr.bf16.mxu0 0
  %374 = vmatpush1.bf16.msra.mxu0 %v280
  %375 = vmatprep.subr.bf16.mxu0 0
  %376 = vmatpush1.bf16.msra.mxu0 %v279
  %377 = vmatprep.subr.bf16.mxu0 0
  %378 = vmatpush1.bf16.msra.mxu0 %v278
  %379 = vmatprep.subr.bf16.mxu0 0
  %380 = vmatpush1.bf16.msra.mxu0 %v277
  %381 = vmatprep.subr.bf16.mxu0 0
  %382 = vmatpush1.bf16.msra.mxu0 %v276
  %383 = vmatprep.subr.bf16.mxu0 0
  %384 = vmatpush1.bf16.msra.mxu0 %v275
  %385 = vmatprep.subr.bf16.mxu0 0
  %386 = vmatpush1.bf16.msra.mxu0 %v274
  %387 = vmatprep.subr.bf16.mxu0 0
  %388 = vmatpush2.bf16.msra.mxu0 %v289
  %389 = vmatprep.subr.bf16.mxu0 0
  %390 = vmatpush2.bf16.msra.mxu0 %v288
  %391 = vmatprep.subr.bf16.mxu0 0
  %392 = vmatpush2.bf16.msra.mxu0 %v287
  %393 = vmatprep.subr.bf16.mxu0 0
  %394 = vmatpush2.bf16.msra.mxu0 %v286
  %395 = vmatprep.subr.bf16.mxu0 0
  %396 = vmatpush2.bf16.msra.mxu0 %v285
  %397 = vmatprep.subr.bf16.mxu0 0
  %398 = vmatpush2.bf16.msra.mxu0 %v284
  %399 = vmatprep.subr.bf16.mxu0 0
  %400 = vmatpush2.bf16.msra.mxu0 %v283
  %401 = vmatprep.subr.bf16.mxu0 0
  %402 = vmatpush2.bf16.msra.mxu0 %v282
  %403 = vmatprep.mubr.bf16.mxu0 %v117
  %404 = vmatmul.mubr.bf16.gmra.mxu0 %v116
  %v405 = vpop.f32.mrf.mxu0
  %v406 = vadd.f32 %v357, %v405
  %v407 = vpop.f32.mrf.mxu0
  %v408 = vpop.f32.mrf.mxu0
  %v409 = vadd.f32 %v360, %v408
  %v410 = vpop.f32.mrf.mxu0
  %411 = vmatprep.mubr.bf16.mxu0 %v121
  %412 = vmatmul.mubr.bf16.gmra.mxu0 %v120
  %v413 = vpop.f32.mrf.mxu0
  %v414 = vadd.f32 %v365, %v413
  %v415 = vpop.f32.mrf.mxu0
  %v416 = vpop.f32.mrf.mxu0
  %v417 = vadd.f32 %v368, %v416
  %v418 = vpop.f32.mrf.mxu0
  %419 = vdwg.mxu0
  %vm420 = vcmask 523264
  %v421 = vsel %vm420, %v406, 0.0
  %v422 = vsel %vm420, %v409, 0.0
  %v423 = vadd.f32 %v421, %v422
  %v424 = vsel %vm420, %v414, 0.0
  %v425 = vadd.f32 %v423, %v424
  %v426 = vsel %vm420, %v417, 0.0
  %v427 = vadd.f32 %v425, %v426
  %v428 = vrot.slane %v427, 4
  %v429 = vadd.f32 %v427, %v428
  %v430 = vrot.slane %v429, 2
  %v431 = vadd.f32 %v429, %v430
  %v432 = vrot.slane %v431, 1
  %v433 = vadd.f32 %v431, %v432
  %v434 = vmul.f32 %v433, 0.03125
  %v435 = vsub.f32 %v406, %v434
  %v436 = vsub.f32 %v409, %v434
  %v437 = vsub.f32 %v414, %v434
  %v438 = vsub.f32 %v417, %v434
  %v439 = vmul.f32 %v435, %v435
  %v440 = vmul.f32 %v436, %v436
  %v441 = vmul.f32 %v437, %v437
  %v442 = vmul.f32 %v438, %v438
  %v443 = vsel %vm420, %v439, 0.0
  %v444 = vsel %vm420, %v440, 0.0
  %v445 = vadd.f32 %v443, %v444
  %v446 = vsel %vm420, %v441, 0.0
  %v447 = vadd.f32 %v445, %v446
  %v448 = vsel %vm420, %v442, 0.0
  %v449 = vadd.f32 %v447, %v448
  %v450 = vrot.slane %v449, 4
  %v451 = vadd.f32 %v449, %v450
  %v452 = vrot.slane %v451, 2
  %v453 = vadd.f32 %v451, %v452
  %v454 = vrot.slane %v453, 1
  %v455 = vadd.f32 %v453, %v454
  %v456 = vmul.f32 %v455, 0.03125
  %v457 = vld [vmem:[%s2] sm:$0x1]
  %v458 = vadd.f32 %v456, 1e-05
  %v459 = vrsqrt.pop %v458
  %v460 = vmul.f32 %v457, %v459
  %v462 = vlaneseq
  %v463 = vshrl.u32 %v462, 7
  %v464 = vsub.s32 0, %v463
  %v465 = vrot.slane %v460, %v464
  %v467 = vmul.f32 %v435, %v465
  %v468 = vmul.f32 %v436, %v465
  %v469 = vmul.f32 %v437, %v465
  %v470 = vmul.f32 %v438, %v465
  %v471 = vld [vmem:[%s3] sm:$0x1]
  %v473 = vlaneseq
  %v474 = vshrl.u32 %v473, 7
  %v475 = vsub.s32 0, %v474
  %v476 = vrot.slane %v471, %v475
  %v478 = vadd.f32 %v467, %v476
  %v479 = vadd.f32 %v468, %v476
  %v480 = vadd.f32 %v469, %v476
  %v481 = vadd.f32 %v470, %v476
  %vm482 = vcmp.gt.f32.partialorder %v478, 0.0
  %vm483 = vcmp.gt.f32.partialorder %v479, 0.0
  %vm484 = vcmp.gt.f32.partialorder %v480, 0.0
  %vm485 = vcmp.gt.f32.partialorder %v481, 0.0
  %v486 = vmul.f32 %v478, 0.2
  %v487 = vmul.f32 %v479, 0.2
  %v488 = vmul.f32 %v480, 0.2
  %v489 = vmul.f32 %v481, 0.2
  %v490 = vsel %vm482, %v478, %v486
  %v491 = vsel %vm483, %v479, %v487
  %v492 = vsel %vm484, %v480, %v488
  %v493 = vsel %vm485, %v481, %v489
  %v494 = vpack.c.bf16 %v491, %v490
  %v495 = vpack.c.bf16 %v493, %v492
  %v498 = vunpack.c.l.b16 %v494
  %v499 = vunpack.c.h.b16 %v494
  %v500 = vunpack.c.l.b16 %v495
  %v501 = vunpack.c.h.b16 %v495
  %v502 = vpack.c.b16 %v498, %v498
  %v503 = vpack.c.b16 %v499, %v499
  %v504 = vpack.c.b16 %v500, %v500
  %v505 = vpack.c.b16 %v501, %v501
  %vm510 = vcmask 519168
  %511 = vst.msk [vmem:[%s4] sm:$0xf] %vm510, %v502
  %512 = vst.msk [vmem:[%s4 + $0x4] sm:$0xf] %vm510, %v503
  %513 = vst.msk [vmem:[%s4 + $0x8] sm:$0xf] %vm510, %v504
  %514 = vst.msk [vmem:[%s4 + $0xc] sm:$0xf] %vm510, %v505
  // Predicated region
  $region18: #{data_discriminator_forward.9} parent=0 // pred_check
    _
  $region19: #{data_discriminator_forward.9} parent=0 // pred_check_branch
    %516 = sbr.rel (0) target = $region21
  $region20: #{data_discriminator_forward.9} parent=0 // pred_region
    _
  $region21: #{data_discriminator_forward.9} parent=0 // pred_fallthru
    _
  // Predicated region
  $region22: #{data_discriminator_forward.9} parent=0 // pred_check
    _
  $region23: #{data_discriminator_forward.9} parent=0 // pred_check_branch
    %518 = sbr.rel (0) target = $region25
  $region24: #{data_discriminator_forward.9} parent=0 // pred_region
    _
  $region25: #{data_discriminator_forward.9} parent=0 // pred_fallthru
    _

// kernel: data_discriminator_forward.10
$region0: #{data_discriminator_forward.10}
  #allocation0 [shape = 'u32[]', space=smem, size = 0x4, offset = 0x4, fixed_abs, tag = 'smem constant byte address 0x4 - core index']
  #allocation1 [shape = 'u32[144,128]{1,0:T(1,128)}', space=vmem, size = 0x12000, scoped, tag = 'internal scratch']
  %s0 = inlined_call_operand.vmem [shape: bf16[8,1024], index: 0, kind: input, shape index: {}]
  %s1 = inlined_call_operand.vmem [shape: bf16[1024,128], index: 1, kind: input, shape index: {}]
  %s2 = inlined_call_operand.vmem [shape: f32[1,128], index: 2, kind: input, shape index: {}]
  %s3 = inlined_call_operand.vmem [shape: f32[1,128], index: 3, kind: input, shape index: {}]
  %s4 = inlined_call_operand.vmem [shape: bf16[8,128], index: 4, kind: output, shape index: {}]
  %s5 = sld [smem:[#allocation0]]
  $region26: #{data_discriminator_forward.10} parent=0
    _
  %s7 = ssub.s32 1, %s5
  %s8 = scalar_select 0, %s7, %s5
  // Predicated region
  $region2: #{data_discriminator_forward.10} parent=0 // pred_check
    _
  $region3: #{data_discriminator_forward.10} parent=0 // pred_check_branch
    %10 = sbr.rel (0) target = $region5
  $region4: #{data_discriminator_forward.10} parent=0 // pred_region
    _
  $region5: #{data_discriminator_forward.10} parent=0 // pred_fallthru
    _
  // Predicated region
  $region6: #{data_discriminator_forward.10} parent=0 // pred_check
    _
  $region7: #{data_discriminator_forward.10} parent=0 // pred_check_branch
    %12 = sbr.rel (0) target = $region9
  $region8: #{data_discriminator_forward.10} parent=0 // pred_region
    _
  $region9: #{data_discriminator_forward.10} parent=0 // pred_fallthru
    _
  // Predicated region
  $region10: #{data_discriminator_forward.10} parent=0 // pred_check
    _
  $region11: #{data_discriminator_forward.10} parent=0 // pred_check_branch
    %14 = sbr.rel (0) target = $region13
  $region12: #{data_discriminator_forward.10} parent=0 // pred_region
    _
  $region13: #{data_discriminator_forward.10} parent=0 // pred_fallthru
    _
  // Predicated region
  $region14: #{data_discriminator_forward.10} parent=0 // pred_check
    _
  $region15: #{data_discriminator_forward.10} parent=0 // pred_check_branch
    %16 = sbr.rel (0) target = $region17
  $region16: #{data_discriminator_forward.10} parent=0 // pred_region
    _
  $region17: #{data_discriminator_forward.10} parent=0 // pred_fallthru
    _
  %v18 = vld [vmem:[%s0] sm:$0xff]
  %v19 = vld [vmem:[%s0 + $0x8] sm:$0xff]
  %v20 = vld [vmem:[%s0 + $0x10] sm:$0xff]
  %v21 = vld [vmem:[%s0 + $0x18] sm:$0xff]
  %v22 = vld [vmem:[%s1] sm:$0xf]
  %v23 = vld [vmem:[%s1 + $0x4] sm:$0xf]
  %v24 = vld [vmem:[%s1 + $0x8] sm:$0xf]
  %v25 = vld [vmem:[%s1 + $0xc] sm:$0xf]
  %v26 = vld [vmem:[%s1 + $0x10] sm:$0xf]
  %v27 = vld [vmem:[%s1 + $0x14] sm:$0xf]
  %v28 = vld [vmem:[%s1 + $0x18] sm:$0xf]
  %v29 = vld [vmem:[%s1 + $0x1c] sm:$0xf]
  %v30 = vld [vmem:[%s1 + $0x20] sm:$0xf]
  %v31 = vld [vmem:[%s1 + $0x24] sm:$0xf]
  %v32 = vld [vmem:[%s1 + $0x28] sm:$0xf]
  %v33 = vld [vmem:[%s1 + $0x2c] sm:$0xf]
  %v34 = vld [vmem:[%s1 + $0x30] sm:$0xf]
  %v35 = vld [vmem:[%s1 + $0x34] sm:$0xf]
  %v36 = vld [vmem:[%s1 + $0x38] sm:$0xf]
  %v37 = vld [vmem:[%s1 + $0x3c] sm:$0xf]
  %v38 = vld [vmem:[%s1 + $0x40] sm:$0xf]
  %v39 = vld [vmem:[%s1 + $0x44] sm:$0xf]
  %v40 = vld [vmem:[%s1 + $0x48] sm:$0xf]
  %v41 = vld [vmem:[%s1 + $0x4c] sm:$0xf]
  %v42 = vld [vmem:[%s1 + $0x50] sm:$0xf]
  %v43 = vld [vmem:[%s1 + $0x54] sm:$0xf]
  %v44 = vld [vmem:[%s1 + $0x58] sm:$0xf]
  %v45 = vld [vmem:[%s1 + $0x5c] sm:$0xf]
  %v46 = vld [vmem:[%s1 + $0x60] sm:$0xf]
  %v47 = vld [vmem:[%s1 + $0x64] sm:$0xf]
  %v48 = vld [vmem:[%s1 + $0x68] sm:$0xf]
  %v49 = vld [vmem:[%s1 + $0x6c] sm:$0xf]
  %v50 = vld [vmem:[%s1 + $0x70] sm:$0xf]
  %v51 = vld [vmem:[%s1 + $0x74] sm:$0xf]
  %v52 = vld [vmem:[%s1 + $0x78] sm:$0xf]
  %v53 = vld [vmem:[%s1 + $0x7c] sm:$0xf]
  %v54 = vld [vmem:[%s1 + $0x80] sm:$0xf]
  %v55 = vld [vmem:[%s1 + $0x84] sm:$0xf]
  %v56 = vld [vmem:[%s1 + $0x88] sm:$0xf]
  %v57 = vld [vmem:[%s1 + $0x8c] sm:$0xf]
  %v58 = vld [vmem:[%s1 + $0x90] sm:$0xf]
  %v59 = vld [vmem:[%s1 + $0x94] sm:$0xf]
  %v60 = vld [vmem:[%s1 + $0x98] sm:$0xf]
  %v61 = vld [vmem:[%s1 + $0x9c] sm:$0xf]
  %v62 = vld [vmem:[%s1 + $0xa0] sm:$0xf]
  %v63 = vld [vmem:[%s1 + $0xa4] sm:$0xf]
  %v64 = vld [vmem:[%s1 + $0xa8] sm:$0xf]
  %v65 = vld [vmem:[%s1 + $0xac] sm:$0xf]
  %v66 = vld [vmem:[%s1 + $0xb0] sm:$0xf]
  %v67 = vld [vmem:[%s1 + $0xb4] sm:$0xf]
  %v68 = vld [vmem:[%s1 + $0xb8] sm:$0xf]
  %v69 = vld [vmem:[%s1 + $0xbc] sm:$0xf]
  %v70 = vld [vmem:[%s1 + $0xc0] sm:$0xf]
  %v71 = vld [vmem:[%s1 + $0xc4] sm:$0xf]
  %v72 = vld [vmem:[%s1 + $0xc8] sm:$0xf]
  %v73 = vld [vmem:[%s1 + $0xcc] sm:$0xf]
  %v74 = vld [vmem:[%s1 + $0xd0] sm:$0xf]
  %v75 = vld [vmem:[%s1 + $0xd4] sm:$0xf]
  %v76 = vld [vmem:[%s1 + $0xd8] sm:$0xf]
  %v77 = vld [vmem:[%s1 + $0xdc] sm:$0xf]
  %v78 = vld [vmem:[%s1 + $0xe0] sm:$0xf]
  %v79 = vld [vmem:[%s1 + $0xe4] sm:$0xf]
  %v80 = vld [vmem:[%s1 + $0xe8] sm:$0xf]
  %v81 = vld [vmem:[%s1 + $0xec] sm:$0xf]
  %v82 = vld [vmem:[%s1 + $0xf0] sm:$0xf]
  %v83 = vld [vmem:[%s1 + $0xf4] sm:$0xf]
  %v84 = vld [vmem:[%s1 + $0xf8] sm:$0xf]
  %v85 = vld [vmem:[%s1 + $0xfc] sm:$0xf]
  %v86 = vld [vmem:[%s1 + $0x100] sm:$0xf]
  %v87 = vld [vmem:[%s1 + $0x104] sm:$0xf]
  %v88 = vld [vmem:[%s1 + $0x108] sm:$0xf]
  %v89 = vld [vmem:[%s1 + $0x10c] sm:$0xf]
  %v90 = vld [vmem:[%s1 + $0x110] sm:$0xf]
  %v91 = vld [vmem:[%s1 + $0x114] sm:$0xf]
  %v92 = vld [vmem:[%s1 + $0x118] sm:$0xf]
  %v93 = vld [vmem:[%s1 + $0x11c] sm:$0xf]
  %v94 = vld [vmem:[%s1 + $0x120] sm:$0xf]
  %v95 = vld [vmem:[%s1 + $0x124] sm:$0xf]
  %v96 = vld [vmem:[%s1 + $0x128] sm:$0xf]
  %v97 = vld [vmem:[%s1 + $0x12c] sm:$0xf]
  %v98 = vld [vmem:[%s1 + $0x130] sm:$0xf]
  %v99 = vld [vmem:[%s1 + $0x134] sm:$0xf]
  %v100 = vld [vmem:[%s1 + $0x138] sm:$0xf]
  %v101 = vld [vmem:[%s1 + $0x13c] sm:$0xf]
  %v102 = vld [vmem:[%s1 + $0x140] sm:$0xf]
  %v103 = vld [vmem:[%s1 + $0x144] sm:$0xf]
  %v104 = vld [vmem:[%s1 + $0x148] sm:$0xf]
  %v105 = vld [vmem:[%s1 + $0x14c] sm:$0xf]
  %v106 = vld [vmem:[%s1 + $0x150] sm:$0xf]
  %v107 = vld [vmem:[%s1 + $0x154] sm:$0xf]
  %v108 = vld [vmem:[%s1 + $0x158] sm:$0xf]
  %v109 = vld [vmem:[%s1 + $0x15c] sm:$0xf]
  %v110 = vld [vmem:[%s1 + $0x160] sm:$0xf]
  %v111 = vld [vmem:[%s1 + $0x164] sm:$0xf]
  %v112 = vld [vmem:[%s1 + $0x168] sm:$0xf]
  %v113 = vld [vmem:[%s1 + $0x16c] sm:$0xf]
  %v114 = vld [vmem:[%s1 + $0x170] sm:$0xf]
  %v115 = vld [vmem:[%s1 + $0x174] sm:$0xf]
  %v116 = vld [vmem:[%s1 + $0x178] sm:$0xf]
  %v117 = vld [vmem:[%s1 + $0x17c] sm:$0xf]
  %v118 = vld [vmem:[%s1 + $0x180] sm:$0xf]
  %v119 = vld [vmem:[%s1 + $0x184] sm:$0xf]
  %v120 = vld [vmem:[%s1 + $0x188] sm:$0xf]
  %v121 = vld [vmem:[%s1 + $0x18c] sm:$0xf]
  %v122 = vld [vmem:[%s1 + $0x190] sm:$0xf]
  %v123 = vld [vmem:[%s1 + $0x194] sm:$0xf]
  %v124 = vld [vmem:[%s1 + $0x198] sm:$0xf]
  %v125 = vld [vmem:[%s1 + $0x19c] sm:$0xf]
  %v126 = vld [vmem:[%s1 + $0x1a0] sm:$0xf]
  %v127 = vld [vmem:[%s1 + $0x1a4] sm:$0xf]
  %v128 = vld [vmem:[%s1 + $0x1a8] sm:$0xf]
  %v129 = vld [vmem:[%s1 + $0x1ac] sm:$0xf]
  %v130 = vld [vmem:[%s1 + $0x1b0] sm:$0xf]
  %v131 = vld [vmem:[%s1 + $0x1b4] sm:$0xf]
  %v132 = vld [vmem:[%s1 + $0x1b8] sm:$0xf]
  %v133 = vld [vmem:[%s1 + $0x1bc] sm:$0xf]
  %v134 = vld [vmem:[%s1 + $0x1c0] sm:$0xf]
  %v135 = vld [vmem:[%s1 + $0x1c4] sm:$0xf]
  %v136 = vld [vmem:[%s1 + $0x1c8] sm:$0xf]
  %v137 = vld [vmem:[%s1 + $0x1cc] sm:$0xf]
  %v138 = vld [vmem:[%s1 + $0x1d0] sm:$0xf]
  %v139 = vld [vmem:[%s1 + $0x1d4] sm:$0xf]
  %v140 = vld [vmem:[%s1 + $0x1d8] sm:$0xf]
  %v141 = vld [vmem:[%s1 + $0x1dc] sm:$0xf]
  %v142 = vld [vmem:[%s1 + $0x1e0] sm:$0xf]
  %v143 = vld [vmem:[%s1 + $0x1e4] sm:$0xf]
  %v144 = vld [vmem:[%s1 + $0x1e8] sm:$0xf]
  %v145 = vld [vmem:[%s1 + $0x1ec] sm:$0xf]
  %v146 = vld [vmem:[%s1 + $0x1f0] sm:$0xf]
  %v147 = vld [vmem:[%s1 + $0x1f4] sm:$0xf]
  %v148 = vld [vmem:[%s1 + $0x1f8] sm:$0xf]
  %v149 = vld [vmem:[%s1 + $0x1fc] sm:$0xf]
  %v154 = vunpack.c.l.b16 %v18
  %v155 = vunpack.c.h.b16 %v18
  %v156 = vunpack.c.l.b16 %v19
  %v157 = vunpack.c.h.b16 %v19
  %v158 = vunpack.c.l.b16 %v20
  %v159 = vunpack.c.h.b16 %v20
  %v160 = vunpack.c.l.b16 %v21
  %v161 = vunpack.c.h.b16 %v21
  %v162 = vpack.c.b16 %v154, %v154
  %v163 = vpack.c.b16 %v155, %v155
  %v164 = vpack.c.b16 %v156, %v156
  %v165 = vpack.c.b16 %v157, %v157
  %v166 = vpack.c.b16 %v158, %v158
  %v167 = vpack.c.b16 %v159, %v159
  %v168 = vpack.c.b16 %v160, %v160
  %v169 = vpack.c.b16 %v161, %v161
  %v306 = vunpack.c.l.b16 %v22
  %v307 = vunpack.c.l.b16 %v23
  %v308 = vunpack.c.l.b16 %v24
  %v309 = vunpack.c.l.b16 %v25
  %v310 = vunpack.c.l.b16 %v26
  %v311 = vunpack.c.l.b16 %v27
  %v312 = vunpack.c.l.b16 %v28
  %v313 = vunpack.c.l.b16 %v29
  %v314 = vunpack.c.l.b16 %v30
  %v315 = vunpack.c.l.b16 %v31
  %v316 = vunpack.c.l.b16 %v32
  %v317 = vunpack.c.l.b16 %v33
  %v318 = vunpack.c.l.b16 %v34
  %v319 = vunpack.c.l.b16 %v35
  %v320 = vunpack.c.l.b16 %v36
  %v321 = vunpack.c.l.b16 %v37
  %v322 = vunpack.c.l.b16 %v38
  %v323 = vunpack.c.l.b16 %v39
  %v324 = vunpack.c.l.b16 %v40
  %v325 = vunpack.c.l.b16 %v41
  %v326 = vunpack.c.l.b16 %v42
  %v327 = vunpack.c.l.b16 %v43
  %v328 = vunpack.c.l.b16 %v44
  %v329 = vunpack.c.l.b16 %v45
  %v330 = vunpack.c.l.b16 %v46
  %v331 = vunpack.c.l.b16 %v47
  %v332 = vunpack.c.l.b16 %v48
  %v333 = vunpack.c.l.b16 %v49
  %v334 = vunpack.c.l.b16 %v50
  %v335 = vunpack.c.l.b16 %v51
  %v336 = vunpack.c.l.b16 %v52
  %v337 = vunpack.c.l.b16 %v53
  %v338 = vunpack.c.l.b16 %v54
  %v339 = vunpack.c.l.b16 %v55
  %v340 = vunpack.c.l.b16 %v56
  %v341 = vunpack.c.l.b16 %v57
  %v342 = vunpack.c.l.b16 %v58
  %v343 = vunpack.c.l.b16 %v59
  %v344 = vunpack.c.l.b16 %v60
  %v345 = vunpack.c.l.b16 %v61
  %v346 = vunpack.c.l.b16 %v62
  %v347 = vunpack.c.l.b16 %v63
  %v348 = vunpack.c.l.b16 %v64
  %v349 = vunpack.c.l.b16 %v65
  %v350 = vunpack.c.l.b16 %v66
  %v351 = vunpack.c.l.b16 %v67
  %v352 = vunpack.c.l.b16 %v68
  %v353 = vunpack.c.l.b16 %v69
  %v354 = vunpack.c.l.b16 %v70
  %v355 = vunpack.c.l.b16 %v71
  %v356 = vunpack.c.l.b16 %v72
  %v357 = vunpack.c.l.b16 %v73
  %v358 = vunpack.c.l.b16 %v74
  %v359 = vunpack.c.l.b16 %v75
  %v360 = vunpack.c.l.b16 %v76
  %v361 = vunpack.c.l.b16 %v77
  %v362 = vunpack.c.l.b16 %v78
  %v363 = vunpack.c.l.b16 %v79
  %v364 = vunpack.c.l.b16 %v80
  %v365 = vunpack.c.l.b16 %v81
  %v366 = vunpack.c.l.b16 %v82
  %v367 = vunpack.c.l.b16 %v83
  %v368 = vunpack.c.l.b16 %v84
  %v369 = vunpack.c.l.b16 %v85
  %v370 = vunpack.c.l.b16 %v86
  %v371 = vunpack.c.l.b16 %v87
  %v372 = vunpack.c.l.b16 %v88
  %v373 = vunpack.c.l.b16 %v89
  %v374 = vunpack.c.l.b16 %v90
  %v375 = vunpack.c.l.b16 %v91
  %v376 = vunpack.c.l.b16 %v92
  %v377 = vunpack.c.l.b16 %v93
  %v378 = vunpack.c.l.b16 %v94
  %v379 = vunpack.c.l.b16 %v95
  %v380 = vunpack.c.l.b16 %v96
  %v381 = vunpack.c.l.b16 %v97
  %v382 = vunpack.c.l.b16 %v98
  %v383 = vunpack.c.l.b16 %v99
  %v384 = vunpack.c.l.b16 %v100
  %v385 = vunpack.c.l.b16 %v101
  %v386 = vunpack.c.l.b16 %v102
  %v387 = vunpack.c.l.b16 %v103
  %v388 = vunpack.c.l.b16 %v104
  %v389 = vunpack.c.l.b16 %v105
  %v390 = vunpack.c.l.b16 %v106
  %v391 = vunpack.c.l.b16 %v107
  %v392 = vunpack.c.l.b16 %v108
  %v393 = vunpack.c.l.b16 %v109
  %v394 = vunpack.c.l.b16 %v110
  %v395 = vunpack.c.l.b16 %v111
  %v396 = vunpack.c.l.b16 %v112
  %v397 = vunpack.c.l.b16 %v113
  %v398 = vunpack.c.l.b16 %v114
  %v399 = vunpack.c.l.b16 %v115
  %v400 = vunpack.c.l.b16 %v116
  %v401 = vunpack.c.l.b16 %v117
  %v402 = vunpack.c.l.b16 %v118
  %v403 = vunpack.c.l.b16 %v119
  %v404 = vunpack.c.l.b16 %v120
  %v405 = vunpack.c.l.b16 %v121
  %v406 = vunpack.c.l.b16 %v122
  %v407 = vunpack.c.l.b16 %v123
  %v408 = vunpack.c.l.b16 %v124
  %v409 = vunpack.c.l.b16 %v125
  %v410 = vunpack.c.l.b16 %v126
  %v411 = vunpack.c.l.b16 %v127
  %v412 = vunpack.c.l.b16 %v128
  %v413 = vunpack.c.l.b16 %v129
  %v414 = vunpack.c.l.b16 %v130
  %v415 = vunpack.c.l.b16 %v131
  %v416 = vunpack.c.l.b16 %v132
  %v417 = vunpack.c.l.b16 %v133
  %v418 = vunpack.c.l.b16 %v134
  %v419 = vunpack.c.l.b16 %v135
  %v420 = vunpack.c.l.b16 %v136
  %v421 = vunpack.c.l.b16 %v137
  %v422 = vunpack.c.l.b16 %v138
  %v423 = vunpack.c.l.b16 %v139
  %v424 = vunpack.c.l.b16 %v140
  %v425 = vunpack.c.l.b16 %v141
  %v426 = vunpack.c.l.b16 %v142
  %v427 = vunpack.c.l.b16 %v143
  %v428 = vunpack.c.l.b16 %v144
  %v429 = vunpack.c.l.b16 %v145
  %v430 = vunpack.c.l.b16 %v146
  %v431 = vunpack.c.l.b16 %v147
  %v432 = vunpack.c.l.b16 %v148
  %v433 = vunpack.c.l.b16 %v149
  %v434 = vpack.c.b16 %v307, %v306
  %v435 = vpack.c.b16 %v309, %v308
  %v436 = vpack.c.b16 %v311, %v310
  %v437 = vpack.c.b16 %v313, %v312
  %v438 = vpack.c.b16 %v315, %v314
  %v439 = vpack.c.b16 %v317, %v316
  %v440 = vpack.c.b16 %v319, %v318
  %v441 = vpack.c.b16 %v321, %v320
  %v442 = vpack.c.b16 %v323, %v322
  %v443 = vpack.c.b16 %v325, %v324
  %v444 = vpack.c.b16 %v327, %v326
  %v445 = vpack.c.b16 %v329, %v328
  %v446 = vpack.c.b16 %v331, %v330
  %v447 = vpack.c.b16 %v333, %v332
  %v448 = vpack.c.b16 %v335, %v334
  %v449 = vpack.c.b16 %v337, %v336
  %v450 = vpack.c.b16 %v339, %v338
  %v451 = vpack.c.b16 %v341, %v340
  %v452 = vpack.c.b16 %v343, %v342
  %v453 = vpack.c.b16 %v345, %v344
  %v454 = vpack.c.b16 %v347, %v346
  %v455 = vpack.c.b16 %v349, %v348
  %v456 = vpack.c.b16 %v351, %v350
  %v457 = vpack.c.b16 %v353, %v352
  %v458 = vpack.c.b16 %v355, %v354
  %v459 = vpack.c.b16 %v357, %v356
  %v460 = vpack.c.b16 %v359, %v358
  %v461 = vpack.c.b16 %v361, %v360
  %v462 = vpack.c.b16 %v363, %v362
  %v463 = vpack.c.b16 %v365, %v364
  %v464 = vpack.c.b16 %v367, %v366
  %v465 = vpack.c.b16 %v369, %v368
  %v466 = vpack.c.b16 %v371, %v370
  %v467 = vpack.c.b16 %v373, %v372
  %v468 = vpack.c.b16 %v375, %v374
  %v469 = vpack.c.b16 %v377, %v376
  %v470 = vpack.c.b16 %v379, %v378
  %v471 = vpack.c.b16 %v381, %v380
  %v472 = vpack.c.b16 %v383, %v382
  %v473 = vpack.c.b16 %v385, %v384
  %v474 = vpack.c.b16 %v387, %v386
  %v475 = vpack.c.b16 %v389, %v388
  %v476 = vpack.c.b16 %v391, %v390
  %v477 = vpack.c.b16 %v393, %v392
  %v478 = vpack.c.b16 %v395, %v394
  %v479 = vpack.c.b16 %v397, %v396
  %v480 = vpack.c.b16 %v399, %v398
  %v481 = vpack.c.b16 %v401, %v400
  %v482 = vpack.c.b16 %v403, %v402
  %v483 = vpack.c.b16 %v405, %v404
  %v484 = vpack.c.b16 %v407, %v406
  %v485 = vpack.c.b16 %v409, %v408
  %v486 = vpack.c.b16 %v411, %v410
  %v487 = vpack.c.b16 %v413, %v412
  %v488 = vpack.c.b16 %v415, %v414
  %v489 = vpack.c.b16 %v417, %v416
  %v490 = vpack.c.b16 %v419, %v418
  %v491 = vpack.c.b16 %v421, %v420
  %v492 = vpack.c.b16 %v423, %v422
  %v493 = vpack.c.b16 %v425, %v424
  %v494 = vpack.c.b16 %v427, %v426
  %v495 = vpack.c.b16 %v429, %v428
  %v496 = vpack.c.b16 %v431, %v430
  %v497 = vpack.c.b16 %v433, %v432
  %562 = vmatprep.subr.bf16.mxu0 0
  %563 = vmatpush1.bf16.msra.mxu0 %v441
  %564 = vmatprep.subr.bf16.mxu0 0
  %565 = vmatpush1.bf16.msra.mxu0 %v440
  %566 = vmatprep.subr.bf16.mxu0 0
  %567 = vmatpush1.bf16.msra.mxu0 %v439
  %568 = vmatprep.subr.bf16.mxu0 0
  %569 = vmatpush1.bf16.msra.mxu0 %v438
  %570 = vmatprep.subr.bf16.mxu0 0
  %571 = vmatpush1.bf16.msra.mxu0 %v437
  %572 = vmatprep.subr.bf16.mxu0 0
  %573 = vmatpush1.bf16.msra.mxu0 %v436
  %574 = vmatprep.subr.bf16.mxu0 0
  %575 = vmatpush1.bf16.msra.mxu0 %v435
  %576 = vmatprep.subr.bf16.mxu0 0
  %577 = vmatpush1.bf16.msra.mxu0 %v434
  %578 = vmatprep.subr.bf16.mxu0 0
  %579 = vmatpush2.bf16.msra.mxu0 %v449
  %580 = vmatprep.subr.bf16.mxu0 0
  %581 = vmatpush2.bf16.msra.mxu0 %v448
  %582 = vmatprep.subr.bf16.mxu0 0
  %583 = vmatpush2.bf16.msra.mxu0 %v447
  %584 = vmatprep.subr.bf16.mxu0 0
  %585 = vmatpush2.bf16.msra.mxu0 %v446
  %586 = vmatprep.subr.bf16.mxu0 0
  %587 = vmatpush2.bf16.msra.mxu0 %v445
  %588 = vmatprep.subr.bf16.mxu0 0
  %589 = vmatpush2.bf16.msra.mxu0 %v444
  %590 = vmatprep.subr.bf16.mxu0 0
  %591 = vmatpush2.bf16.msra.mxu0 %v443
  %592 = vmatprep.subr.bf16.mxu0 0
  %593 = vmatpush2.bf16.msra.mxu0 %v442
  %594 = vmatprep.mubr.bf16.mxu0 %v163
  %595 = vmatmul.mubr.bf16.gmra.mxu0 %v162
  %v596 = vpop.f32.mrf.mxu0
  %v597 = vadd.f32 0.0, %v596
  %v598 = vpop.f32.mrf.mxu0
  %v599 = vpop.f32.mrf.mxu0
  %v600 = vpop.f32.mrf.mxu0
  %601 = vdwg.mxu0
  %602 = vmatprep.subr.bf16.mxu0 0
  %603 = vmatpush1.bf16.msra.mxu0 %v457
  %604 = vmatprep.subr.bf16.mxu0 0
  %605 = vmatpush1.bf16.msra.mxu0 %v456
  %606 = vmatprep.subr.bf16.mxu0 0
  %607 = vmatpush1.bf16.msra.mxu0 %v455
  %608 = vmatprep.subr.bf16.mxu0 0
  %609 = vmatpush1.bf16.msra.mxu0 %v454
  %610 = vmatprep.subr.bf16.mxu0 0
  %611 = vmatpush1.bf16.msra.mxu0 %v453
  %612 = vmatprep.subr.bf16.mxu0 0
  %613 = vmatpush1.bf16.msra.mxu0 %v452
  %614 = vmatprep.subr.bf16.mxu0 0
  %615 = vmatpush1.bf16.msra.mxu0 %v451
  %616 = vmatprep.subr.bf16.mxu0 0
  %617 = vmatpush1.bf16.msra.mxu0 %v450
  %618 = vmatprep.subr.bf16.mxu0 0
  %619 = vmatpush2.bf16.msra.mxu0 %v465
  %620 = vmatprep.subr.bf16.mxu0 0
  %621 = vmatpush2.bf16.msra.mxu0 %v464
  %622 = vmatprep.subr.bf16.mxu0 0
  %623 = vmatpush2.bf16.msra.mxu0 %v463
  %624 = vmatprep.subr.bf16.mxu0 0
  %625 = vmatpush2.bf16.msra.mxu0 %v462
  %626 = vmatprep.subr.bf16.mxu0 0
  %627 = vmatpush2.bf16.msra.mxu0 %v461
  %628 = vmatprep.subr.bf16.mxu0 0
  %629 = vmatpush2.bf16.msra.mxu0 %v460
  %630 = vmatprep.subr.bf16.mxu0 0
  %631 = vmatpush2.bf16.msra.mxu0 %v459
  %632 = vmatprep.subr.bf16.mxu0 0
  %633 = vmatpush2.bf16.msra.mxu0 %v458
  %634 = vmatprep.mubr.bf16.mxu0 %v165
  %635 = vmatmul.mubr.bf16.gmra.mxu0 %v164
  %v636 = vpop.f32.mrf.mxu0
  %v637 = vadd.f32 %v597, %v636
  %v638 = vpop.f32.mrf.mxu0
  %v639 = vpop.f32.mrf.mxu0
  %v640 = vpop.f32.mrf.mxu0
  %641 = vdwg.mxu0
  %642 = vmatprep.subr.bf16.mxu0 0
  %643 = vmatpush1.bf16.msra.mxu0 %v473
  %644 = vmatprep.subr.bf16.mxu0 0
  %645 = vmatpush1.bf16.msra.mxu0 %v472
  %646 = vmatprep.subr.bf16.mxu0 0
  %647 = vmatpush1.bf16.msra.mxu0 %v471
  %648 = vmatprep.subr.bf16.mxu0 0
  %649 = vmatpush1.bf16.msra.mxu0 %v470
  %650 = vmatprep.subr.bf16.mxu0 0
  %651 = vmatpush1.bf16.msra.mxu0 %v469
  %652 = vmatprep.subr.bf16.mxu0 0
  %653 = vmatpush1.bf16.msra.mxu0 %v468
  %654 = vmatprep.subr.bf16.mxu0 0
  %655 = vmatpush1.bf16.msra.mxu0 %v467
  %656 = vmatprep.subr.bf16.mxu0 0
  %657 = vmatpush1.bf16.msra.mxu0 %v466
  %658 = vmatprep.subr.bf16.mxu0 0
  %659 = vmatpush2.bf16.msra.mxu0 %v481
  %660 = vmatprep.subr.bf16.mxu0 0
  %661 = vmatpush2.bf16.msra.mxu0 %v480
  %662 = vmatprep.subr.bf16.mxu0 0
  %663 = vmatpush2.bf16.msra.mxu0 %v479
  %664 = vmatprep.subr.bf16.mxu0 0
  %665 = vmatpush2.bf16.msra.mxu0 %v478
  %666 = vmatprep.subr.bf16.mxu0 0
  %667 = vmatpush2.bf16.msra.mxu0 %v477
  %668 = vmatprep.subr.bf16.mxu0 0
  %669 = vmatpush2.bf16.msra.mxu0 %v476
  %670 = vmatprep.subr.bf16.mxu0 0
  %671 = vmatpush2.bf16.msra.mxu0 %v475
  %672 = vmatprep.subr.bf16.mxu0 0
  %673 = vmatpush2.bf16.msra.mxu0 %v474
  %674 = vmatprep.mubr.bf16.mxu0 %v167
  %675 = vmatmul.mubr.bf16.gmra.mxu0 %v166
  %v676 = vpop.f32.mrf.mxu0
  %v677 = vadd.f32 %v637, %v676
  %v678 = vpop.f32.mrf.mxu0
  %v679 = vpop.f32.mrf.mxu0
  %v680 = vpop.f32.mrf.mxu0
  %681 = vdwg.mxu0
  %682 = vmatprep.subr.bf16.mxu0 0
  %683 = vmatpush1.bf16.msra.mxu0 %v489
  %684 = vmatprep.subr.bf16.mxu0 0
  %685 = vmatpush1.bf16.msra.mxu0 %v488
  %686 = vmatprep.subr.bf16.mxu0 0
  %687 = vmatpush1.bf16.msra.mxu0 %v487
  %688 = vmatprep.subr.bf16.mxu0 0
  %689 = vmatpush1.bf16.msra.mxu0 %v486
  %690 = vmatprep.subr.bf16.mxu0 0
  %691 = vmatpush1.bf16.msra.mxu0 %v485
  %692 = vmatprep.subr.bf16.mxu0 0
  %693 = vmatpush1.bf16.msra.mxu0 %v484
  %694 = vmatprep.subr.bf16.mxu0 0
  %695 = vmatpush1.bf16.msra.mxu0 %v483
  %696 = vmatprep.subr.bf16.mxu0 0
  %697 = vmatpush1.bf16.msra.mxu0 %v482
  %698 = vmatprep.subr.bf16.mxu0 0
  %699 = vmatpush2.bf16.msra.mxu0 %v497
  %700 = vmatprep.subr.bf16.mxu0 0
  %701 = vmatpush2.bf16.msra.mxu0 %v496
  %702 = vmatprep.subr.bf16.mxu0 0
  %703 = vmatpush2.bf16.msra.mxu0 %v495
  %704 = vmatprep.subr.bf16.mxu0 0
  %705 = vmatpush2.bf16.msra.mxu0 %v494
  %706 = vmatprep.subr.bf16.mxu0 0
  %707 = vmatpush2.bf16.msra.mxu0 %v493
  %708 = vmatprep.subr.bf16.mxu0 0
  %709 = vmatpush2.bf16.msra.mxu0 %v492
  %710 = vmatprep.subr.bf16.mxu0 0
  %711 = vmatpush2.bf16.msra.mxu0 %v491
  %712 = vmatprep.subr.bf16.mxu0 0
  %713 = vmatpush2.bf16.msra.mxu0 %v490
  %714 = vmatprep.mubr.bf16.mxu0 %v169
  %715 = vmatmul.mubr.bf16.gmra.mxu0 %v168
  %v716 = vpop.f32.mrf.mxu0
  %v717 = vadd.f32 %v677, %v716
  %v718 = vpop.f32.mrf.mxu0
  %v719 = vpop.f32.mrf.mxu0
  %v720 = vpop.f32.mrf.mxu0
  %721 = vdwg.mxu0
  %v722 = vrot.slane %v717, 4
  %v723 = vadd.f32 %v717, %v722
  %v724 = vrot.slane %v723, 2
  %v725 = vadd.f32 %v723, %v724
  %v726 = vrot.slane %v725, 1
  %v727 = vadd.f32 %v725, %v726
  %v728 = vmul.f32 %v727, 0.125
  %v729 = vsub.f32 %v717, %v728
  %v730 = vmul.f32 %v729, %v729
  %v731 = vrot.slane %v730, 4
  %v732 = vadd.f32 %v730, %v731
  %v733 = vrot.slane %v732, 2
  %v734 = vadd.f32 %v732, %v733
  %v735 = vrot.slane %v734, 1
  %v736 = vadd.f32 %v734, %v735
  %v737 = vmul.f32 %v736, 0.125
  %v738 = vld [vmem:[%s2] sm:$0x1]
  %v739 = vadd.f32 %v737, 1e-05
  %v740 = vrsqrt.pop %v739
  %v741 = vmul.f32 %v738, %v740
  %v743 = vlaneseq
  %v744 = vshrl.u32 %v743, 7
  %v745 = vsub.s32 0, %v744
  %v746 = vrot.slane %v741, %v745
  %v748 = vmul.f32 %v729, %v746
  %v749 = vld [vmem:[%s3] sm:$0x1]
  %v751 = vlaneseq
  %v752 = vshrl.u32 %v751, 7
  %v753 = vsub.s32 0, %v752
  %v754 = vrot.slane %v749, %v753
  %v756 = vadd.f32 %v748, %v754
  %vm757 = vcmp.gt.f32.partialorder %v756, 0.0
  %v758 = vmul.f32 %v756, 0.2
  %v759 = vsel %vm757, %v756, %v758
  %v760 = vpack.c.bf16 %v759, %v759
  %761 = vst [vmem:[%s4] sm:$0xf] %v760
  // Predicated region
  $region18: #{data_discriminator_forward.10} parent=0 // pred_check
    _
  $region19: #{data_discriminator_forward.10} parent=0 // pred_check_branch
    %763 = sbr.rel (0) target = $region21
  $region20: #{data_discriminator_forward.10} parent=0 // pred_region
    _
  $region21: #{data_discriminator_forward.10} parent=0 // pred_fallthru
    _
  // Predicated region
  $region22: #{data_discriminator_forward.10} parent=0 // pred_check
    _
  $region23: #{data_discriminator_forward.10} parent=0 // pred_check_branch
    %765 = sbr.rel (0) target = $region25
  $region24: #{data_discriminator_forward.10} parent=0 // pred_region
    _
  $region25: #{data_discriminator_forward.10} parent=0 // pred_fallthru
    _

// kernel: data_discriminator_forward.11
$region0: #{data_discriminator_forward.11}
  #allocation0 [shape = 'u32[]', space=smem, size = 0x4, offset = 0x4, fixed_abs, tag = 'smem constant byte address 0x4 - core index']
  #allocation1 [shape = 'u32[144,128]{1,0:T(1,128)}', space=vmem, size = 0x12000, scoped, tag = 'internal scratch']
  #allocation2 [shape = 'f32[1,1]{1,0:T(1,128)S(1)}', space=vmem, size = 0x200, scoped, tag = 'scoped memory for data_discriminator_forward.11']
  %s0 = inlined_call_operand.vmem [shape: bf16[2,2048], index: 0, kind: input, shape index: {}]
  %s1 = inlined_call_operand.vmem [shape: bf16[2048,256], index: 1, kind: input, shape index: {}]
  %s2 = inlined_call_operand.vmem [shape: f32[1,256], index: 2, kind: input, shape index: {}]
  %s3 = inlined_call_operand.<no memory space> [shape: f32[1,1], index: 3, kind: input, shape index: {}]
  %s4 = inlined_call_operand.vmem [shape: f32[2,1], index: 4, kind: output, shape index: {}]
  %s5 = sld [smem:[#allocation0]]
  $region30: #{data_discriminator_forward.11} parent=0
    _
  %s7 = ssub.s32 1, %s5
  %s8 = scalar_select 0, %s7, %s5
  %v9 = vstv %s3
  %10 = vst [vmem:[#allocation2] sm:$0x1] %v9
  // Predicated region
  $region2: #{data_discriminator_forward.11} parent=0 // pred_check
    _
  $region3: #{data_discriminator_forward.11} parent=0 // pred_check_branch
    %12 = sbr.rel (0) target = $region5
  $region4: #{data_discriminator_forward.11} parent=0 // pred_region
    _
  $region5: #{data_discriminator_forward.11} parent=0 // pred_fallthru
    _
  // Predicated region
  $region6: #{data_discriminator_forward.11} parent=0 // pred_check
    _
  $region7: #{data_discriminator_forward.11} parent=0 // pred_check_branch
    %14 = sbr.rel (0) target = $region9
  $region8: #{data_discriminator_forward.11} parent=0 // pred_region
    _
  $region9: #{data_discriminator_forward.11} parent=0 // pred_fallthru
    _
  // Predicated region
  $region10: #{data_discriminator_forward.11} parent=0 // pred_check
    _
  $region11: #{data_discriminator_forward.11} parent=0 // pred_check_branch
    %16 = sbr.rel (0) target = $region13
  $region12: #{data_discriminator_forward.11} parent=0 // pred_region
    _
  $region13: #{data_discriminator_forward.11} parent=0 // pred_fallthru
    _
  // Predicated region
  $region14: #{data_discriminator_forward.11} parent=0 // pred_check
    _
  $region15: #{data_discriminator_forward.11} parent=0 // pred_check_branch
    %18 = sbr.rel (0) target = $region17
  $region16: #{data_discriminator_forward.11} parent=0 // pred_region
    _
  $region17: #{data_discriminator_forward.11} parent=0 // pred_fallthru
    _
  %p19 = scmp.eq.s32.totalorder 0, 0
  // Predicated region
  $region18: #{data_discriminator_forward.11} parent=0 // pred_check
    %p20 = pneg %p19
  $region19: #{data_discriminator_forward.11} parent=0 // pred_check_branch
    %22 = sbr.rel (%p20) target = $region21
  $region20: #{data_discriminator_forward.11} parent=0 // pred_region
    %v23 = vld [vmem:[#allocation2] sm:$0x1]
    %v25 = vlaneseq
    %v26 = vshrl.u32 %v25, 7
    %v27 = vsub.s32 0, %v26
    %v28 = vrot.slane %v23, %v27
    %vm30 = vcmask 1024
    %31 = vst.msk [vmem:[%s4] sm:$0x3] %vm30, %v28
  $region21: #{data_discriminator_forward.11} parent=0 // pred_fallthru
    _
  %v32 = vld [vmem:[%s0] sm:$0xff]
  %v33 = vld [vmem:[%s0 + $0x8] sm:$0xff]
  %v34 = vld [vmem:[%s1] sm:$0xff]
  %v35 = vld [vmem:[%s1 + $0x8] sm:$0xff]
  %v36 = vld [vmem:[%s1 + $0x10] sm:$0xff]
  %v37 = vld [vmem:[%s1 + $0x18] sm:$0xff]
  %v38 = vld [vmem:[%s1 + $0x20] sm:$0xff]
  %v39 = vld [vmem:[%s1 + $0x28] sm:$0xff]
  %v40 = vld [vmem:[%s1 + $0x30] sm:$0xff]
  %v41 = vld [vmem:[%s1 + $0x38] sm:$0xff]
  %v42 = vld [vmem:[%s1 + $0x40] sm:$0xff]
  %v43 = vld [vmem:[%s1 + $0x48] sm:$0xff]
  %v44 = vld [vmem:[%s1 + $0x50] sm:$0xff]
  %v45 = vld [vmem:[%s1 + $0x58] sm:$0xff]
  %v46 = vld [vmem:[%s1 + $0x60] sm:$0xff]
  %v47 = vld [vmem:[%s1 + $0x68] sm:$0xff]
  %v48 = vld [vmem:[%s1 + $0x70] sm:$0xff]
  %v49 = vld [vmem:[%s1 + $0x78] sm:$0xff]
  %v50 = vld [vmem:[%s1 + $0x80] sm:$0xff]
  %v51 = vld [vmem:[%s1 + $0x88] sm:$0xff]
  %v52 = vld [vmem:[%s1 + $0x90] sm:$0xff]
  %v53 = vld [vmem:[%s1 + $0x98] sm:$0xff]
  %v54 = vld [vmem:[%s1 + $0xa0] sm:$0xff]
  %v55 = vld [vmem:[%s1 + $0xa8] sm:$0xff]
  %v56 = vld [vmem:[%s1 + $0xb0] sm:$0xff]
  %v57 = vld [vmem:[%s1 + $0xb8] sm:$0xff]
  %v58 = vld [vmem:[%s1 + $0xc0] sm:$0xff]
  %v59 = vld [vmem:[%s1 + $0xc8] sm:$0xff]
  %v60 = vld [vmem:[%s1 + $0xd0] sm:$0xff]
  %v61 = vld [vmem:[%s1 + $0xd8] sm:$0xff]
  %v62 = vld [vmem:[%s1 + $0xe0] sm:$0xff]
  %v63 = vld [vmem:[%s1 + $0xe8] sm:$0xff]
  %v64 = vld [vmem:[%s1 + $0xf0] sm:$0xff]
  %v65 = vld [vmem:[%s1 + $0xf8] sm:$0xff]
  %v66 = vld [vmem:[%s1 + $0x100] sm:$0xff]
  %v67 = vld [vmem:[%s1 + $0x108] sm:$0xff]
  %v68 = vld [vmem:[%s1 + $0x110] sm:$0xff]
  %v69 = vld [vmem:[%s1 + $0x118] sm:$0xff]
  %v70 = vld [vmem:[%s1 + $0x120] sm:$0xff]
  %v71 = vld [vmem:[%s1 + $0x128] sm:$0xff]
  %v72 = vld [vmem:[%s1 + $0x130] sm:$0xff]
  %v73 = vld [vmem:[%s1 + $0x138] sm:$0xff]
  %v74 = vld [vmem:[%s1 + $0x140] sm:$0xff]
  %v75 = vld [vmem:[%s1 + $0x148] sm:$0xff]
  %v76 = vld [vmem:[%s1 + $0x150] sm:$0xff]
  %v77 = vld [vmem:[%s1 + $0x158] sm:$0xff]
  %v78 = vld [vmem:[%s1 + $0x160] sm:$0xff]
  %v79 = vld [vmem:[%s1 + $0x168] sm:$0xff]
  %v80 = vld [vmem:[%s1 + $0x170] sm:$0xff]
  %v81 = vld [vmem:[%s1 + $0x178] sm:$0xff]
  %v82 = vld [vmem:[%s1 + $0x180] sm:$0xff]
  %v83 = vld [vmem:[%s1 + $0x188] sm:$0xff]
  %v84 = vld [vmem:[%s1 + $0x190] sm:$0xff]
  %v85 = vld [vmem:[%s1 + $0x198] sm:$0xff]
  %v86 = vld [vmem:[%s1 + $0x1a0] sm:$0xff]
  %v87 = vld [vmem:[%s1 + $0x1a8] sm:$0xff]
  %v88 = vld [vmem:[%s1 + $0x1b0] sm:$0xff]
  %v89 = vld [vmem:[%s1 + $0x1b8] sm:$0xff]
  %v90 = vld [vmem:[%s1 + $0x1c0] sm:$0xff]
  %v91 = vld [vmem:[%s1 + $0x1c8] sm:$0xff]
  %v92 = vld [vmem:[%s1 + $0x1d0] sm:$0xff]
  %v93 = vld [vmem:[%s1 + $0x1d8] sm:$0xff]
  %v94 = vld [vmem:[%s1 + $0x1e0] sm:$0xff]
  %v95 = vld [vmem:[%s1 + $0x1e8] sm:$0xff]
  %v96 = vld [vmem:[%s1 + $0x1f0] sm:$0xff]
  %v97 = vld [vmem:[%s1 + $0x1f8] sm:$0xff]
  %v98 = vld [vmem:[%s1 + $0x200] sm:$0xff]
  %v99 = vld [vmem:[%s1 + $0x208] sm:$0xff]
  %v100 = vld [vmem:[%s1 + $0x210] sm:$0xff]
  %v101 = vld [vmem:[%s1 + $0x218] sm:$0xff]
  %v102 = vld [vmem:[%s1 + $0x220] sm:$0xff]
  %v103 = vld [vmem:[%s1 + $0x228] sm:$0xff]
  %v104 = vld [vmem:[%s1 + $0x230] sm:$0xff]
  %v105 = vld [vmem:[%s1 + $0x238] sm:$0xff]
  %v106 = vld [vmem:[%s1 + $0x240] sm:$0xff]
  %v107 = vld [vmem:[%s1 + $0x248] sm:$0xff]
  %v108 = vld [vmem:[%s1 + $0x250] sm:$0xff]
  %v109 = vld [vmem:[%s1 + $0x258] sm:$0xff]
  %v110 = vld [vmem:[%s1 + $0x260] sm:$0xff]
  %v111 = vld [vmem:[%s1 + $0x268] sm:$0xff]
  %v112 = vld [vmem:[%s1 + $0x270] sm:$0xff]
  %v113 = vld [vmem:[%s1 + $0x278] sm:$0xff]
  %v114 = vld [vmem:[%s1 + $0x280] sm:$0xff]
  %v115 = vld [vmem:[%s1 + $0x288] sm:$0xff]
  %v116 = vld [vmem:[%s1 + $0x290] sm:$0xff]
  %v117 = vld [vmem:[%s1 + $0x298] sm:$0xff]
  %v118 = vld [vmem:[%s1 + $0x2a0] sm:$0xff]
  %v119 = vld [vmem:[%s1 + $0x2a8] sm:$0xff]
  %v120 = vld [vmem:[%s1 + $0x2b0] sm:$0xff]
  %v121 = vld [vmem:[%s1 + $0x2b8] sm:$0xff]
  %v122 = vld [vmem:[%s1 + $0x2c0] sm:$0xff]
  %v123 = vld [vmem:[%s1 + $0x2c8] sm:$0xff]
  %v124 = vld [vmem:[%s1 + $0x2d0] sm:$0xff]
  %v125 = vld [vmem:[%s1 + $0x2d8] sm:$0xff]
  %v126 = vld [vmem:[%s1 + $0x2e0] sm:$0xff]
  %v127 = vld [vmem:[%s1 + $0x2e8] sm:$0xff]
  %v128 = vld [vmem:[%s1 + $0x2f0] sm:$0xff]
  %v129 = vld [vmem:[%s1 + $0x2f8] sm:$0xff]
  %v130 = vld [vmem:[%s1 + $0x300] sm:$0xff]
  %v131 = vld [vmem:[%s1 + $0x308] sm:$0xff]
  %v132 = vld [vmem:[%s1 + $0x310] sm:$0xff]
  %v133 = vld [vmem:[%s1 + $0x318] sm:$0xff]
  %v134 = vld [vmem:[%s1 + $0x320] sm:$0xff]
  %v135 = vld [vmem:[%s1 + $0x328] sm:$0xff]
  %v136 = vld [vmem:[%s1 + $0x330] sm:$0xff]
  %v137 = vld [vmem:[%s1 + $0x338] sm:$0xff]
  %v138 = vld [vmem:[%s1 + $0x340] sm:$0xff]
  %v139 = vld [vmem:[%s1 + $0x348] sm:$0xff]
  %v140 = vld [vmem:[%s1 + $0x350] sm:$0xff]
  %v141 = vld [vmem:[%s1 + $0x358] sm:$0xff]
  %v142 = vld [vmem:[%s1 + $0x360] sm:$0xff]
  %v143 = vld [vmem:[%s1 + $0x368] sm:$0xff]
  %v144 = vld [vmem:[%s1 + $0x370] sm:$0xff]
  %v145 = vld [vmem:[%s1 + $0x378] sm:$0xff]
  %v146 = vld [vmem:[%s1 + $0x380] sm:$0xff]
  %v147 = vld [vmem:[%s1 + $0x388] sm:$0xff]
  %v148 = vld [vmem:[%s1 + $0x390] sm:$0xff]
  %v149 = vld [vmem:[%s1 + $0x398] sm:$0xff]
  %v150 = vld [vmem:[%s1 + $0x3a0] sm:$0xff]
  %v151 = vld [vmem:[%s1 + $0x3a8] sm:$0xff]
  %v152 = vld [vmem:[%s1 + $0x3b0] sm:$0xff]
  %v153 = vld [vmem:[%s1 + $0x3b8] sm:$0xff]
  %v154 = vld [vmem:[%s1 + $0x3c0] sm:$0xff]
  %v155 = vld [vmem:[%s1 + $0x3c8] sm:$0xff]
  %v156 = vld [vmem:[%s1 + $0x3d0] sm:$0xff]
  %v157 = vld [vmem:[%s1 + $0x3d8] sm:$0xff]
  %v158 = vld [vmem:[%s1 + $0x3e0] sm:$0xff]
  %v159 = vld [vmem:[%s1 + $0x3e8] sm:$0xff]
  %v160 = vld [vmem:[%s1 + $0x3f0] sm:$0xff]
  %v161 = vld [vmem:[%s1 + $0x3f8] sm:$0xff]
  %v162 = vld [vmem:[%s1 + $0x400] sm:$0xff]
  %v163 = vld [vmem:[%s1 + $0x408] sm:$0xff]
  %v164 = vld [vmem:[%s1 + $0x410] sm:$0xff]
  %v165 = vld [vmem:[%s1 + $0x418] sm:$0xff]
  %v166 = vld [vmem:[%s1 + $0x420] sm:$0xff]
  %v167 = vld [vmem:[%s1 + $0x428] sm:$0xff]
  %v168 = vld [vmem:[%s1 + $0x430] sm:$0xff]
  %v169 = vld [vmem:[%s1 + $0x438] sm:$0xff]
  %v170 = vld [vmem:[%s1 + $0x440] sm:$0xff]
  %v171 = vld [vmem:[%s1 + $0x448] sm:$0xff]
  %v172 = vld [vmem:[%s1 + $0x450] sm:$0xff]
  %v173 = vld [vmem:[%s1 + $0x458] sm:$0xff]
  %v174 = vld [vmem:[%s1 + $0x460] sm:$0xff]
  %v175 = vld [vmem:[%s1 + $0x468] sm:$0xff]
  %v176 = vld [vmem:[%s1 + $0x470] sm:$0xff]
  %v177 = vld [vmem:[%s1 + $0x478] sm:$0xff]
  %v178 = vld [vmem:[%s1 + $0x480] sm:$0xff]
  %v179 = vld [vmem:[%s1 + $0x488] sm:$0xff]
  %v180 = vld [vmem:[%s1 + $0x490] sm:$0xff]
  %v181 = vld [vmem:[%s1 + $0x498] sm:$0xff]
  %v182 = vld [vmem:[%s1 + $0x4a0] sm:$0xff]
  %v183 = vld [vmem:[%s1 + $0x4a8] sm:$0xff]
  %v184 = vld [vmem:[%s1 + $0x4b0] sm:$0xff]
  %v185 = vld [vmem:[%s1 + $0x4b8] sm:$0xff]
  %v186 = vld [vmem:[%s1 + $0x4c0] sm:$0xff]
  %v187 = vld [vmem:[%s1 + $0x4c8] sm:$0xff]
  %v188 = vld [vmem:[%s1 + $0x4d0] sm:$0xff]
  %v189 = vld [vmem:[%s1 + $0x4d8] sm:$0xff]
  %v190 = vld [vmem:[%s1 + $0x4e0] sm:$0xff]
  %v191 = vld [vmem:[%s1 + $0x4e8] sm:$0xff]
  %v192 = vld [vmem:[%s1 + $0x4f0] sm:$0xff]
  %v193 = vld [vmem:[%s1 + $0x4f8] sm:$0xff]
  %v194 = vld [vmem:[%s1 + $0x500] sm:$0xff]
  %v195 = vld [vmem:[%s1 + $0x508] sm:$0xff]
  %v196 = vld [vmem:[%s1 + $0x510] sm:$0xff]
  %v197 = vld [vmem:[%s1 + $0x518] sm:$0xff]
  %v198 = vld [vmem:[%s1 + $0x520] sm:$0xff]
  %v199 = vld [vmem:[%s1 + $0x528] sm:$0xff]
  %v200 = vld [vmem:[%s1 + $0x530] sm:$0xff]
  %v201 = vld [vmem:[%s1 + $0x538] sm:$0xff]
  %v202 = vld [vmem:[%s1 + $0x540] sm:$0xff]
  %v203 = vld [vmem:[%s1 + $0x548] sm:$0xff]
  %v204 = vld [vmem:[%s1 + $0x550] sm:$0xff]
  %v205 = vld [vmem:[%s1 + $0x558] sm:$0xff]
  %v206 = vld [vmem:[%s1 + $0x560] sm:$0xff]
  %v207 = vld [vmem:[%s1 + $0x568] sm:$0xff]
  %v208 = vld [vmem:[%s1 + $0x570] sm:$0xff]
  %v209 = vld [vmem:[%s1 + $0x578] sm:$0xff]
  %v210 = vld [vmem:[%s1 + $0x580] sm:$0xff]
  %v211 = vld [vmem:[%s1 + $0x588] sm:$0xff]
  %v212 = vld [vmem:[%s1 + $0x590] sm:$0xff]
  %v213 = vld [vmem:[%s1 + $0x598] sm:$0xff]
  %v214 = vld [vmem:[%s1 + $0x5a0] sm:$0xff]
  %v215 = vld [vmem:[%s1 + $0x5a8] sm:$0xff]
  %v216 = vld [vmem:[%s1 + $0x5b0] sm:$0xff]
  %v217 = vld [vmem:[%s1 + $0x5b8] sm:$0xff]
  %v218 = vld [vmem:[%s1 + $0x5c0] sm:$0xff]
  %v219 = vld [vmem:[%s1 + $0x5c8] sm:$0xff]
  %v220 = vld [vmem:[%s1 + $0x5d0] sm:$0xff]
  %v221 = vld [vmem:[%s1 + $0x5d8] sm:$0xff]
  %v222 = vld [vmem:[%s1 + $0x5e0] sm:$0xff]
  %v223 = vld [vmem:[%s1 + $0x5e8] sm:$0xff]
  %v224 = vld [vmem:[%s1 + $0x5f0] sm:$0xff]
  %v225 = vld [vmem:[%s1 + $0x5f8] sm:$0xff]
  %v226 = vld [vmem:[%s1 + $0x600] sm:$0xff]
  %v227 = vld [vmem:[%s1 + $0x608] sm:$0xff]
  %v228 = vld [vmem:[%s1 + $0x610] sm:$0xff]
  %v229 = vld [vmem:[%s1 + $0x618] sm:$0xff]
  %v230 = vld [vmem:[%s1 + $0x620] sm:$0xff]
  %v231 = vld [vmem:[%s1 + $0x628] sm:$0xff]
  %v232 = vld [vmem:[%s1 + $0x630] sm:$0xff]
  %v233 = vld [vmem:[%s1 + $0x638] sm:$0xff]
  %v234 = vld [vmem:[%s1 + $0x640] sm:$0xff]
  %v235 = vld [vmem:[%s1 + $0x648] sm:$0xff]
  %v236 = vld [vmem:[%s1 + $0x650] sm:$0xff]
  %v237 = vld [vmem:[%s1 + $0x658] sm:$0xff]
  %v238 = vld [vmem:[%s1 + $0x660] sm:$0xff]
  %v239 = vld [vmem:[%s1 + $0x668] sm:$0xff]
  %v240 = vld [vmem:[%s1 + $0x670] sm:$0xff]
  %v241 = vld [vmem:[%s1 + $0x678] sm:$0xff]
  %v242 = vld [vmem:[%s1 + $0x680] sm:$0xff]
  %v243 = vld [vmem:[%s1 + $0x688] sm:$0xff]
  %v244 = vld [vmem:[%s1 + $0x690] sm:$0xff]
  %v245 = vld [vmem:[%s1 + $0x698] sm:$0xff]
  %v246 = vld [vmem:[%s1 + $0x6a0] sm:$0xff]
  %v247 = vld [vmem:[%s1 + $0x6a8] sm:$0xff]
  %v248 = vld [vmem:[%s1 + $0x6b0] sm:$0xff]
  %v249 = vld [vmem:[%s1 + $0x6b8] sm:$0xff]
  %v250 = vld [vmem:[%s1 + $0x6c0] sm:$0xff]
  %v251 = vld [vmem:[%s1 + $0x6c8] sm:$0xff]
  %v252 = vld [vmem:[%s1 + $0x6d0] sm:$0xff]
  %v253 = vld [vmem:[%s1 + $0x6d8] sm:$0xff]
  %v254 = vld [vmem:[%s1 + $0x6e0] sm:$0xff]
  %v255 = vld [vmem:[%s1 + $0x6e8] sm:$0xff]
  %v256 = vld [vmem:[%s1 + $0x6f0] sm:$0xff]
  %v257 = vld [vmem:[%s1 + $0x6f8] sm:$0xff]
  %v258 = vld [vmem:[%s1 + $0x700] sm:$0xff]
  %v259 = vld [vmem:[%s1 + $0x708] sm:$0xff]
  %v260 = vld [vmem:[%s1 + $0x710] sm:$0xff]
  %v261 = vld [vmem:[%s1 + $0x718] sm:$0xff]
  %v262 = vld [vmem:[%s1 + $0x720] sm:$0xff]
  %v263 = vld [vmem:[%s1 + $0x728] sm:$0xff]
  %v264 = vld [vmem:[%s1 + $0x730] sm:$0xff]
  %v265 = vld [vmem:[%s1 + $0x738] sm:$0xff]
  %v266 = vld [vmem:[%s1 + $0x740] sm:$0xff]
  %v267 = vld [vmem:[%s1 + $0x748] sm:$0xff]
  %v268 = vld [vmem:[%s1 + $0x750] sm:$0xff]
  %v269 = vld [vmem:[%s1 + $0x758] sm:$0xff]
  %v270 = vld [vmem:[%s1 + $0x760] sm:$0xff]
  %v271 = vld [vmem:[%s1 + $0x768] sm:$0xff]
  %v272 = vld [vmem:[%s1 + $0x770] sm:$0xff]
  %v273 = vld [vmem:[%s1 + $0x778] sm:$0xff]
  %v274 = vld [vmem:[%s1 + $0x780] sm:$0xff]
  %v275 = vld [vmem:[%s1 + $0x788] sm:$0xff]
  %v276 = vld [vmem:[%s1 + $0x790] sm:$0xff]
  %v277 = vld [vmem:[%s1 + $0x798] sm:$0xff]
  %v278 = vld [vmem:[%s1 + $0x7a0] sm:$0xff]
  %v279 = vld [vmem:[%s1 + $0x7a8] sm:$0xff]
  %v280 = vld [vmem:[%s1 + $0x7b0] sm:$0xff]
  %v281 = vld [vmem:[%s1 + $0x7b8] sm:$0xff]
  %v282 = vld [vmem:[%s1 + $0x7c0] sm:$0xff]
  %v283 = vld [vmem:[%s1 + $0x7c8] sm:$0xff]
  %v284 = vld [vmem:[%s1 + $0x7d0] sm:$0xff]
  %v285 = vld [vmem:[%s1 + $0x7d8] sm:$0xff]
  %v286 = vld [vmem:[%s1 + $0x7e0] sm:$0xff]
  %v287 = vld [vmem:[%s1 + $0x7e8] sm:$0xff]
  %v288 = vld [vmem:[%s1 + $0x7f0] sm:$0xff]
  %v289 = vld [vmem:[%s1 + $0x7f8] sm:$0xff]
  %v292 = vcombine.high %v32, %v32
  %v294 = vunpack.c.l.s4 1966171168
  %v295 = vunpack.c.0.s8 %v294
  %v296 = vlaneseq
  %v297 = vshrl.u32 %v296, 7
  %v298 = vsub.s32 %v295, %v297
  %v299 = vrot.slane %v32, %v298
  %v301 = vunpack.c.l.s4 1966171168
  %v302 = vunpack.c.0.s8 %v301
  %v303 = vlaneseq
  %v304 = vshrl.u32 %v303, 7
  %v305 = vsub.s32 %v302, %v304
  %v306 = vrot.slane %v292, %v305
  %v307 = vcombine.high %v299, %v299
  %v308 = vcombine.high %v306, %v306
  %v310 = vunpack.c.l.s4 1966171168
  %v311 = vunpack.c.0.s8 %v310
  %v312 = vlaneseq
  %v313 = vshrl.u32 %v312, 7
  %v314 = vsub.s32 %v311, %v313
  %v315 = vrot.slane %v299, %v314
  %v317 = vunpack.c.l.s4 1966171168
  %v318 = vunpack.c.0.s8 %v317
  %v319 = vlaneseq
  %v320 = vshrl.u32 %v319, 7
  %v321 = vsub.s32 %v318, %v320
  %v322 = vrot.slane %v306, %v321
  %v324 = vunpack.c.l.s4 1966171168
  %v325 = vunpack.c.0.s8 %v324
  %v326 = vlaneseq
  %v327 = vshrl.u32 %v326, 7
  %v328 = vsub.s32 %v325, %v327
  %v329 = vrot.slane %v307, %v328
  %v331 = vunpack.c.l.s4 1966171168
  %v332 = vunpack.c.0.s8 %v331
  %v333 = vlaneseq
  %v334 = vshrl.u32 %v333, 7
  %v335 = vsub.s32 %v332, %v334
  %v336 = vrot.slane %v308, %v335
  %v337 = vcombine.high %v315, %v315
  %v338 = vcombine.high %v322, %v322
  %v339 = vcombine.high %v329, %v329
  %v340 = vcombine.high %v336, %v336
  %v341 = vcombine.high %v33, %v33
  %v343 = vunpack.c.l.s4 1966171168
  %v344 = vunpack.c.0.s8 %v343
  %v345 = vlaneseq
  %v346 = vshrl.u32 %v345, 7
  %v347 = vsub.s32 %v344, %v346
  %v348 = vrot.slane %v33, %v347
  %v350 = vunpack.c.l.s4 1966171168
  %v351 = vunpack.c.0.s8 %v350
  %v352 = vlaneseq
  %v353 = vshrl.u32 %v352, 7
  %v354 = vsub.s32 %v351, %v353
  %v355 = vrot.slane %v341, %v354
  %v356 = vcombine.high %v348, %v348
  %v357 = vcombine.high %v355, %v355
  %v359 = vunpack.c.l.s4 1966171168
  %v360 = vunpack.c.0.s8 %v359
  %v361 = vlaneseq
  %v362 = vshrl.u32 %v361, 7
  %v363 = vsub.s32 %v360, %v362
  %v364 = vrot.slane %v348, %v363
  %v366 = vunpack.c.l.s4 1966171168
  %v367 = vunpack.c.0.s8 %v366
  %v368 = vlaneseq
  %v369 = vshrl.u32 %v368, 7
  %v370 = vsub.s32 %v367, %v369
  %v371 = vrot.slane %v355, %v370
  %v373 = vunpack.c.l.s4 1966171168
  %v374 = vunpack.c.0.s8 %v373
  %v375 = vlaneseq
  %v376 = vshrl.u32 %v375, 7
  %v377 = vsub.s32 %v374, %v376
  %v378 = vrot.slane %v356, %v377
  %v380 = vunpack.c.l.s4 1966171168
  %v381 = vunpack.c.0.s8 %v380
  %v382 = vlaneseq
  %v383 = vshrl.u32 %v382, 7
  %v384 = vsub.s32 %v381, %v383
  %v385 = vrot.slane %v357, %v384
  %v386 = vcombine.high %v364, %v364
  %v387 = vcombine.high %v371, %v371
  %v388 = vcombine.high %v378, %v378
  %v389 = vcombine.high %v385, %v385
  %v662 = vunpack.c.l.b16 %v34
  %v663 = vunpack.c.h.b16 %v34
  %v664 = vunpack.c.l.b16 %v35
  %v665 = vunpack.c.h.b16 %v35
  %v666 = vunpack.c.l.b16 %v36
  %v667 = vunpack.c.h.b16 %v36
  %v668 = vunpack.c.l.b16 %v37
  %v669 = vunpack.c.h.b16 %v37
  %v670 = vunpack.c.l.b16 %v38
  %v671 = vunpack.c.h.b16 %v38
  %v672 = vunpack.c.l.b16 %v39
  %v673 = vunpack.c.h.b16 %v39
  %v674 = vunpack.c.l.b16 %v40
  %v675 = vunpack.c.h.b16 %v40
  %v676 = vunpack.c.l.b16 %v41
  %v677 = vunpack.c.h.b16 %v41
  %v678 = vunpack.c.l.b16 %v42
  %v679 = vunpack.c.h.b16 %v42
  %v680 = vunpack.c.l.b16 %v43
  %v681 = vunpack.c.h.b16 %v43
  %v682 = vunpack.c.l.b16 %v44
  %v683 = vunpack.c.h.b16 %v44
  %v684 = vunpack.c.l.b16 %v45
  %v685 = vunpack.c.h.b16 %v45
  %v686 = vunpack.c.l.b16 %v46
  %v687 = vunpack.c.h.b16 %v46
  %v688 = vunpack.c.l.b16 %v47
  %v689 = vunpack.c.h.b16 %v47
  %v690 = vunpack.c.l.b16 %v48
  %v691 = vunpack.c.h.b16 %v48
  %v692 = vunpack.c.l.b16 %v49
  %v693 = vunpack.c.h.b16 %v49
  %v694 = vunpack.c.l.b16 %v50
  %v695 = vunpack.c.h.b16 %v50
  %v696 = vunpack.c.l.b16 %v51
  %v697 = vunpack.c.h.b16 %v51
  %v698 = vunpack.c.l.b16 %v52
  %v699 = vunpack.c.h.b16 %v52
  %v700 = vunpack.c.l.b16 %v53
  %v701 = vunpack.c.h.b16 %v53
  %v702 = vunpack.c.l.b16 %v54
  %v703 = vunpack.c.h.b16 %v54
  %v704 = vunpack.c.l.b16 %v55
  %v705 = vunpack.c.h.b16 %v55
  %v706 = vunpack.c.l.b16 %v56
  %v707 = vunpack.c.h.b16 %v56
  %v708 = vunpack.c.l.b16 %v57
  %v709 = vunpack.c.h.b16 %v57
  %v710 = vunpack.c.l.b16 %v58
  %v711 = vunpack.c.h.b16 %v58
  %v712 = vunpack.c.l.b16 %v59
  %v713 = vunpack.c.h.b16 %v59
  %v714 = vunpack.c.l.b16 %v60
  %v715 = vunpack.c.h.b16 %v60
  %v716 = vunpack.c.l.b16 %v61
  %v717 = vunpack.c.h.b16 %v61
  %v718 = vunpack.c.l.b16 %v62
  %v719 = vunpack.c.h.b16 %v62
  %v720 = vunpack.c.l.b16 %v63
  %v721 = vunpack.c.h.b16 %v63
  %v722 = vunpack.c.l.b16 %v64
  %v723 = vunpack.c.h.b16 %v64
  %v724 = vunpack.c.l.b16 %v65
  %v725 = vunpack.c.h.b16 %v65
  %v726 = vunpack.c.l.b16 %v66
  %v727 = vunpack.c.h.b16 %v66
  %v728 = vunpack.c.l.b16 %v67
  %v729 = vunpack.c.h.b16 %v67
  %v730 = vunpack.c.l.b16 %v68
  %v731 = vunpack.c.h.b16 %v68
  %v732 = vunpack.c.l.b16 %v69
  %v733 = vunpack.c.h.b16 %v69
  %v734 = vunpack.c.l.b16 %v70
  %v735 = vunpack.c.h.b16 %v70
  %v736 = vunpack.c.l.b16 %v71
  %v737 = vunpack.c.h.b16 %v71
  %v738 = vunpack.c.l.b16 %v72
  %v739 = vunpack.c.h.b16 %v72
  %v740 = vunpack.c.l.b16 %v73
  %v741 = vunpack.c.h.b16 %v73
  %v742 = vunpack.c.l.b16 %v74
  %v743 = vunpack.c.h.b16 %v74
  %v744 = vunpack.c.l.b16 %v75
  %v745 = vunpack.c.h.b16 %v75
  %v746 = vunpack.c.l.b16 %v76
  %v747 = vunpack.c.h.b16 %v76
  %v748 = vunpack.c.l.b16 %v77
  %v749 = vunpack.c.h.b16 %v77
  %v750 = vunpack.c.l.b16 %v78
  %v751 = vunpack.c.h.b16 %v78
  %v752 = vunpack.c.l.b16 %v79
  %v753 = vunpack.c.h.b16 %v79
  %v754 = vunpack.c.l.b16 %v80
  %v755 = vunpack.c.h.b16 %v80
  %v756 = vunpack.c.l.b16 %v81
  %v757 = vunpack.c.h.b16 %v81
  %v758 = vunpack.c.l.b16 %v82
  %v759 = vunpack.c.h.b16 %v82
  %v760 = vunpack.c.l.b16 %v83
  %v761 = vunpack.c.h.b16 %v83
  %v762 = vunpack.c.l.b16 %v84
  %v763 = vunpack.c.h.b16 %v84
  %v764 = vunpack.c.l.b16 %v85
  %v765 = vunpack.c.h.b16 %v85
  %v766 = vunpack.c.l.b16 %v86
  %v767 = vunpack.c.h.b16 %v86
  %v768 = vunpack.c.l.b16 %v87
  %v769 = vunpack.c.h.b16 %v87
  %v770 = vunpack.c.l.b16 %v88
  %v771 = vunpack.c.h.b16 %v88
  %v772 = vunpack.c.l.b16 %v89
  %v773 = vunpack.c.h.b16 %v89
  %v774 = vunpack.c.l.b16 %v90
  %v775 = vunpack.c.h.b16 %v90
  %v776 = vunpack.c.l.b16 %v91
  %v777 = vunpack.c.h.b16 %v91
  %v778 = vunpack.c.l.b16 %v92
  %v779 = vunpack.c.h.b16 %v92
  %v780 = vunpack.c.l.b16 %v93
  %v781 = vunpack.c.h.b16 %v93
  %v782 = vunpack.c.l.b16 %v94
  %v783 = vunpack.c.h.b16 %v94
  %v784 = vunpack.c.l.b16 %v95
  %v785 = vunpack.c.h.b16 %v95
  %v786 = vunpack.c.l.b16 %v96
  %v787 = vunpack.c.h.b16 %v96
  %v788 = vunpack.c.l.b16 %v97
  %v789 = vunpack.c.h.b16 %v97
  %v790 = vunpack.c.l.b16 %v98
  %v791 = vunpack.c.h.b16 %v98
  %v792 = vunpack.c.l.b16 %v99
  %v793 = vunpack.c.h.b16 %v99
  %v794 = vunpack.c.l.b16 %v100
  %v795 = vunpack.c.h.b16 %v100
  %v796 = vunpack.c.l.b16 %v101
  %v797 = vunpack.c.h.b16 %v101
  %v798 = vunpack.c.l.b16 %v102
  %v799 = vunpack.c.h.b16 %v102
  %v800 = vunpack.c.l.b16 %v103
  %v801 = vunpack.c.h.b16 %v103
  %v802 = vunpack.c.l.b16 %v104
  %v803 = vunpack.c.h.b16 %v104
  %v804 = vunpack.c.l.b16 %v105
  %v805 = vunpack.c.h.b16 %v105
  %v806 = vunpack.c.l.b16 %v106
  %v807 = vunpack.c.h.b16 %v106
  %v808 = vunpack.c.l.b16 %v107
  %v809 = vunpack.c.h.b16 %v107
  %v810 = vunpack.c.l.b16 %v108
  %v811 = vunpack.c.h.b16 %v108
  %v812 = vunpack.c.l.b16 %v109
  %v813 = vunpack.c.h.b16 %v109
  %v814 = vunpack.c.l.b16 %v110
  %v815 = vunpack.c.h.b16 %v110
  %v816 = vunpack.c.l.b16 %v111
  %v817 = vunpack.c.h.b16 %v111
  %v818 = vunpack.c.l.b16 %v112
  %v819 = vunpack.c.h.b16 %v112
  %v820 = vunpack.c.l.b16 %v113
  %v821 = vunpack.c.h.b16 %v113
  %v822 = vunpack.c.l.b16 %v114
  %v823 = vunpack.c.h.b16 %v114
  %v824 = vunpack.c.l.b16 %v115
  %v825 = vunpack.c.h.b16 %v115
  %v826 = vunpack.c.l.b16 %v116
  %v827 = vunpack.c.h.b16 %v116
  %v828 = vunpack.c.l.b16 %v117
  %v829 = vunpack.c.h.b16 %v117
  %v830 = vunpack.c.l.b16 %v118
  %v831 = vunpack.c.h.b16 %v118
  %v832 = vunpack.c.l.b16 %v119
  %v833 = vunpack.c.h.b16 %v119
  %v834 = vunpack.c.l.b16 %v120
  %v835 = vunpack.c.h.b16 %v120
  %v836 = vunpack.c.l.b16 %v121
  %v837 = vunpack.c.h.b16 %v121
  %v838 = vunpack.c.l.b16 %v122
  %v839 = vunpack.c.h.b16 %v122
  %v840 = vunpack.c.l.b16 %v123
  %v841 = vunpack.c.h.b16 %v123
  %v842 = vunpack.c.l.b16 %v124
  %v843 = vunpack.c.h.b16 %v124
  %v844 = vunpack.c.l.b16 %v125
  %v845 = vunpack.c.h.b16 %v125
  %v846 = vunpack.c.l.b16 %v126
  %v847 = vunpack.c.h.b16 %v126
  %v848 = vunpack.c.l.b16 %v127
  %v849 = vunpack.c.h.b16 %v127
  %v850 = vunpack.c.l.b16 %v128
  %v851 = vunpack.c.h.b16 %v128
  %v852 = vunpack.c.l.b16 %v129
  %v853 = vunpack.c.h.b16 %v129
  %v854 = vunpack.c.l.b16 %v130
  %v855 = vunpack.c.h.b16 %v130
  %v856 = vunpack.c.l.b16 %v131
  %v857 = vunpack.c.h.b16 %v131
  %v858 = vunpack.c.l.b16 %v132
  %v859 = vunpack.c.h.b16 %v132
  %v860 = vunpack.c.l.b16 %v133
  %v861 = vunpack.c.h.b16 %v133
  %v862 = vunpack.c.l.b16 %v134
  %v863 = vunpack.c.h.b16 %v134
  %v864 = vunpack.c.l.b16 %v135
  %v865 = vunpack.c.h.b16 %v135
  %v866 = vunpack.c.l.b16 %v136
  %v867 = vunpack.c.h.b16 %v136
  %v868 = vunpack.c.l.b16 %v137
  %v869 = vunpack.c.h.b16 %v137
  %v870 = vunpack.c.l.b16 %v138
  %v871 = vunpack.c.h.b16 %v138
  %v872 = vunpack.c.l.b16 %v139
  %v873 = vunpack.c.h.b16 %v139
  %v874 = vunpack.c.l.b16 %v140
  %v875 = vunpack.c.h.b16 %v140
  %v876 = vunpack.c.l.b16 %v141
  %v877 = vunpack.c.h.b16 %v141
  %v878 = vunpack.c.l.b16 %v142
  %v879 = vunpack.c.h.b16 %v142
  %v880 = vunpack.c.l.b16 %v143
  %v881 = vunpack.c.h.b16 %v143
  %v882 = vunpack.c.l.b16 %v144
  %v883 = vunpack.c.h.b16 %v144
  %v884 = vunpack.c.l.b16 %v145
  %v885 = vunpack.c.h.b16 %v145
  %v886 = vunpack.c.l.b16 %v146
  %v887 = vunpack.c.h.b16 %v146
  %v888 = vunpack.c.l.b16 %v147
  %v889 = vunpack.c.h.b16 %v147
  %v890 = vunpack.c.l.b16 %v148
  %v891 = vunpack.c.h.b16 %v148
  %v892 = vunpack.c.l.b16 %v149
  %v893 = vunpack.c.h.b16 %v149
  %v894 = vunpack.c.l.b16 %v150
  %v895 = vunpack.c.h.b16 %v150
  %v896 = vunpack.c.l.b16 %v151
  %v897 = vunpack.c.h.b16 %v151
  %v898 = vunpack.c.l.b16 %v152
  %v899 = vunpack.c.h.b16 %v152
  %v900 = vunpack.c.l.b16 %v153
  %v901 = vunpack.c.h.b16 %v153
  %v902 = vunpack.c.l.b16 %v154
  %v903 = vunpack.c.h.b16 %v154
  %v904 = vunpack.c.l.b16 %v155
  %v905 = vunpack.c.h.b16 %v155
  %v906 = vunpack.c.l.b16 %v156
  %v907 = vunpack.c.h.b16 %v156
  %v908 = vunpack.c.l.b16 %v157
  %v909 = vunpack.c.h.b16 %v157
  %v910 = vunpack.c.l.b16 %v158
  %v911 = vunpack.c.h.b16 %v158
  %v912 = vunpack.c.l.b16 %v159
  %v913 = vunpack.c.h.b16 %v159
  %v914 = vunpack.c.l.b16 %v160
  %v915 = vunpack.c.h.b16 %v160
  %v916 = vunpack.c.l.b16 %v161
  %v917 = vunpack.c.h.b16 %v161
  %v918 = vunpack.c.l.b16 %v162
  %v919 = vunpack.c.h.b16 %v162
  %v920 = vunpack.c.l.b16 %v163
  %v921 = vunpack.c.h.b16 %v163
  %v922 = vunpack.c.l.b16 %v164
  %v923 = vunpack.c.h.b16 %v164
  %v924 = vunpack.c.l.b16 %v165
  %v925 = vunpack.c.h.b16 %v165
  %v926 = vunpack.c.l.b16 %v166
  %v927 = vunpack.c.h.b16 %v166
  %v928 = vunpack.c.l.b16 %v167
  %v929 = vunpack.c.h.b16 %v167
  %v930 = vunpack.c.l.b16 %v168
  %v931 = vunpack.c.h.b16 %v168
  %v932 = vunpack.c.l.b16 %v169
  %v933 = vunpack.c.h.b16 %v169
  %v934 = vunpack.c.l.b16 %v170
  %v935 = vunpack.c.h.b16 %v170
  %v936 = vunpack.c.l.b16 %v171
  %v937 = vunpack.c.h.b16 %v171
  %v938 = vunpack.c.l.b16 %v172
  %v939 = vunpack.c.h.b16 %v172
  %v940 = vunpack.c.l.b16 %v173
  %v941 = vunpack.c.h.b16 %v173
  %v942 = vunpack.c.l.b16 %v174
  %v943 = vunpack.c.h.b16 %v174
  %v944 = vunpack.c.l.b16 %v175
  %v945 = vunpack.c.h.b16 %v175
  %v946 = vunpack.c.l.b16 %v176
  %v947 = vunpack.c.h.b16 %v176
  %v948 = vunpack.c.l.b16 %v177
  %v949 = vunpack.c.h.b16 %v177
  %v950 = vunpack.c.l.b16 %v178
  %v951 = vunpack.c.h.b16 %v178
  %v952 = vunpack.c.l.b16 %v179
  %v953 = vunpack.c.h.b16 %v179
  %v954 = vunpack.c.l.b16 %v180
  %v955 = vunpack.c.h.b16 %v180
  %v956 = vunpack.c.l.b16 %v181
  %v957 = vunpack.c.h.b16 %v181
  %v958 = vunpack.c.l.b16 %v182
  %v959 = vunpack.c.h.b16 %v182
  %v960 = vunpack.c.l.b16 %v183
  %v961 = vunpack.c.h.b16 %v183
  %v962 = vunpack.c.l.b16 %v184
  %v963 = vunpack.c.h.b16 %v184
  %v964 = vunpack.c.l.b16 %v185
  %v965 = vunpack.c.h.b16 %v185
  %v966 = vunpack.c.l.b16 %v186
  %v967 = vunpack.c.h.b16 %v186
  %v968 = vunpack.c.l.b16 %v187
  %v969 = vunpack.c.h.b16 %v187
  %v970 = vunpack.c.l.b16 %v188
  %v971 = vunpack.c.h.b16 %v188
  %v972 = vunpack.c.l.b16 %v189
  %v973 = vunpack.c.h.b16 %v189
  %v974 = vunpack.c.l.b16 %v190
  %v975 = vunpack.c.h.b16 %v190
  %v976 = vunpack.c.l.b16 %v191
  %v977 = vunpack.c.h.b16 %v191
  %v978 = vunpack.c.l.b16 %v192
  %v979 = vunpack.c.h.b16 %v192
  %v980 = vunpack.c.l.b16 %v193
  %v981 = vunpack.c.h.b16 %v193
  %v982 = vunpack.c.l.b16 %v194
  %v983 = vunpack.c.h.b16 %v194
  %v984 = vunpack.c.l.b16 %v195
  %v985 = vunpack.c.h.b16 %v195
  %v986 = vunpack.c.l.b16 %v196
  %v987 = vunpack.c.h.b16 %v196
  %v988 = vunpack.c.l.b16 %v197
  %v989 = vunpack.c.h.b16 %v197
  %v990 = vunpack.c.l.b16 %v198
  %v991 = vunpack.c.h.b16 %v198
  %v992 = vunpack.c.l.b16 %v199
  %v993 = vunpack.c.h.b16 %v199
  %v994 = vunpack.c.l.b16 %v200
  %v995 = vunpack.c.h.b16 %v200
  %v996 = vunpack.c.l.b16 %v201
  %v997 = vunpack.c.h.b16 %v201
  %v998 = vunpack.c.l.b16 %v202
  %v999 = vunpack.c.h.b16 %v202
  %v1000 = vunpack.c.l.b16 %v203
  %v1001 = vunpack.c.h.b16 %v203
  %v1002 = vunpack.c.l.b16 %v204
  %v1003 = vunpack.c.h.b16 %v204
  %v1004 = vunpack.c.l.b16 %v205
  %v1005 = vunpack.c.h.b16 %v205
  %v1006 = vunpack.c.l.b16 %v206
  %v1007 = vunpack.c.h.b16 %v206
  %v1008 = vunpack.c.l.b16 %v207
  %v1009 = vunpack.c.h.b16 %v207
  %v1010 = vunpack.c.l.b16 %v208
  %v1011 = vunpack.c.h.b16 %v208
  %v1012 = vunpack.c.l.b16 %v209
  %v1013 = vunpack.c.h.b16 %v209
  %v1014 = vunpack.c.l.b16 %v210
  %v1015 = vunpack.c.h.b16 %v210
  %v1016 = vunpack.c.l.b16 %v211
  %v1017 = vunpack.c.h.b16 %v211
  %v1018 = vunpack.c.l.b16 %v212
  %v1019 = vunpack.c.h.b16 %v212
  %v1020 = vunpack.c.l.b16 %v213
  %v1021 = vunpack.c.h.b16 %v213
  %v1022 = vunpack.c.l.b16 %v214
  %v1023 = vunpack.c.h.b16 %v214
  %v1024 = vunpack.c.l.b16 %v215
  %v1025 = vunpack.c.h.b16 %v215
  %v1026 = vunpack.c.l.b16 %v216
  %v1027 = vunpack.c.h.b16 %v216
  %v1028 = vunpack.c.l.b16 %v217
  %v1029 = vunpack.c.h.b16 %v217
  %v1030 = vunpack.c.l.b16 %v218
  %v1031 = vunpack.c.h.b16 %v218
  %v1032 = vunpack.c.l.b16 %v219
  %v1033 = vunpack.c.h.b16 %v219
  %v1034 = vunpack.c.l.b16 %v220
  %v1035 = vunpack.c.h.b16 %v220
  %v1036 = vunpack.c.l.b16 %v221
  %v1037 = vunpack.c.h.b16 %v221
  %v1038 = vunpack.c.l.b16 %v222
  %v1039 = vunpack.c.h.b16 %v222
  %v1040 = vunpack.c.l.b16 %v223
  %v1041 = vunpack.c.h.b16 %v223
  %v1042 = vunpack.c.l.b16 %v224
  %v1043 = vunpack.c.h.b16 %v224
  %v1044 = vunpack.c.l.b16 %v225
  %v1045 = vunpack.c.h.b16 %v225
  %v1046 = vunpack.c.l.b16 %v226
  %v1047 = vunpack.c.h.b16 %v226
  %v1048 = vunpack.c.l.b16 %v227
  %v1049 = vunpack.c.h.b16 %v227
  %v1050 = vunpack.c.l.b16 %v228
  %v1051 = vunpack.c.h.b16 %v228
  %v1052 = vunpack.c.l.b16 %v229
  %v1053 = vunpack.c.h.b16 %v229
  %v1054 = vunpack.c.l.b16 %v230
  %v1055 = vunpack.c.h.b16 %v230
  %v1056 = vunpack.c.l.b16 %v231
  %v1057 = vunpack.c.h.b16 %v231
  %v1058 = vunpack.c.l.b16 %v232
  %v1059 = vunpack.c.h.b16 %v232
  %v1060 = vunpack.c.l.b16 %v233
  %v1061 = vunpack.c.h.b16 %v233
  %v1062 = vunpack.c.l.b16 %v234
  %v1063 = vunpack.c.h.b16 %v234
  %v1064 = vunpack.c.l.b16 %v235
  %v1065 = vunpack.c.h.b16 %v235
  %v1066 = vunpack.c.l.b16 %v236
  %v1067 = vunpack.c.h.b16 %v236
  %v1068 = vunpack.c.l.b16 %v237
  %v1069 = vunpack.c.h.b16 %v237
  %v1070 = vunpack.c.l.b16 %v238
  %v1071 = vunpack.c.h.b16 %v238
  %v1072 = vunpack.c.l.b16 %v239
  %v1073 = vunpack.c.h.b16 %v239
  %v1074 = vunpack.c.l.b16 %v240
  %v1075 = vunpack.c.h.b16 %v240
  %v1076 = vunpack.c.l.b16 %v241
  %v1077 = vunpack.c.h.b16 %v241
  %v1078 = vunpack.c.l.b16 %v242
  %v1079 = vunpack.c.h.b16 %v242
  %v1080 = vunpack.c.l.b16 %v243
  %v1081 = vunpack.c.h.b16 %v243
  %v1082 = vunpack.c.l.b16 %v244
  %v1083 = vunpack.c.h.b16 %v244
  %v1084 = vunpack.c.l.b16 %v245
  %v1085 = vunpack.c.h.b16 %v245
  %v1086 = vunpack.c.l.b16 %v246
  %v1087 = vunpack.c.h.b16 %v246
  %v1088 = vunpack.c.l.b16 %v247
  %v1089 = vunpack.c.h.b16 %v247
  %v1090 = vunpack.c.l.b16 %v248
  %v1091 = vunpack.c.h.b16 %v248
  %v1092 = vunpack.c.l.b16 %v249
  %v1093 = vunpack.c.h.b16 %v249
  %v1094 = vunpack.c.l.b16 %v250
  %v1095 = vunpack.c.h.b16 %v250
  %v1096 = vunpack.c.l.b16 %v251
  %v1097 = vunpack.c.h.b16 %v251
  %v1098 = vunpack.c.l.b16 %v252
  %v1099 = vunpack.c.h.b16 %v252
  %v1100 = vunpack.c.l.b16 %v253
  %v1101 = vunpack.c.h.b16 %v253
  %v1102 = vunpack.c.l.b16 %v254
  %v1103 = vunpack.c.h.b16 %v254
  %v1104 = vunpack.c.l.b16 %v255
  %v1105 = vunpack.c.h.b16 %v255
  %v1106 = vunpack.c.l.b16 %v256
  %v1107 = vunpack.c.h.b16 %v256
  %v1108 = vunpack.c.l.b16 %v257
  %v1109 = vunpack.c.h.b16 %v257
  %v1110 = vunpack.c.l.b16 %v258
  %v1111 = vunpack.c.h.b16 %v258
  %v1112 = vunpack.c.l.b16 %v259
  %v1113 = vunpack.c.h.b16 %v259
  %v1114 = vunpack.c.l.b16 %v260
  %v1115 = vunpack.c.h.b16 %v260
  %v1116 = vunpack.c.l.b16 %v261
  %v1117 = vunpack.c.h.b16 %v261
  %v1118 = vunpack.c.l.b16 %v262
  %v1119 = vunpack.c.h.b16 %v262
  %v1120 = vunpack.c.l.b16 %v263
  %v1121 = vunpack.c.h.b16 %v263
  %v1122 = vunpack.c.l.b16 %v264
  %v1123 = vunpack.c.h.b16 %v264
  %v1124 = vunpack.c.l.b16 %v265
  %v1125 = vunpack.c.h.b16 %v265
  %v1126 = vunpack.c.l.b16 %v266
  %v1127 = vunpack.c.h.b16 %v266
  %v1128 = vunpack.c.l.b16 %v267
  %v1129 = vunpack.c.h.b16 %v267
  %v1130 = vunpack.c.l.b16 %v268
  %v1131 = vunpack.c.h.b16 %v268
  %v1132 = vunpack.c.l.b16 %v269
  %v1133 = vunpack.c.h.b16 %v269
  %v1134 = vunpack.c.l.b16 %v270
  %v1135 = vunpack.c.h.b16 %v270
  %v1136 = vunpack.c.l.b16 %v271
  %v1137 = vunpack.c.h.b16 %v271
  %v1138 = vunpack.c.l.b16 %v272
  %v1139 = vunpack.c.h.b16 %v272
  %v1140 = vunpack.c.l.b16 %v273
  %v1141 = vunpack.c.h.b16 %v273
  %v1142 = vunpack.c.l.b16 %v274
  %v1143 = vunpack.c.h.b16 %v274
  %v1144 = vunpack.c.l.b16 %v275
  %v1145 = vunpack.c.h.b16 %v275
  %v1146 = vunpack.c.l.b16 %v276
  %v1147 = vunpack.c.h.b16 %v276
  %v1148 = vunpack.c.l.b16 %v277
  %v1149 = vunpack.c.h.b16 %v277
  %v1150 = vunpack.c.l.b16 %v278
  %v1151 = vunpack.c.h.b16 %v278
  %v1152 = vunpack.c.l.b16 %v279
  %v1153 = vunpack.c.h.b16 %v279
  %v1154 = vunpack.c.l.b16 %v280
  %v1155 = vunpack.c.h.b16 %v280
  %v1156 = vunpack.c.l.b16 %v281
  %v1157 = vunpack.c.h.b16 %v281
  %v1158 = vunpack.c.l.b16 %v282
  %v1159 = vunpack.c.h.b16 %v282
  %v1160 = vunpack.c.l.b16 %v283
  %v1161 = vunpack.c.h.b16 %v283
  %v1162 = vunpack.c.l.b16 %v284
  %v1163 = vunpack.c.h.b16 %v284
  %v1164 = vunpack.c.l.b16 %v285
  %v1165 = vunpack.c.h.b16 %v285
  %v1166 = vunpack.c.l.b16 %v286
  %v1167 = vunpack.c.h.b16 %v286
  %v1168 = vunpack.c.l.b16 %v287
  %v1169 = vunpack.c.h.b16 %v287
  %v1170 = vunpack.c.l.b16 %v288
  %v1171 = vunpack.c.h.b16 %v288
  %v1172 = vunpack.c.l.b16 %v289
  %v1173 = vunpack.c.h.b16 %v289
  %v1174 = vpack.c.b16 %v664, %v662
  %v1175 = vpack.c.b16 %v665, %v663
  %v1176 = vpack.c.b16 %v668, %v666
  %v1177 = vpack.c.b16 %v669, %v667
  %v1178 = vpack.c.b16 %v672, %v670
  %v1179 = vpack.c.b16 %v673, %v671
  %v1180 = vpack.c.b16 %v676, %v674
  %v1181 = vpack.c.b16 %v677, %v675
  %v1182 = vpack.c.b16 %v680, %v678
  %v1183 = vpack.c.b16 %v681, %v679
  %v1184 = vpack.c.b16 %v684, %v682
  %v1185 = vpack.c.b16 %v685, %v683
  %v1186 = vpack.c.b16 %v688, %v686
  %v1187 = vpack.c.b16 %v689, %v687
  %v1188 = vpack.c.b16 %v692, %v690
  %v1189 = vpack.c.b16 %v693, %v691
  %v1190 = vpack.c.b16 %v696, %v694
  %v1191 = vpack.c.b16 %v697, %v695
  %v1192 = vpack.c.b16 %v700, %v698
  %v1193 = vpack.c.b16 %v701, %v699
  %v1194 = vpack.c.b16 %v704, %v702
  %v1195 = vpack.c.b16 %v705, %v703
  %v1196 = vpack.c.b16 %v708, %v706
  %v1197 = vpack.c.b16 %v709, %v707
  %v1198 = vpack.c.b16 %v712, %v710
  %v1199 = vpack.c.b16 %v713, %v711
  %v1200 = vpack.c.b16 %v716, %v714
  %v1201 = vpack.c.b16 %v717, %v715
  %v1202 = vpack.c.b16 %v720, %v718
  %v1203 = vpack.c.b16 %v721, %v719
  %v1204 = vpack.c.b16 %v724, %v722
  %v1205 = vpack.c.b16 %v725, %v723
  %v1206 = vpack.c.b16 %v728, %v726
  %v1207 = vpack.c.b16 %v729, %v727
  %v1208 = vpack.c.b16 %v732, %v730
  %v1209 = vpack.c.b16 %v733, %v731
  %v1210 = vpack.c.b16 %v736, %v734
  %v1211 = vpack.c.b16 %v737, %v735
  %v1212 = vpack.c.b16 %v740, %v738
  %v1213 = vpack.c.b16 %v741, %v739
  %v1214 = vpack.c.b16 %v744, %v742
  %v1215 = vpack.c.b16 %v745, %v743
  %v1216 = vpack.c.b16 %v748, %v746
  %v1217 = vpack.c.b16 %v749, %v747
  %v1218 = vpack.c.b16 %v752, %v750
  %v1219 = vpack.c.b16 %v753, %v751
  %v1220 = vpack.c.b16 %v756, %v754
  %v1221 = vpack.c.b16 %v757, %v755
  %v1222 = vpack.c.b16 %v760, %v758
  %v1223 = vpack.c.b16 %v761, %v759
  %v1224 = vpack.c.b16 %v764, %v762
  %v1225 = vpack.c.b16 %v765, %v763
  %v1226 = vpack.c.b16 %v768, %v766
  %v1227 = vpack.c.b16 %v769, %v767
  %v1228 = vpack.c.b16 %v772, %v770
  %v1229 = vpack.c.b16 %v773, %v771
  %v1230 = vpack.c.b16 %v776, %v774
  %v1231 = vpack.c.b16 %v777, %v775
  %v1232 = vpack.c.b16 %v780, %v778
  %v1233 = vpack.c.b16 %v781, %v779
  %v1234 = vpack.c.b16 %v784, %v782
  %v1235 = vpack.c.b16 %v785, %v783
  %v1236 = vpack.c.b16 %v788, %v786
  %v1237 = vpack.c.b16 %v789, %v787
  %v1238 = vpack.c.b16 %v792, %v790
  %v1239 = vpack.c.b16 %v793, %v791
  %v1240 = vpack.c.b16 %v796, %v794
  %v1241 = vpack.c.b16 %v797, %v795
  %v1242 = vpack.c.b16 %v800, %v798
  %v1243 = vpack.c.b16 %v801, %v799
  %v1244 = vpack.c.b16 %v804, %v802
  %v1245 = vpack.c.b16 %v805, %v803
  %v1246 = vpack.c.b16 %v808, %v806
  %v1247 = vpack.c.b16 %v809, %v807
  %v1248 = vpack.c.b16 %v812, %v810
  %v1249 = vpack.c.b16 %v813, %v811
  %v1250 = vpack.c.b16 %v816, %v814
  %v1251 = vpack.c.b16 %v817, %v815
  %v1252 = vpack.c.b16 %v820, %v818
  %v1253 = vpack.c.b16 %v821, %v819
  %v1254 = vpack.c.b16 %v824, %v822
  %v1255 = vpack.c.b16 %v825, %v823
  %v1256 = vpack.c.b16 %v828, %v826
  %v1257 = vpack.c.b16 %v829, %v827
  %v1258 = vpack.c.b16 %v832, %v830
  %v1259 = vpack.c.b16 %v833, %v831
  %v1260 = vpack.c.b16 %v836, %v834
  %v1261 = vpack.c.b16 %v837, %v835
  %v1262 = vpack.c.b16 %v840, %v838
  %v1263 = vpack.c.b16 %v841, %v839
  %v1264 = vpack.c.b16 %v844, %v842
  %v1265 = vpack.c.b16 %v845, %v843
  %v1266 = vpack.c.b16 %v848, %v846
  %v1267 = vpack.c.b16 %v849, %v847
  %v1268 = vpack.c.b16 %v852, %v850
  %v1269 = vpack.c.b16 %v853, %v851
  %v1270 = vpack.c.b16 %v856, %v854
  %v1271 = vpack.c.b16 %v857, %v855
  %v1272 = vpack.c.b16 %v860, %v858
  %v1273 = vpack.c.b16 %v861, %v859
  %v1274 = vpack.c.b16 %v864, %v862
  %v1275 = vpack.c.b16 %v865, %v863
  %v1276 = vpack.c.b16 %v868, %v866
  %v1277 = vpack.c.b16 %v869, %v867
  %v1278 = vpack.c.b16 %v872, %v870
  %v1279 = vpack.c.b16 %v873, %v871
  %v1280 = vpack.c.b16 %v876, %v874
  %v1281 = vpack.c.b16 %v877, %v875
  %v1282 = vpack.c.b16 %v880, %v878
  %v1283 = vpack.c.b16 %v881, %v879
  %v1284 = vpack.c.b16 %v884, %v882
  %v1285 = vpack.c.b16 %v885, %v883
  %v1286 = vpack.c.b16 %v888, %v886
  %v1287 = vpack.c.b16 %v889, %v887
  %v1288 = vpack.c.b16 %v892, %v890
  %v1289 = vpack.c.b16 %v893, %v891
  %v1290 = vpack.c.b16 %v896, %v894
  %v1291 = vpack.c.b16 %v897, %v895
  %v1292 = vpack.c.b16 %v900, %v898
  %v1293 = vpack.c.b16 %v901, %v899
  %v1294 = vpack.c.b16 %v904, %v902
  %v1295 = vpack.c.b16 %v905, %v903
  %v1296 = vpack.c.b16 %v908, %v906
  %v1297 = vpack.c.b16 %v909, %v907
  %v1298 = vpack.c.b16 %v912, %v910
  %v1299 = vpack.c.b16 %v913, %v911
  %v1300 = vpack.c.b16 %v916, %v914
  %v1301 = vpack.c.b16 %v917, %v915
  %v1302 = vpack.c.b16 %v920, %v918
  %v1303 = vpack.c.b16 %v921, %v919
  %v1304 = vpack.c.b16 %v924, %v922
  %v1305 = vpack.c.b16 %v925, %v923
  %v1306 = vpack.c.b16 %v928, %v926
  %v1307 = vpack.c.b16 %v929, %v927
  %v1308 = vpack.c.b16 %v932, %v930
  %v1309 = vpack.c.b16 %v933, %v931
  %v1310 = vpack.c.b16 %v936, %v934
  %v1311 = vpack.c.b16 %v937, %v935
  %v1312 = vpack.c.b16 %v940, %v938
  %v1313 = vpack.c.b16 %v941, %v939
  %v1314 = vpack.c.b16 %v944, %v942
  %v1315 = vpack.c.b16 %v945, %v943
  %v1316 = vpack.c.b16 %v948, %v946
  %v1317 = vpack.c.b16 %v949, %v947
  %v1318 = vpack.c.b16 %v952, %v950
  %v1319 = vpack.c.b16 %v953, %v951
  %v1320 = vpack.c.b16 %v956, %v954
  %v1321 = vpack.c.b16 %v957, %v955
  %v1322 = vpack.c.b16 %v960, %v958
  %v1323 = vpack.c.b16 %v961, %v959
  %v1324 = vpack.c.b16 %v964, %v962
  %v1325 = vpack.c.b16 %v965, %v963
  %v1326 = vpack.c.b16 %v968, %v966
  %v1327 = vpack.c.b16 %v969, %v967
  %v1328 = vpack.c.b16 %v972, %v970
  %v1329 = vpack.c.b16 %v973, %v971
  %v1330 = vpack.c.b16 %v976, %v974
  %v1331 = vpack.c.b16 %v977, %v975
  %v1332 = vpack.c.b16 %v980, %v978
  %v1333 = vpack.c.b16 %v981, %v979
  %v1334 = vpack.c.b16 %v984, %v982
  %v1335 = vpack.c.b16 %v985, %v983
  %v1336 = vpack.c.b16 %v988, %v986
  %v1337 = vpack.c.b16 %v989, %v987
  %v1338 = vpack.c.b16 %v992, %v990
  %v1339 = vpack.c.b16 %v993, %v991
  %v1340 = vpack.c.b16 %v996, %v994
  %v1341 = vpack.c.b16 %v997, %v995
  %v1342 = vpack.c.b16 %v1000, %v998
  %v1343 = vpack.c.b16 %v1001, %v999
  %v1344 = vpack.c.b16 %v1004, %v1002
  %v1345 = vpack.c.b16 %v1005, %v1003
  %v1346 = vpack.c.b16 %v1008, %v1006
  %v1347 = vpack.c.b16 %v1009, %v1007
  %v1348 = vpack.c.b16 %v1012, %v1010
  %v1349 = vpack.c.b16 %v1013, %v1011
  %v1350 = vpack.c.b16 %v1016, %v1014
  %v1351 = vpack.c.b16 %v1017, %v1015
  %v1352 = vpack.c.b16 %v1020, %v1018
  %v1353 = vpack.c.b16 %v1021, %v1019
  %v1354 = vpack.c.b16 %v1024, %v1022
  %v1355 = vpack.c.b16 %v1025, %v1023
  %v1356 = vpack.c.b16 %v1028, %v1026
  %v1357 = vpack.c.b16 %v1029, %v1027
  %v1358 = vpack.c.b16 %v1032, %v1030
  %v1359 = vpack.c.b16 %v1033, %v1031
  %v1360 = vpack.c.b16 %v1036, %v1034
  %v1361 = vpack.c.b16 %v1037, %v1035
  %v1362 = vpack.c.b16 %v1040, %v1038
  %v1363 = vpack.c.b16 %v1041, %v1039
  %v1364 = vpack.c.b16 %v1044, %v1042
  %v1365 = vpack.c.b16 %v1045, %v1043
  %v1366 = vpack.c.b16 %v1048, %v1046
  %v1367 = vpack.c.b16 %v1049, %v1047
  %v1368 = vpack.c.b16 %v1052, %v1050
  %v1369 = vpack.c.b16 %v1053, %v1051
  %v1370 = vpack.c.b16 %v1056, %v1054
  %v1371 = vpack.c.b16 %v1057, %v1055
  %v1372 = vpack.c.b16 %v1060, %v1058
  %v1373 = vpack.c.b16 %v1061, %v1059
  %v1374 = vpack.c.b16 %v1064, %v1062
  %v1375 = vpack.c.b16 %v1065, %v1063
  %v1376 = vpack.c.b16 %v1068, %v1066
  %v1377 = vpack.c.b16 %v1069, %v1067
  %v1378 = vpack.c.b16 %v1072, %v1070
  %v1379 = vpack.c.b16 %v1073, %v1071
  %v1380 = vpack.c.b16 %v1076, %v1074
  %v1381 = vpack.c.b16 %v1077, %v1075
  %v1382 = vpack.c.b16 %v1080, %v1078
  %v1383 = vpack.c.b16 %v1081, %v1079
  %v1384 = vpack.c.b16 %v1084, %v1082
  %v1385 = vpack.c.b16 %v1085, %v1083
  %v1386 = vpack.c.b16 %v1088, %v1086
  %v1387 = vpack.c.b16 %v1089, %v1087
  %v1388 = vpack.c.b16 %v1092, %v1090
  %v1389 = vpack.c.b16 %v1093, %v1091
  %v1390 = vpack.c.b16 %v1096, %v1094
  %v1391 = vpack.c.b16 %v1097, %v1095
  %v1392 = vpack.c.b16 %v1100, %v1098
  %v1393 = vpack.c.b16 %v1101, %v1099
  %v1394 = vpack.c.b16 %v1104, %v1102
  %v1395 = vpack.c.b16 %v1105, %v1103
  %v1396 = vpack.c.b16 %v1108, %v1106
  %v1397 = vpack.c.b16 %v1109, %v1107
  %v1398 = vpack.c.b16 %v1112, %v1110
  %v1399 = vpack.c.b16 %v1113, %v1111
  %v1400 = vpack.c.b16 %v1116, %v1114
  %v1401 = vpack.c.b16 %v1117, %v1115
  %v1402 = vpack.c.b16 %v1120, %v1118
  %v1403 = vpack.c.b16 %v1121, %v1119
  %v1404 = vpack.c.b16 %v1124, %v1122
  %v1405 = vpack.c.b16 %v1125, %v1123
  %v1406 = vpack.c.b16 %v1128, %v1126
  %v1407 = vpack.c.b16 %v1129, %v1127
  %v1408 = vpack.c.b16 %v1132, %v1130
  %v1409 = vpack.c.b16 %v1133, %v1131
  %v1410 = vpack.c.b16 %v1136, %v1134
  %v1411 = vpack.c.b16 %v1137, %v1135
  %v1412 = vpack.c.b16 %v1140, %v1138
  %v1413 = vpack.c.b16 %v1141, %v1139
  %v1414 = vpack.c.b16 %v1144, %v1142
  %v1415 = vpack.c.b16 %v1145, %v1143
  %v1416 = vpack.c.b16 %v1148, %v1146
  %v1417 = vpack.c.b16 %v1149, %v1147
  %v1418 = vpack.c.b16 %v1152, %v1150
  %v1419 = vpack.c.b16 %v1153, %v1151
  %v1420 = vpack.c.b16 %v1156, %v1154
  %v1421 = vpack.c.b16 %v1157, %v1155
  %v1422 = vpack.c.b16 %v1160, %v1158
  %v1423 = vpack.c.b16 %v1161, %v1159
  %v1424 = vpack.c.b16 %v1164, %v1162
  %v1425 = vpack.c.b16 %v1165, %v1163
  %v1426 = vpack.c.b16 %v1168, %v1166
  %v1427 = vpack.c.b16 %v1169, %v1167
  %v1428 = vpack.c.b16 %v1172, %v1170
  %v1429 = vpack.c.b16 %v1173, %v1171
  %1686 = vmatprep.subr.bf16.mxu0 %v1189
  %1687 = vmatpush1.bf16.msra.mxu0 %v1188
  %1688 = vmatprep.subr.bf16.mxu0 %v1187
  %1689 = vmatpush1.bf16.msra.mxu0 %v1186
  %1690 = vmatprep.subr.bf16.mxu0 %v1185
  %1691 = vmatpush1.bf16.msra.mxu0 %v1184
  %1692 = vmatprep.subr.bf16.mxu0 %v1183
  %1693 = vmatpush1.bf16.msra.mxu0 %v1182
  %1694 = vmatprep.subr.bf16.mxu0 %v1181
  %1695 = vmatpush1.bf16.msra.mxu0 %v1180
  %1696 = vmatprep.subr.bf16.mxu0 %v1179
  %1697 = vmatpush1.bf16.msra.mxu0 %v1178
  %1698 = vmatprep.subr.bf16.mxu0 %v1177
  %1699 = vmatpush1.bf16.msra.mxu0 %v1176
  %1700 = vmatprep.subr.bf16.mxu0 %v1175
  %1701 = vmatpush1.bf16.msra.mxu0 %v1174
  %1702 = vmatprep.subr.bf16.mxu0 %v1205
  %1703 = vmatpush2.bf16.msra.mxu0 %v1204
  %1704 = vmatprep.subr.bf16.mxu0 %v1203
  %1705 = vmatpush2.bf16.msra.mxu0 %v1202
  %1706 = vmatprep.subr.bf16.mxu0 %v1201
  %1707 = vmatpush2.bf16.msra.mxu0 %v1200
  %1708 = vmatprep.subr.bf16.mxu0 %v1199
  %1709 = vmatpush2.bf16.msra.mxu0 %v1198
  %1710 = vmatprep.subr.bf16.mxu0 %v1197
  %1711 = vmatpush2.bf16.msra.mxu0 %v1196
  %1712 = vmatprep.subr.bf16.mxu0 %v1195
  %1713 = vmatpush2.bf16.msra.mxu0 %v1194
  %1714 = vmatprep.subr.bf16.mxu0 %v1193
  %1715 = vmatpush2.bf16.msra.mxu0 %v1192
  %1716 = vmatprep.subr.bf16.mxu0 %v1191
  %1717 = vmatpush2.bf16.msra.mxu0 %v1190
  %1718 = vmatprep.mubr.bf16.mxu0 %v329
  %1719 = vmatmul.mubr.bf16.gmra.mxu0 %v315
  %v1720 = vpop.f32.mrf.mxu0
  %v1721 = vadd.f32 0.0, %v1720
  %v1722 = vpop.f32.mrf.mxu0
  %v1723 = vadd.f32 0.0, %v1722
  %v1724 = vpop.f32.mrf.mxu0
  %v1725 = vpop.f32.mrf.mxu0
  %1726 = vdwg.mxu0
  %1727 = vmatprep.subr.bf16.mxu0 %v1221
  %1728 = vmatpush1.bf16.msra.mxu0 %v1220
  %1729 = vmatprep.subr.bf16.mxu0 %v1219
  %1730 = vmatpush1.bf16.msra.mxu0 %v1218
  %1731 = vmatprep.subr.bf16.mxu0 %v1217
  %1732 = vmatpush1.bf16.msra.mxu0 %v1216
  %1733 = vmatprep.subr.bf16.mxu0 %v1215
  %1734 = vmatpush1.bf16.msra.mxu0 %v1214
  %1735 = vmatprep.subr.bf16.mxu0 %v1213
  %1736 = vmatpush1.bf16.msra.mxu0 %v1212
  %1737 = vmatprep.subr.bf16.mxu0 %v1211
  %1738 = vmatpush1.bf16.msra.mxu0 %v1210
  %1739 = vmatprep.subr.bf16.mxu0 %v1209
  %1740 = vmatpush1.bf16.msra.mxu0 %v1208
  %1741 = vmatprep.subr.bf16.mxu0 %v1207
  %1742 = vmatpush1.bf16.msra.mxu0 %v1206
  %1743 = vmatprep.subr.bf16.mxu0 %v1237
  %1744 = vmatpush2.bf16.msra.mxu0 %v1236
  %1745 = vmatprep.subr.bf16.mxu0 %v1235
  %1746 = vmatpush2.bf16.msra.mxu0 %v1234
  %1747 = vmatprep.subr.bf16.mxu0 %v1233
  %1748 = vmatpush2.bf16.msra.mxu0 %v1232
  %1749 = vmatprep.subr.bf16.mxu0 %v1231
  %1750 = vmatpush2.bf16.msra.mxu0 %v1230
  %1751 = vmatprep.subr.bf16.mxu0 %v1229
  %1752 = vmatpush2.bf16.msra.mxu0 %v1228
  %1753 = vmatprep.subr.bf16.mxu0 %v1227
  %1754 = vmatpush2.bf16.msra.mxu0 %v1226
  %1755 = vmatprep.subr.bf16.mxu0 %v1225
  %1756 = vmatpush2.bf16.msra.mxu0 %v1224
  %1757 = vmatprep.subr.bf16.mxu0 %v1223
  %1758 = vmatpush2.bf16.msra.mxu0 %v1222
  %1759 = vmatprep.mubr.bf16.mxu0 %v339
  %1760 = vmatmul.mubr.bf16.gmra.mxu0 %v337
  %v1761 = vpop.f32.mrf.mxu0
  %v1762 = vadd.f32 %v1721, %v1761
  %v1763 = vpop.f32.mrf.mxu0
  %v1764 = vadd.f32 %v1723, %v1763
  %v1765 = vpop.f32.mrf.mxu0
  %v1766 = vpop.f32.mrf.mxu0
  %1767 = vdwg.mxu0
  %1768 = vmatprep.subr.bf16.mxu0 %v1253
  %1769 = vmatpush1.bf16.msra.mxu0 %v1252
  %1770 = vmatprep.subr.bf16.mxu0 %v1251
  %1771 = vmatpush1.bf16.msra.mxu0 %v1250
  %1772 = vmatprep.subr.bf16.mxu0 %v1249
  %1773 = vmatpush1.bf16.msra.mxu0 %v1248
  %1774 = vmatprep.subr.bf16.mxu0 %v1247
  %1775 = vmatpush1.bf16.msra.mxu0 %v1246
  %1776 = vmatprep.subr.bf16.mxu0 %v1245
  %1777 = vmatpush1.bf16.msra.mxu0 %v1244
  %1778 = vmatprep.subr.bf16.mxu0 %v1243
  %1779 = vmatpush1.bf16.msra.mxu0 %v1242
  %1780 = vmatprep.subr.bf16.mxu0 %v1241
  %1781 = vmatpush1.bf16.msra.mxu0 %v1240
  %1782 = vmatprep.subr.bf16.mxu0 %v1239
  %1783 = vmatpush1.bf16.msra.mxu0 %v1238
  %1784 = vmatprep.subr.bf16.mxu0 %v1269
  %1785 = vmatpush2.bf16.msra.mxu0 %v1268
  %1786 = vmatprep.subr.bf16.mxu0 %v1267
  %1787 = vmatpush2.bf16.msra.mxu0 %v1266
  %1788 = vmatprep.subr.bf16.mxu0 %v1265
  %1789 = vmatpush2.bf16.msra.mxu0 %v1264
  %1790 = vmatprep.subr.bf16.mxu0 %v1263
  %1791 = vmatpush2.bf16.msra.mxu0 %v1262
  %1792 = vmatprep.subr.bf16.mxu0 %v1261
  %1793 = vmatpush2.bf16.msra.mxu0 %v1260
  %1794 = vmatprep.subr.bf16.mxu0 %v1259
  %1795 = vmatpush2.bf16.msra.mxu0 %v1258
  %1796 = vmatprep.subr.bf16.mxu0 %v1257
  %1797 = vmatpush2.bf16.msra.mxu0 %v1256
  %1798 = vmatprep.subr.bf16.mxu0 %v1255
  %1799 = vmatpush2.bf16.msra.mxu0 %v1254
  %1800 = vmatprep.mubr.bf16.mxu0 %v336
  %1801 = vmatmul.mubr.bf16.gmra.mxu0 %v322
  %v1802 = vpop.f32.mrf.mxu0
  %v1803 = vadd.f32 %v1762, %v1802
  %v1804 = vpop.f32.mrf.mxu0
  %v1805 = vadd.f32 %v1764, %v1804
  %v1806 = vpop.f32.mrf.mxu0
  %v1807 = vpop.f32.mrf.mxu0
  %1808 = vdwg.mxu0
  %1809 = vmatprep.subr.bf16.mxu0 %v1285
  %1810 = vmatpush1.bf16.msra.mxu0 %v1284
  %1811 = vmatprep.subr.bf16.mxu0 %v1283
  %1812 = vmatpush1.bf16.msra.mxu0 %v1282
  %1813 = vmatprep.subr.bf16.mxu0 %v1281
  %1814 = vmatpush1.bf16.msra.mxu0 %v1280
  %1815 = vmatprep.subr.bf16.mxu0 %v1279
  %1816 = vmatpush1.bf16.msra.mxu0 %v1278
  %1817 = vmatprep.subr.bf16.mxu0 %v1277
  %1818 = vmatpush1.bf16.msra.mxu0 %v1276
  %1819 = vmatprep.subr.bf16.mxu0 %v1275
  %1820 = vmatpush1.bf16.msra.mxu0 %v1274
  %1821 = vmatprep.subr.bf16.mxu0 %v1273
  %1822 = vmatpush1.bf16.msra.mxu0 %v1272
  %1823 = vmatprep.subr.bf16.mxu0 %v1271
  %1824 = vmatpush1.bf16.msra.mxu0 %v1270
  %1825 = vmatprep.subr.bf16.mxu0 %v1301
  %1826 = vmatpush2.bf16.msra.mxu0 %v1300
  %1827 = vmatprep.subr.bf16.mxu0 %v1299
  %1828 = vmatpush2.bf16.msra.mxu0 %v1298
  %1829 = vmatprep.subr.bf16.mxu0 %v1297
  %1830 = vmatpush2.bf16.msra.mxu0 %v1296
  %1831 = vmatprep.subr.bf16.mxu0 %v1295
  %1832 = vmatpush2.bf16.msra.mxu0 %v1294
  %1833 = vmatprep.subr.bf16.mxu0 %v1293
  %1834 = vmatpush2.bf16.msra.mxu0 %v1292
  %1835 = vmatprep.subr.bf16.mxu0 %v1291
  %1836 = vmatpush2.bf16.msra.mxu0 %v1290
  %1837 = vmatprep.subr.bf16.mxu0 %v1289
  %1838 = vmatpush2.bf16.msra.mxu0 %v1288
  %1839 = vmatprep.subr.bf16.mxu0 %v1287
  %1840 = vmatpush2.bf16.msra.mxu0 %v1286
  %1841 = vmatprep.mubr.bf16.mxu0 %v340
  %1842 = vmatmul.mubr.bf16.gmra.mxu0 %v338
  %v1843 = vpop.f32.mrf.mxu0
  %v1844 = vadd.f32 %v1803, %v1843
  %v1845 = vpop.f32.mrf.mxu0
  %v1846 = vadd.f32 %v1805, %v1845
  %v1847 = vpop.f32.mrf.mxu0
  %v1848 = vpop.f32.mrf.mxu0
  %1849 = vdwg.mxu0
  %1850 = vmatprep.subr.bf16.mxu0 %v1317
  %1851 = vmatpush1.bf16.msra.mxu0 %v1316
  %1852 = vmatprep.subr.bf16.mxu0 %v1315
  %1853 = vmatpush1.bf16.msra.mxu0 %v1314
  %1854 = vmatprep.subr.bf16.mxu0 %v1313
  %1855 = vmatpush1.bf16.msra.mxu0 %v1312
  %1856 = vmatprep.subr.bf16.mxu0 %v1311
  %1857 = vmatpush1.bf16.msra.mxu0 %v1310
  %1858 = vmatprep.subr.bf16.mxu0 %v1309
  %1859 = vmatpush1.bf16.msra.mxu0 %v1308
  %1860 = vmatprep.subr.bf16.mxu0 %v1307
  %1861 = vmatpush1.bf16.msra.mxu0 %v1306
  %1862 = vmatprep.subr.bf16.mxu0 %v1305
  %1863 = vmatpush1.bf16.msra.mxu0 %v1304
  %1864 = vmatprep.subr.bf16.mxu0 %v1303
  %1865 = vmatpush1.bf16.msra.mxu0 %v1302
  %1866 = vmatprep.subr.bf16.mxu0 %v1333
  %1867 = vmatpush2.bf16.msra.mxu0 %v1332
  %1868 = vmatprep.subr.bf16.mxu0 %v1331
  %1869 = vmatpush2.bf16.msra.mxu0 %v1330
  %1870 = vmatprep.subr.bf16.mxu0 %v1329
  %1871 = vmatpush2.bf16.msra.mxu0 %v1328
  %1872 = vmatprep.subr.bf16.mxu0 %v1327
  %1873 = vmatpush2.bf16.msra.mxu0 %v1326
  %1874 = vmatprep.subr.bf16.mxu0 %v1325
  %1875 = vmatpush2.bf16.msra.mxu0 %v1324
  %1876 = vmatprep.subr.bf16.mxu0 %v1323
  %1877 = vmatpush2.bf16.msra.mxu0 %v1322
  %1878 = vmatprep.subr.bf16.mxu0 %v1321
  %1879 = vmatpush2.bf16.msra.mxu0 %v1320
  %1880 = vmatprep.subr.bf16.mxu0 %v1319
  %1881 = vmatpush2.bf16.msra.mxu0 %v1318
  %1882 = vmatprep.mubr.bf16.mxu0 %v378
  %1883 = vmatmul.mubr.bf16.gmra.mxu0 %v364
  %v1884 = vpop.f32.mrf.mxu0
  %v1885 = vadd.f32 %v1844, %v1884
  %v1886 = vpop.f32.mrf.mxu0
  %v1887 = vadd.f32 %v1846, %v1886
  %v1888 = vpop.f32.mrf.mxu0
  %v1889 = vpop.f32.mrf.mxu0
  %1890 = vdwg.mxu0
  %1891 = vmatprep.subr.bf16.mxu0 %v1349
  %1892 = vmatpush1.bf16.msra.mxu0 %v1348
  %1893 = vmatprep.subr.bf16.mxu0 %v1347
  %1894 = vmatpush1.bf16.msra.mxu0 %v1346
  %1895 = vmatprep.subr.bf16.mxu0 %v1345
  %1896 = vmatpush1.bf16.msra.mxu0 %v1344
  %1897 = vmatprep.subr.bf16.mxu0 %v1343
  %1898 = vmatpush1.bf16.msra.mxu0 %v1342
  %1899 = vmatprep.subr.bf16.mxu0 %v1341
  %1900 = vmatpush1.bf16.msra.mxu0 %v1340
  %1901 = vmatprep.subr.bf16.mxu0 %v1339
  %1902 = vmatpush1.bf16.msra.mxu0 %v1338
  %1903 = vmatprep.subr.bf16.mxu0 %v1337
  %1904 = vmatpush1.bf16.msra.mxu0 %v1336
  %1905 = vmatprep.subr.bf16.mxu0 %v1335
  %1906 = vmatpush1.bf16.msra.mxu0 %v1334
  %1907 = vmatprep.subr.bf16.mxu0 %v1365
  %1908 = vmatpush2.bf16.msra.mxu0 %v1364
  %1909 = vmatprep.subr.bf16.mxu0 %v1363
  %1910 = vmatpush2.bf16.msra.mxu0 %v1362
  %1911 = vmatprep.subr.bf16.mxu0 %v1361
  %1912 = vmatpush2.bf16.msra.mxu0 %v1360
  %1913 = vmatprep.subr.bf16.mxu0 %v1359
  %1914 = vmatpush2.bf16.msra.mxu0 %v1358
  %1915 = vmatprep.subr.bf16.mxu0 %v1357
  %1916 = vmatpush2.bf16.msra.mxu0 %v1356
  %1917 = vmatprep.subr.bf16.mxu0 %v1355
  %1918 = vmatpush2.bf16.msra.mxu0 %v1354
  %1919 = vmatprep.subr.bf16.mxu0 %v1353
  %1920 = vmatpush2.bf16.msra.mxu0 %v1352
  %1921 = vmatprep.subr.bf16.mxu0 %v1351
  %1922 = vmatpush2.bf16.msra.mxu0 %v1350
  %1923 = vmatprep.mubr.bf16.mxu0 %v388
  %1924 = vmatmul.mubr.bf16.gmra.mxu0 %v386
  %v1925 = vpop.f32.mrf.mxu0
  %v1926 = vadd.f32 %v1885, %v1925
  %v1927 = vpop.f32.mrf.mxu0
  %v1928 = vadd.f32 %v1887, %v1927
  %v1929 = vpop.f32.mrf.mxu0
  %v1930 = vpop.f32.mrf.mxu0
  %1931 = vdwg.mxu0
  %1932 = vmatprep.subr.bf16.mxu0 %v1381
  %1933 = vmatpush1.bf16.msra.mxu0 %v1380
  %1934 = vmatprep.subr.bf16.mxu0 %v1379
  %1935 = vmatpush1.bf16.msra.mxu0 %v1378
  %1936 = vmatprep.subr.bf16.mxu0 %v1377
  %1937 = vmatpush1.bf16.msra.mxu0 %v1376
  %1938 = vmatprep.subr.bf16.mxu0 %v1375
  %1939 = vmatpush1.bf16.msra.mxu0 %v1374
  %1940 = vmatprep.subr.bf16.mxu0 %v1373
  %1941 = vmatpush1.bf16.msra.mxu0 %v1372
  %1942 = vmatprep.subr.bf16.mxu0 %v1371
  %1943 = vmatpush1.bf16.msra.mxu0 %v1370
  %1944 = vmatprep.subr.bf16.mxu0 %v1369
  %1945 = vmatpush1.bf16.msra.mxu0 %v1368
  %1946 = vmatprep.subr.bf16.mxu0 %v1367
  %1947 = vmatpush1.bf16.msra.mxu0 %v1366
  %1948 = vmatprep.subr.bf16.mxu0 %v1397
  %1949 = vmatpush2.bf16.msra.mxu0 %v1396
  %1950 = vmatprep.subr.bf16.mxu0 %v1395
  %1951 = vmatpush2.bf16.msra.mxu0 %v1394
  %1952 = vmatprep.subr.bf16.mxu0 %v1393
  %1953 = vmatpush2.bf16.msra.mxu0 %v1392
  %1954 = vmatprep.subr.bf16.mxu0 %v1391
  %1955 = vmatpush2.bf16.msra.mxu0 %v1390
  %1956 = vmatprep.subr.bf16.mxu0 %v1389
  %1957 = vmatpush2.bf16.msra.mxu0 %v1388
  %1958 = vmatprep.subr.bf16.mxu0 %v1387
  %1959 = vmatpush2.bf16.msra.mxu0 %v1386
  %1960 = vmatprep.subr.bf16.mxu0 %v1385
  %1961 = vmatpush2.bf16.msra.mxu0 %v1384
  %1962 = vmatprep.subr.bf16.mxu0 %v1383
  %1963 = vmatpush2.bf16.msra.mxu0 %v1382
  %1964 = vmatprep.mubr.bf16.mxu0 %v385
  %1965 = vmatmul.mubr.bf16.gmra.mxu0 %v371
  %v1966 = vpop.f32.mrf.mxu0
  %v1967 = vadd.f32 %v1926, %v1966
  %v1968 = vpop.f32.mrf.mxu0
  %v1969 = vadd.f32 %v1928, %v1968
  %v1970 = vpop.f32.mrf.mxu0
  %v1971 = vpop.f32.mrf.mxu0
  %1972 = vdwg.mxu0
  %1973 = vmatprep.subr.bf16.mxu0 %v1413
  %1974 = vmatpush1.bf16.msra.mxu0 %v1412
  %1975 = vmatprep.subr.bf16.mxu0 %v1411
  %1976 = vmatpush1.bf16.msra.mxu0 %v1410
  %1977 = vmatprep.subr.bf16.mxu0 %v1409
  %1978 = vmatpush1.bf16.msra.mxu0 %v1408
  %1979 = vmatprep.subr.bf16.mxu0 %v1407
  %1980 = vmatpush1.bf16.msra.mxu0 %v1406
  %1981 = vmatprep.subr.bf16.mxu0 %v1405
  %1982 = vmatpush1.bf16.msra.mxu0 %v1404
  %1983 = vmatprep.subr.bf16.mxu0 %v1403
  %1984 = vmatpush1.bf16.msra.mxu0 %v1402
  %1985 = vmatprep.subr.bf16.mxu0 %v1401
  %1986 = vmatpush1.bf16.msra.mxu0 %v1400
  %1987 = vmatprep.subr.bf16.mxu0 %v1399
  %1988 = vmatpush1.bf16.msra.mxu0 %v1398
  %1989 = vmatprep.subr.bf16.mxu0 %v1429
  %1990 = vmatpush2.bf16.msra.mxu0 %v1428
  %1991 = vmatprep.subr.bf16.mxu0 %v1427
  %1992 = vmatpush2.bf16.msra.mxu0 %v1426
  %1993 = vmatprep.subr.bf16.mxu0 %v1425
  %1994 = vmatpush2.bf16.msra.mxu0 %v1424
  %1995 = vmatprep.subr.bf16.mxu0 %v1423
  %1996 = vmatpush2.bf16.msra.mxu0 %v1422
  %1997 = vmatprep.subr.bf16.mxu0 %v1421
  %1998 = vmatpush2.bf16.msra.mxu0 %v1420
  %1999 = vmatprep.subr.bf16.mxu0 %v1419
  %2000 = vmatpush2.bf16.msra.mxu0 %v1418
  %2001 = vmatprep.subr.bf16.mxu0 %v1417
  %2002 = vmatpush2.bf16.msra.mxu0 %v1416
  %2003 = vmatprep.subr.bf16.mxu0 %v1415
  %2004 = vmatpush2.bf16.msra.mxu0 %v1414
  %2005 = vmatprep.mubr.bf16.mxu0 %v389
  %2006 = vmatmul.mubr.bf16.gmra.mxu0 %v387
  %v2007 = vpop.f32.mrf.mxu0
  %v2008 = vadd.f32 %v1967, %v2007
  %v2009 = vpop.f32.mrf.mxu0
  %v2010 = vadd.f32 %v1969, %v2009
  %v2011 = vpop.f32.mrf.mxu0
  %v2012 = vpop.f32.mrf.mxu0
  %2013 = vdwg.mxu0
  %vm2014 = vcmp.gt.f32.partialorder %v2008, 0.0
  %vm2015 = vcmp.gt.f32.partialorder %v2010, 0.0
  %v2016 = vmul.f32 %v2008, 0.2
  %v2017 = vmul.f32 %v2010, 0.2
  %v2018 = vsel %vm2014, %v2008, %v2016
  %v2019 = vsel %vm2015, %v2010, %v2017
  %v2020 = vld [vmem:[%s4] sm:$0x3]
  %v2021 = vld [vmem:[%s2] sm:$0x3]
  %v2023 = vlaneseq
  %v2024 = vshrl.u32 %v2023, 7
  %v2025 = vsub.s32 0, %v2024
  %v2026 = vrot.slane %v2021, %v2025
  %v2027 = vlaneseq
  %v2028 = vshrl.u32 %v2027, 7
  %v2029 = vsub.s32 1, %v2028
  %v2030 = vrot.slane %v2021, %v2029
  %v2033 = vmul.f32 %v2018, %v2026
  %v2034 = vmul.f32 %v2019, %v2030
  %vm2035 = vcmask 1041408
  %v2036 = vsel %vm2035, %v2033, 0.0
  %v2037 = vsel %vm2035, %v2034, 0.0
  %v2038 = vadd.f32 %v2036, %v2037
  %2039 = vadd.xlane.f32.xlu0 %v2038
  %v2040 = vpop.xlane.xlu0 %2039
  %v2041 = vadd.f32 %v2020, %v2040
  %vm2042 = vcmask 1024
  %2043 = vst.msk [vmem:[%s4] sm:$0x3] %vm2042, %v2041
  // Predicated region
  $region22: #{data_discriminator_forward.11} parent=0 // pred_check
    _
  $region23: #{data_discriminator_forward.11} parent=0 // pred_check_branch
    %2045 = sbr.rel (0) target = $region25
  $region24: #{data_discriminator_forward.11} parent=0 // pred_region
    _
  $region25: #{data_discriminator_forward.11} parent=0 // pred_fallthru
    _
  // Predicated region
  $region26: #{data_discriminator_forward.11} parent=0 // pred_check
    _
  $region27: #{data_discriminator_forward.11} parent=0 // pred_check_branch
    %2047 = sbr.rel (0) target = $region29
  $region28: #{data_discriminator_forward.11} parent=0 // pred_region
    _
  $region29: #{data_discriminator_forward.11} parent=0 // pred_fallthru
    _

</llo_original>
